<compile_context>
chip_gen: v5e
topology: v5e:2x2
jax: 0.10.0
libtpu: 0.0.40
codegen_flags: <defaults>
</compile_context>

<pallas_src>
import numpy as np
import jax
import jax.numpy as jnp
from jax import lax
from jax.experimental import pallas as pl
from jax.experimental.pallas import tpu as pltpu

NEG_SLOPE = 0.2
EPS = 1e-5
NUM_GROUPS = 2
NUM_LAYERS = 4
STRIDES = (1, 2, 1, 2)   # input_encoder(s=1), encoder(s=2, s=1, s=2)
LANE = 128


def _round_up(v, m):
    return (v + m - 1) // m * m


def _conv_out_hw(H, W, stride):
    if stride == 1:
        return H, W
    return (H - 1) // 2 + 1, (W - 1) // 2 + 1


# ---------------------------------------------------------------------------
# Host-side compile-time constants (tiny: O(HW) masks + O(HWin*HWout) stride
# selectors — no O(HW^2) per-tap matrices anymore).
# ---------------------------------------------------------------------------
def _make_tap_masks(H, W, padded):
    """masks[t, 0, p] = 1 iff output position p (< H*W) has an in-bounds source
    pixel for 3x3 tap t (padding=1); 0 elsewhere (including lane padding)."""
    m = np.zeros((9, 1, padded), np.float32)
    for dh in range(3):
        for dw in range(3):
            t = dh * 3 + dw
            for p in range(H * W):
                ho, wo = divmod(p, W)
                hi, wi = ho + dh - 1, wo + dw - 1
                if 0 <= hi < H and 0 <= wi < W:
                    m[t, 0, p] = 1.0
    return m


def _make_subsample(H, W, padded_in, padded_out):
    """0/1 matrix S: (stride-1 conv output) @ S == stride-2 conv output."""
    Ho, Wo = (H - 1) // 2 + 1, (W - 1) // 2 + 1
    S = np.zeros((padded_in, padded_out), np.float32)
    for ho in range(Ho):
        for wo in range(Wo):
            S[(2 * ho) * W + 2 * wo, ho * Wo + wo] = 1.0
    return S, Ho, Wo


# ---------------------------------------------------------------------------
# Fused kernel: (roll+mask -> fused K=9*Cin matmul -> [subsample] -> bias ->
# GroupNorm(2) -> LeakyReLU) x 4, per batch tile.
# ---------------------------------------------------------------------------
def _build_kernel(cfg):
    C = cfg["C"]
    Cg = C // NUM_GROUPS

    def gn_lrelu(y, gamma, beta, m0, m1, n_valid):
        inv_n = 1.0 / float(n_valid * Cg)
        rsum = jnp.sum(y, axis=1, keepdims=True)          # (C, 1)
        rsq = jnp.sum(y * y, axis=1, keepdims=True)       # (C, 1)
        mean0 = jnp.sum(rsum * m0, keepdims=True) * inv_n
        mean1 = jnp.sum(rsum * m1, keepdims=True) * inv_n
        var0 = jnp.maximum(jnp.sum(rsq * m0, keepdims=True) * inv_n - mean0 * mean0, 0.0)
        var1 = jnp.maximum(jnp.sum(rsq * m1, keepdims=True) * inv_n - mean1 * mean1, 0.0)
        mean_c = mean0 * m0 + mean1 * m1                   # (C, 1)
        inv_c = lax.rsqrt(var0 + EPS) * m0 + lax.rsqrt(var1 + EPS) * m1
        out = (y - mean_c) * inv_c * gamma + beta
        return jnp.where(out >= 0.0, out, NEG_SLOPE * out)

    def kernel(x_ref, w0_ref, w1_ref, w2_ref, w3_ref, b_ref, g_ref, be_ref,
               ma_ref, mb_ref, s1_ref, s3_ref, out_ref, enc_ref):
        # GroupNorm(2) channel-group masks — hoisted, built once per body.
        row = lax.broadcasted_iota(jnp.int32, (C, 1), 0)
        m0 = (row < Cg).astype(jnp.float32)
        m1 = 1.0 - m0

        w_refs = (w0_ref, w1_ref, w2_ref, w3_ref)
        mask_refs = (ma_ref, ma_ref, mb_ref, mb_ref)   # layers 0/1 and 2/3 share res
        sub_refs = {1: s1_ref, 3: s3_ref}

        for b in range(x_ref.shape[0]):                # static b_tile unroll
            y = x_ref[b]                               # (Cin_p, P0) f32
            for i in range(NUM_LAYERS):
                w_in = cfg["w_in"][i]
                p_in = cfg["p_in"][i]
                out_valid = cfg["out_valid"][i]
                out_pad = cfg["out_pad"][i]
                m_ref = mask_refs[i]

                # 9 taps = 8 lane rolls + 0/1 masks (XLU/VPU), fused into one
                # bf16 K = 9*Cin matmul on the MXU (f32 accumulation).
                pieces = []
                for dh in range(3):
                    for dw in range(3):
                        t = dh * 3 + dw
                        off = (dh - 1) * w_in + (dw - 1)
                        sh = (-off) % p_in
                        shifted = y if sh == 0 else pltpu.roll(y, sh, 1)
                        pieces.append(shifted * m_ref[t])
                stack = jnp.concatenate(pieces, axis=0).astype(jnp.bfloat16)
                acc = jnp.dot(w_refs[i][...], stack,
                              preferred_element_type=jnp.float32)       # (C, p_in)

                if cfg["stride"][i] == 2:
                    # strided conv == subsampled stride-1 conv (one tiny matmul)
                    acc = jnp.dot(acc.astype(jnp.bfloat16), sub_refs[i][...],
                                  preferred_element_type=jnp.float32)   # (C, out_pad)

                acc = acc + b_ref[i]                                     # (C, 1) bias
                if out_pad != out_valid:
                    # zero the padded lanes so GN stats only see valid pixels
                    lane = lax.broadcasted_iota(jnp.int32, (1, out_pad), 1)
                    acc = acc * (lane < out_valid).astype(jnp.float32)

                y = gn_lrelu(acc, g_ref[i], be_ref[i], m0, m1, out_valid)
                if i == 0:
                    enc_ref[b] = y[:, :cfg["hw_enc"]]                    # x_enc
            out_ref[b] = y[:, :cfg["hw_last"]]

    return kernel


def _const_spec(shape):
    """Full-array, grid-invariant BlockSpec; single-buffered when supported."""
    nd = len(shape)
    imap = lambda n, _nd=nd: (0,) * _nd
    if hasattr(pl, "Buffered"):
        try:
            return pl.BlockSpec(shape, imap, pipeline_mode=pl.Buffered(1))
        except TypeError:
            pass
    return pl.BlockSpec(shape, imap)


# ---------------------------------------------------------------------------
# Host wrapper (layout plumbing only; all constants are trace-time)
# ---------------------------------------------------------------------------
def cnn_encoder_forward(x_nchw, params, b_tile=None):
    """Matches CNN_Encoder.forward: returns (encoder(x_enc), x_enc) in NCHW."""
    N, Cin, H, W = x_nchw.shape
    C = params["w0"].shape[-1]
    assert C % NUM_GROUPS == 0 and C % 8 == 0

    # ----- static geometry -------------------------------------------------
    HW0 = H * W
    P0 = _round_up(HW0, LANE)                    # conv-input lane width, layers 0/1
    H1, W1 = _conv_out_hw(H, W, 2)
    HW1 = H1 * W1
    P1 = _round_up(HW1, LANE)                    # conv-input lane width, layers 2/3
    H2, W2 = _conv_out_hw(H1, W1, 2)
    HW2 = H2 * W2

    mask_a = jnp.asarray(_make_tap_masks(H, W, P0))          # (9, 1, P0) f32
    mask_b = jnp.asarray(_make_tap_masks(H1, W1, P1))        # (9, 1, P1) f32
    S1, h1c, w1c = _make_subsample(H, W, P0, P1)
    S3, h2c, w2c = _make_subsample(H1, W1, P1, HW2)
    assert (h1c, w1c) == (H1, W1) and (h2c, w2c) == (H2, W2)
    s1 = jnp.asarray(S1, jnp.bfloat16)           # 0/1 exact in bf16
    s3 = jnp.asarray(S3, jnp.bfloat16)

    # ----- fused conv weights (C, 9*Cin) in bf16 ---------------------------
    cin0p = _round_up(Cin, 8)                    # only pad layer-0 Cin to 8, not C

    def _fuse(w, cinp):
        kh, kw, cin_i, cout = w.shape            # HWIO
        wt = jnp.transpose(w, (3, 0, 1, 2))      # (C, 3, 3, cin)
        if cin_i < cinp:
            wt = jnp.pad(wt, ((0, 0), (0, 0), (0, 0), (0, cinp - cin_i)))
        return wt.reshape(cout, 9 * cinp).astype(jnp.bfloat16)

    w_fused = [_fuse(params["w0"], cin0p)] + [
        _fuse(params[f"w{i}"], C) for i in range(1, NUM_LAYERS)]
    b_all = jnp.stack([params[f"b{i}"].reshape(C, 1) for i in range(NUM_LAYERS)]
                      ).astype(jnp.float32)
    g_all = jnp.stack([params[f"g{i}"].reshape(C, 1) for i in range(NUM_LAYERS)]
                      ).astype(jnp.float32)
    be_all = jnp.stack([params[f"be{i}"].reshape(C, 1) for i in range(NUM_LAYERS)]
                       ).astype(jnp.float32)

    # ----- input: NCHW -> (N, Cin_p, P0), spatial on lanes ------------------
    x = x_nchw.reshape(N, Cin, HW0).astype(jnp.float32)
    x = jnp.pad(x, ((0, 0), (0, cin0p - Cin), (0, P0 - HW0)))

    if b_tile is None:
        b_tile = 2 if (N % 2 == 0 and N > 2) else 1
    assert N % b_tile == 0
    grid = (N // b_tile,)

    cfg = dict(C=C,
               w_in=(W, W, W1, W1),
               p_in=(P0, P0, P1, P1),
               stride=STRIDES,
               out_valid=(HW0, HW1, HW1, HW2),
               out_pad=(P0, P1, P1, HW2),
               hw_enc=HW0, hw_last=HW2)
    kernel = _build_kernel(cfg)

    out, enc = pl.pallas_call(
        kernel,
        grid=grid,
        in_specs=[
            pl.BlockSpec((b_tile, cin0p, P0), lambda n: (n, 0, 0)),
            _const_spec(w_fused[0].shape),
            _const_spec(w_fused[1].shape),
            _const_spec(w_fused[2].shape),
            _const_spec(w_fused[3].shape),
            _const_spec(b_all.shape),
            _const_spec(g_all.shape),
            _const_spec(be_all.shape),
            _const_spec(mask_a.shape),
            _const_spec(mask_b.shape),
            _const_spec(s1.shape),
            _const_spec(s3.shape),
        ],
        out_specs=(
            pl.BlockSpec((b_tile, C, HW2), lambda n: (n, 0, 0)),
            pl.BlockSpec((b_tile, C, HW0), lambda n: (n, 0, 0)),
        ),
        out_shape=(
            jax.ShapeDtypeStruct((N, C, HW2), jnp.float32),
            jax.ShapeDtypeStruct((N, C, HW0), jnp.float32),
        ),
        compiler_params=pltpu.CompilerParams(
            dimension_semantics=("parallel",),
            vmem_limit_bytes=32 * 1024 * 1024,
        ),
    )(x, *w_fused, b_all, g_all, be_all, mask_a, mask_b, s1, s3)

    return out.reshape(N, C, H2, W2), enc.reshape(N, C, H, W)


# ---------------------------------------------------------------------------
# Parameter init (deterministic, synthetic — mirrors module __init__ shapes)
# ---------------------------------------------------------------------------
def init_params(key, input_channels, hidden_channels):
    layer_cins = [input_channels, hidden_channels, hidden_channels, hidden_channels]
    params = {}
    for i, cin in enumerate(layer_cins):
        key, kw, kb = jax.random.split(key, 3)
        fan_in = cin * 9
        params[f"w{i}"] = jax.random.normal(
            kw, (3, 3, cin, hidden_channels), jnp.float32) / jnp.sqrt(fan_in)
        params[f"b{i}"] = jax.random.normal(
            kb, (hidden_channels,), jnp.float32) * 0.01
        params[f"g{i}"] = jnp.ones((hidden_channels,), jnp.float32)    # GN weight
        params[f"be{i}"] = jnp.zeros((hidden_channels,), jnp.float32)  # GN bias
    return params


# ---------------------------------------------------------------------------
# Pure-JAX reference (correctness sanity check, no Pallas)
# ---------------------------------------------------------------------------
def _ref_conv(x, w, b, stride):
    y = lax.conv_general_dilated(
        x, w, window_strides=(stride, stride), padding=((1, 1), (1, 1)),
        dimension_numbers=("NHWC", "HWIO", "NHWC"),
        precision=lax.Precision.HIGHEST)
    return y + b


def _ref_gn_lrelu(x, gamma, beta):
    N, H, W_, C = x.shape
    Cg = C // NUM_GROUPS
    xg = x.reshape(N, H * W_, NUM_GROUPS, Cg)
    mean = xg.mean(axis=(1, 3), keepdims=True)
    var = ((xg - mean) ** 2).mean(axis=(1, 3), keepdims=True)
    xn = ((xg - mean) * lax.rsqrt(var + EPS)).reshape(N, H, W_, C)
    y = xn * gamma + beta
    return jnp.where(y >= 0, y, NEG_SLOPE * y)


def cnn_encoder_ref(x_nchw, params):
    x = jnp.transpose(x_nchw, (0, 2, 3, 1))
    x = _ref_gn_lrelu(_ref_conv(x, params["w0"], params["b0"], 1),
                      params["g0"], params["be0"])
    x_enc = x
    for i, s in zip((1, 2, 3), (2, 1, 2)):
        x = _ref_gn_lrelu(_ref_conv(x, params[f"w{i}"], params[f"b{i}"], s),
                          params[f"g{i}"], params[f"be{i}"])
    return (jnp.transpose(x, (0, 3, 1, 2)),
            jnp.transpose(x_enc, (0, 3, 1, 2)))


# ---------------------------------------------------------------------------
if __name__ == "__main__":
    key = jax.random.PRNGKey(0)
    k_x, k_p = jax.random.split(key)

    batch, input_channels, hidden_channels, spatial = 2, 4, 32, 16
    x = jax.random.normal(k_x, (batch, input_channels, spatial, spatial),
                          jnp.float32)
    params = init_params(k_p, input_channels, hidden_channels)

    fwd = jax.jit(cnn_encoder_forward)
    out, out_enc = fwd(x, params)
    jax.block_until_ready((out, out_enc))

    # sanity check against a pure-JAX f32 reference (bf16 MXU operands ->
    # loosened tolerance, per review)
    ref_out, ref_enc = cnn_encoder_ref(x, params)
    assert out.shape == (batch, hidden_channels, spatial // 4, spatial // 4)
    assert out_enc.shape == (batch, hidden_channels, spatial, spatial)
    assert jnp.allclose(out, ref_out, rtol=5e-2, atol=5e-2)
    assert jnp.allclose(out_enc, ref_enc, rtol=5e-2, atol=5e-2)

    print("KERNEL_OK")
</pallas_src>

<mosaic_0001>
module attributes {stable_mosaic.version = 11 : i64} {
  func.func @kernel(%arg0: i32, %arg1: memref<1x8x256xf32, #tpu.memory_space<vmem>>, %arg2: memref<32x72xbf16, #tpu.memory_space<vmem>>, %arg3: memref<32x288xbf16, #tpu.memory_space<vmem>>, %arg4: memref<32x288xbf16, #tpu.memory_space<vmem>>, %arg5: memref<32x288xbf16, #tpu.memory_space<vmem>>, %arg6: memref<4x32x1xf32, #tpu.memory_space<vmem>>, %arg7: memref<4x32x1xf32, #tpu.memory_space<vmem>>, %arg8: memref<4x32x1xf32, #tpu.memory_space<vmem>>, %arg9: memref<9x1x256xf32, #tpu.memory_space<vmem>>, %arg10: memref<9x1x128xf32, #tpu.memory_space<vmem>>, %arg11: memref<256x128xbf16, #tpu.memory_space<vmem>>, %arg12: memref<128x16xbf16, #tpu.memory_space<vmem>>, %arg13: memref<1x32x16xf32, #tpu.memory_space<vmem>>, %arg14: memref<1x32x256xf32, #tpu.memory_space<vmem>>) attributes {dimension_semantics = [#tpu.dimension_semantics<parallel>], iteration_bounds = array<i64: 2>, scalar_prefetch = 0 : i64, scratch_operands = 0 : i64, tpu.core_type = #tpu.core_type<tc>, window_params = [{transform_indices = @transform_0, window_bounds = array<i64: 1, 8, 256>}, {pipeline_mode = #tpu.pipeline_mode<synchronous>, transform_indices = @transform_1, window_bounds = array<i64: 32, 72>}, {pipeline_mode = #tpu.pipeline_mode<synchronous>, transform_indices = @transform_2, window_bounds = array<i64: 32, 288>}, {pipeline_mode = #tpu.pipeline_mode<synchronous>, transform_indices = @transform_3, window_bounds = array<i64: 32, 288>}, {pipeline_mode = #tpu.pipeline_mode<synchronous>, transform_indices = @transform_4, window_bounds = array<i64: 32, 288>}, {pipeline_mode = #tpu.pipeline_mode<synchronous>, transform_indices = @transform_5, window_bounds = array<i64: 4, 32, 1>}, {pipeline_mode = #tpu.pipeline_mode<synchronous>, transform_indices = @transform_6, window_bounds = array<i64: 4, 32, 1>}, {pipeline_mode = #tpu.pipeline_mode<synchronous>, transform_indices = @transform_7, window_bounds = array<i64: 4, 32, 1>}, {pipeline_mode = #tpu.pipeline_mode<synchronous>, transform_indices = @transform_8, window_bounds = array<i64: 9, 1, 256>}, {pipeline_mode = #tpu.pipeline_mode<synchronous>, transform_indices = @transform_9, window_bounds = array<i64: 9, 1, 128>}, {pipeline_mode = #tpu.pipeline_mode<synchronous>, transform_indices = @transform_10, window_bounds = array<i64: 256, 128>}, {pipeline_mode = #tpu.pipeline_mode<synchronous>, transform_indices = @transform_11, window_bounds = array<i64: 128, 16>}, {transform_indices = @transform_12, window_bounds = array<i64: 1, 32, 16>}, {transform_indices = @transform_13, window_bounds = array<i64: 1, 32, 256>}]} {
    %0 = tpu.iota {dimensions = array<i32: 0>} : vector<32x1xi32>
    %c16_i32 = arith.constant 16 : i32
    %1 = vector.broadcast %c16_i32 : i32 to vector<32x1xi32>
    %2 = arith.cmpi slt, %0, %1 : vector<32x1xi32>
    %3 = arith.extui %2 : vector<32x1xi1> to vector<32x1xi32>
    %4 = arith.sitofp %3 : vector<32x1xi32> to vector<32x1xf32>
    %cst = arith.constant 1.000000e+00 : f32
    %5 = vector.broadcast %cst : f32 to vector<32x1xf32>
    %6 = arith.subf %5, %4 : vector<32x1xf32>
    %c0 = arith.constant 0 : index
    %c0_0 = arith.constant 0 : index
    %c0_1 = arith.constant 0 : index
    %7 = vector.load %arg1[%c0, %c0_0, %c0_1] : memref<1x8x256xf32, #tpu.memory_space<vmem>>, vector<1x8x256xf32>
    %8 = vector.shape_cast %7 : vector<1x8x256xf32> to vector<8x256xf32>
    %c17_i32 = arith.constant 17 : i32
    %9 = tpu.dynamic_rotate %8 by %c17_i32 dim 1 : vector<8x256xf32>, i32 -> vector<8x256xf32>
    %c0_2 = arith.constant 0 : index
    %c0_3 = arith.constant 0 : index
    %c0_4 = arith.constant 0 : index
    %10 = vector.load %arg9[%c0_2, %c0_3, %c0_4] : memref<9x1x256xf32, #tpu.memory_space<vmem>>, vector<1x1x256xf32>
    %11 = vector.shape_cast %10 : vector<1x1x256xf32> to vector<1x256xf32>
    %12 = vector.broadcast %11 : vector<1x256xf32> to vector<8x256xf32>
    %13 = arith.mulf %9, %12 : vector<8x256xf32>
    %c16_i32_5 = arith.constant 16 : i32
    %14 = tpu.dynamic_rotate %8 by %c16_i32_5 dim 1 : vector<8x256xf32>, i32 -> vector<8x256xf32>
    %c1 = arith.constant 1 : index
    %c0_6 = arith.constant 0 : index
    %c0_7 = arith.constant 0 : index
    %15 = vector.load %arg9[%c1, %c0_6, %c0_7] : memref<9x1x256xf32, #tpu.memory_space<vmem>>, vector<1x1x256xf32>
    %16 = vector.shape_cast %15 : vector<1x1x256xf32> to vector<1x256xf32>
    %17 = vector.broadcast %16 : vector<1x256xf32> to vector<8x256xf32>
    %18 = arith.mulf %14, %17 : vector<8x256xf32>
    %c15_i32 = arith.constant 15 : i32
    %19 = tpu.dynamic_rotate %8 by %c15_i32 dim 1 : vector<8x256xf32>, i32 -> vector<8x256xf32>
    %c2 = arith.constant 2 : index
    %c0_8 = arith.constant 0 : index
    %c0_9 = arith.constant 0 : index
    %20 = vector.load %arg9[%c2, %c0_8, %c0_9] : memref<9x1x256xf32, #tpu.memory_space<vmem>>, vector<1x1x256xf32>
    %21 = vector.shape_cast %20 : vector<1x1x256xf32> to vector<1x256xf32>
    %22 = vector.broadcast %21 : vector<1x256xf32> to vector<8x256xf32>
    %23 = arith.mulf %19, %22 : vector<8x256xf32>
    %c1_i32 = arith.constant 1 : i32
    %24 = tpu.dynamic_rotate %8 by %c1_i32 dim 1 : vector<8x256xf32>, i32 -> vector<8x256xf32>
    %c3 = arith.constant 3 : index
    %c0_10 = arith.constant 0 : index
    %c0_11 = arith.constant 0 : index
    %25 = vector.load %arg9[%c3, %c0_10, %c0_11] : memref<9x1x256xf32, #tpu.memory_space<vmem>>, vector<1x1x256xf32>
    %26 = vector.shape_cast %25 : vector<1x1x256xf32> to vector<1x256xf32>
    %27 = vector.broadcast %26 : vector<1x256xf32> to vector<8x256xf32>
    %28 = arith.mulf %24, %27 : vector<8x256xf32>
    %c4 = arith.constant 4 : index
    %c0_12 = arith.constant 0 : index
    %c0_13 = arith.constant 0 : index
    %29 = vector.load %arg9[%c4, %c0_12, %c0_13] : memref<9x1x256xf32, #tpu.memory_space<vmem>>, vector<1x1x256xf32>
    %30 = vector.shape_cast %29 : vector<1x1x256xf32> to vector<1x256xf32>
    %31 = vector.broadcast %30 : vector<1x256xf32> to vector<8x256xf32>
    %32 = arith.mulf %8, %31 : vector<8x256xf32>
    %c255_i32 = arith.constant 255 : i32
    %33 = tpu.dynamic_rotate %8 by %c255_i32 dim 1 : vector<8x256xf32>, i32 -> vector<8x256xf32>
    %c5 = arith.constant 5 : index
    %c0_14 = arith.constant 0 : index
    %c0_15 = arith.constant 0 : index
    %34 = vector.load %arg9[%c5, %c0_14, %c0_15] : memref<9x1x256xf32, #tpu.memory_space<vmem>>, vector<1x1x256xf32>
    %35 = vector.shape_cast %34 : vector<1x1x256xf32> to vector<1x256xf32>
    %36 = vector.broadcast %35 : vector<1x256xf32> to vector<8x256xf32>
    %37 = arith.mulf %33, %36 : vector<8x256xf32>
    %c241_i32 = arith.constant 241 : i32
    %38 = tpu.dynamic_rotate %8 by %c241_i32 dim 1 : vector<8x256xf32>, i32 -> vector<8x256xf32>
    %c6 = arith.constant 6 : index
    %c0_16 = arith.constant 0 : index
    %c0_17 = arith.constant 0 : index
    %39 = vector.load %arg9[%c6, %c0_16, %c0_17] : memref<9x1x256xf32, #tpu.memory_space<vmem>>, vector<1x1x256xf32>
    %40 = vector.shape_cast %39 : vector<1x1x256xf32> to vector<1x256xf32>
    %41 = vector.broadcast %40 : vector<1x256xf32> to vector<8x256xf32>
    %42 = arith.mulf %38, %41 : vector<8x256xf32>
    %c240_i32 = arith.constant 240 : i32
    %43 = tpu.dynamic_rotate %8 by %c240_i32 dim 1 : vector<8x256xf32>, i32 -> vector<8x256xf32>
    %c7 = arith.constant 7 : index
    %c0_18 = arith.constant 0 : index
    %c0_19 = arith.constant 0 : index
    %44 = vector.load %arg9[%c7, %c0_18, %c0_19] : memref<9x1x256xf32, #tpu.memory_space<vmem>>, vector<1x1x256xf32>
    %45 = vector.shape_cast %44 : vector<1x1x256xf32> to vector<1x256xf32>
    %46 = vector.broadcast %45 : vector<1x256xf32> to vector<8x256xf32>
    %47 = arith.mulf %43, %46 : vector<8x256xf32>
    %c239_i32 = arith.constant 239 : i32
    %48 = tpu.dynamic_rotate %8 by %c239_i32 dim 1 : vector<8x256xf32>, i32 -> vector<8x256xf32>
    %c8 = arith.constant 8 : index
    %c0_20 = arith.constant 0 : index
    %c0_21 = arith.constant 0 : index
    %49 = vector.load %arg9[%c8, %c0_20, %c0_21] : memref<9x1x256xf32, #tpu.memory_space<vmem>>, vector<1x1x256xf32>
    %50 = vector.shape_cast %49 : vector<1x1x256xf32> to vector<1x256xf32>
    %51 = vector.broadcast %50 : vector<1x256xf32> to vector<8x256xf32>
    %52 = arith.mulf %48, %51 : vector<8x256xf32>
    %53 = tpu.concatenate %13, %18, %23, %28, %32, %37, %42, %47, %52 in 0 : vector<8x256xf32>, vector<8x256xf32>, vector<8x256xf32>, vector<8x256xf32>, vector<8x256xf32>, vector<8x256xf32>, vector<8x256xf32>, vector<8x256xf32>, vector<8x256xf32> -> vector<72x256xf32>
    %54 = arith.truncf %53 : vector<72x256xf32> to vector<72x256xbf16>
    %c0_22 = arith.constant 0 : index
    %c0_23 = arith.constant 0 : index
    %55 = vector.load %arg2[%c0_22, %c0_23] : memref<32x72xbf16, #tpu.memory_space<vmem>>, vector<32x72xbf16>
    %cst_24 = arith.constant dense<0.000000e+00> : vector<32x256xf32>
    %56 = tpu.matmul %55, %54, %cst_24 {dimension_numbers = #tpu.dot_dimension_numbers<[1], [0], [0], [1], [0, 0, 1, 1], [], []>} : vector<32x72xbf16>, vector<72x256xbf16>, vector<32x256xf32> -> vector<32x256xf32>
    %c0_25 = arith.constant 0 : index
    %c0_26 = arith.constant 0 : index
    %c0_27 = arith.constant 0 : index
    %57 = vector.load %arg6[%c0_25, %c0_26, %c0_27] : memref<4x32x1xf32, #tpu.memory_space<vmem>>, vector<1x32x1xf32>
    %58 = vector.shape_cast %57 : vector<1x32x1xf32> to vector<32x1xf32>
    %59 = vector.broadcast %58 : vector<32x1xf32> to vector<32x256xf32>
    %60 = arith.addf %56, %59 : vector<32x256xf32>
    %c0_28 = arith.constant 0 : index
    %c0_29 = arith.constant 0 : index
    %c0_30 = arith.constant 0 : index
    %61 = vector.load %arg7[%c0_28, %c0_29, %c0_30] : memref<4x32x1xf32, #tpu.memory_space<vmem>>, vector<1x32x1xf32>
    %62 = vector.shape_cast %61 : vector<1x32x1xf32> to vector<32x1xf32>
    %c0_31 = arith.constant 0 : index
    %c0_32 = arith.constant 0 : index
    %c0_33 = arith.constant 0 : index
    %63 = vector.load %arg8[%c0_31, %c0_32, %c0_33] : memref<4x32x1xf32, #tpu.memory_space<vmem>>, vector<1x32x1xf32>
    %64 = vector.shape_cast %63 : vector<1x32x1xf32> to vector<32x1xf32>
    %cst_34 = arith.constant dense<0.000000e+00> : vector<32xf32>
    %65 = vector.multi_reduction <add>, %60, %cst_34 [1] : vector<32x256xf32> to vector<32xf32>
    %66 = vector.shape_cast %65 : vector<32xf32> to vector<32x1xf32>
    %67 = arith.mulf %60, %60 : vector<32x256xf32>
    %cst_35 = arith.constant dense<0.000000e+00> : vector<32xf32>
    %68 = vector.multi_reduction <add>, %67, %cst_35 [1] : vector<32x256xf32> to vector<32xf32>
    %69 = vector.shape_cast %68 : vector<32xf32> to vector<32x1xf32>
    %70 = arith.mulf %66, %4 : vector<32x1xf32>
    %71 = vector.shape_cast %70 : vector<32x1xf32> to vector<1x32x1xf32>
    %cst_36 = arith.constant dense<0.000000e+00> : vector<1xf32>
    %72 = vector.multi_reduction <add>, %71, %cst_36 [1, 2] : vector<1x32x1xf32> to vector<1xf32>
    %73 = vector.shape_cast %72 : vector<1xf32> to vector<1x1x1xf32>
    %74 = vector.extract %73[0, 0, 0] : f32 from vector<1x1x1xf32>
    %75 = vector.broadcast %74 : f32 to vector<1x1xf32>
    %cst_37 = arith.constant 2.44140625E-4 : f32
    %76 = vector.broadcast %cst_37 : f32 to vector<1x1xf32>
    %77 = arith.mulf %75, %76 : vector<1x1xf32>
    %78 = arith.mulf %66, %6 : vector<32x1xf32>
    %79 = vector.shape_cast %78 : vector<32x1xf32> to vector<1x32x1xf32>
    %cst_38 = arith.constant dense<0.000000e+00> : vector<1xf32>
    %80 = vector.multi_reduction <add>, %79, %cst_38 [1, 2] : vector<1x32x1xf32> to vector<1xf32>
    %81 = vector.shape_cast %80 : vector<1xf32> to vector<1x1x1xf32>
    %82 = vector.extract %81[0, 0, 0] : f32 from vector<1x1x1xf32>
    %83 = vector.broadcast %82 : f32 to vector<1x1xf32>
    %cst_39 = arith.constant 2.44140625E-4 : f32
    %84 = vector.broadcast %cst_39 : f32 to vector<1x1xf32>
    %85 = arith.mulf %83, %84 : vector<1x1xf32>
    %86 = arith.mulf %69, %4 : vector<32x1xf32>
    %87 = vector.shape_cast %86 : vector<32x1xf32> to vector<1x32x1xf32>
    %cst_40 = arith.constant dense<0.000000e+00> : vector<1xf32>
    %88 = vector.multi_reduction <add>, %87, %cst_40 [1, 2] : vector<1x32x1xf32> to vector<1xf32>
    %89 = vector.shape_cast %88 : vector<1xf32> to vector<1x1x1xf32>
    %90 = vector.extract %89[0, 0, 0] : f32 from vector<1x1x1xf32>
    %91 = vector.broadcast %90 : f32 to vector<1x1xf32>
    %cst_41 = arith.constant 2.44140625E-4 : f32
    %92 = vector.broadcast %cst_41 : f32 to vector<1x1xf32>
    %93 = arith.mulf %91, %92 : vector<1x1xf32>
    %94 = arith.mulf %77, %77 : vector<1x1xf32>
    %95 = arith.subf %93, %94 : vector<1x1xf32>
    %cst_42 = arith.constant 0.000000e+00 : f32
    %96 = vector.broadcast %cst_42 : f32 to vector<1x1xf32>
    %97 = arith.maximumf %95, %96 : vector<1x1xf32>
    %98 = arith.mulf %69, %6 : vector<32x1xf32>
    %99 = vector.shape_cast %98 : vector<32x1xf32> to vector<1x32x1xf32>
    %cst_43 = arith.constant dense<0.000000e+00> : vector<1xf32>
    %100 = vector.multi_reduction <add>, %99, %cst_43 [1, 2] : vector<1x32x1xf32> to vector<1xf32>
    %101 = vector.shape_cast %100 : vector<1xf32> to vector<1x1x1xf32>
    %102 = vector.extract %101[0, 0, 0] : f32 from vector<1x1x1xf32>
    %103 = vector.broadcast %102 : f32 to vector<1x1xf32>
    %cst_44 = arith.constant 2.44140625E-4 : f32
    %104 = vector.broadcast %cst_44 : f32 to vector<1x1xf32>
    %105 = arith.mulf %103, %104 : vector<1x1xf32>
    %106 = arith.mulf %85, %85 : vector<1x1xf32>
    %107 = arith.subf %105, %106 : vector<1x1xf32>
    %cst_45 = arith.constant 0.000000e+00 : f32
    %108 = vector.broadcast %cst_45 : f32 to vector<1x1xf32>
    %109 = arith.maximumf %107, %108 : vector<1x1xf32>
    %110 = vector.broadcast %77 : vector<1x1xf32> to vector<32x1xf32>
    %111 = arith.mulf %110, %4 : vector<32x1xf32>
    %112 = vector.broadcast %85 : vector<1x1xf32> to vector<32x1xf32>
    %113 = arith.mulf %112, %6 : vector<32x1xf32>
    %114 = arith.addf %111, %113 : vector<32x1xf32>
    %cst_46 = arith.constant 9.99999974E-6 : f32
    %115 = vector.broadcast %cst_46 : f32 to vector<1x1xf32>
    %116 = arith.addf %97, %115 : vector<1x1xf32>
    %117 = math.rsqrt %116 : vector<1x1xf32>
    %118 = vector.broadcast %117 : vector<1x1xf32> to vector<32x1xf32>
    %119 = arith.mulf %118, %4 : vector<32x1xf32>
    %cst_47 = arith.constant 9.99999974E-6 : f32
    %120 = vector.broadcast %cst_47 : f32 to vector<1x1xf32>
    %121 = arith.addf %109, %120 : vector<1x1xf32>
    %122 = math.rsqrt %121 : vector<1x1xf32>
    %123 = vector.broadcast %122 : vector<1x1xf32> to vector<32x1xf32>
    %124 = arith.mulf %123, %6 : vector<32x1xf32>
    %125 = arith.addf %119, %124 : vector<32x1xf32>
    %126 = vector.broadcast %114 : vector<32x1xf32> to vector<32x256xf32>
    %127 = arith.subf %60, %126 : vector<32x256xf32>
    %128 = vector.broadcast %125 : vector<32x1xf32> to vector<32x256xf32>
    %129 = arith.mulf %127, %128 : vector<32x256xf32>
    %130 = vector.broadcast %62 : vector<32x1xf32> to vector<32x256xf32>
    %131 = arith.mulf %129, %130 : vector<32x256xf32>
    %132 = vector.broadcast %64 : vector<32x1xf32> to vector<32x256xf32>
    %133 = arith.addf %131, %132 : vector<32x256xf32>
    %cst_48 = arith.constant 0.000000e+00 : f32
    %134 = vector.broadcast %cst_48 : f32 to vector<32x256xf32>
    %135 = arith.cmpf oge, %133, %134 : vector<32x256xf32>
    %cst_49 = arith.constant 2.000000e-01 : f32
    %136 = vector.broadcast %cst_49 : f32 to vector<32x256xf32>
    %137 = arith.mulf %136, %133 : vector<32x256xf32>
    %138 = arith.select %135, %133, %137 : vector<32x256xi1>, vector<32x256xf32>
    %c0_50 = arith.constant 0 : index
    %c0_51 = arith.constant 0 : index
    %c0_52 = arith.constant 0 : index
    %139 = vector.load %arg14[%c0_50, %c0_51, %c0_52] : memref<1x32x256xf32, #tpu.memory_space<vmem>>, vector<1x32x256xf32>
    %140 = vector.shape_cast %139 : vector<1x32x256xf32> to vector<32x256xf32>
    %141 = vector.shape_cast %138 : vector<32x256xf32> to vector<1x32x256xf32>
    tpu.vector_store %arg14[%c0_50, %c0_51, %c0_52], %141 {strides = array<i32>} : memref<1x32x256xf32, #tpu.memory_space<vmem>>, vector<1x32x256xf32>,
    %c17_i32_53 = arith.constant 17 : i32
    %142 = tpu.dynamic_rotate %138 by %c17_i32_53 dim 1 : vector<32x256xf32>, i32 -> vector<32x256xf32>
    %c0_54 = arith.constant 0 : index
    %c0_55 = arith.constant 0 : index
    %c0_56 = arith.constant 0 : index
    %143 = vector.load %arg9[%c0_54, %c0_55, %c0_56] : memref<9x1x256xf32, #tpu.memory_space<vmem>>, vector<1x1x256xf32>
    %144 = vector.shape_cast %143 : vector<1x1x256xf32> to vector<1x256xf32>
    %145 = vector.broadcast %144 : vector<1x256xf32> to vector<32x256xf32>
    %146 = arith.mulf %142, %145 : vector<32x256xf32>
    %c16_i32_57 = arith.constant 16 : i32
    %147 = tpu.dynamic_rotate %138 by %c16_i32_57 dim 1 : vector<32x256xf32>, i32 -> vector<32x256xf32>
    %c1_58 = arith.constant 1 : index
    %c0_59 = arith.constant 0 : index
    %c0_60 = arith.constant 0 : index
    %148 = vector.load %arg9[%c1_58, %c0_59, %c0_60] : memref<9x1x256xf32, #tpu.memory_space<vmem>>, vector<1x1x256xf32>
    %149 = vector.shape_cast %148 : vector<1x1x256xf32> to vector<1x256xf32>
    %150 = vector.broadcast %149 : vector<1x256xf32> to vector<32x256xf32>
    %151 = arith.mulf %147, %150 : vector<32x256xf32>
    %c15_i32_61 = arith.constant 15 : i32
    %152 = tpu.dynamic_rotate %138 by %c15_i32_61 dim 1 : vector<32x256xf32>, i32 -> vector<32x256xf32>
    %c2_62 = arith.constant 2 : index
    %c0_63 = arith.constant 0 : index
    %c0_64 = arith.constant 0 : index
    %153 = vector.load %arg9[%c2_62, %c0_63, %c0_64] : memref<9x1x256xf32, #tpu.memory_space<vmem>>, vector<1x1x256xf32>
    %154 = vector.shape_cast %153 : vector<1x1x256xf32> to vector<1x256xf32>
    %155 = vector.broadcast %154 : vector<1x256xf32> to vector<32x256xf32>
    %156 = arith.mulf %152, %155 : vector<32x256xf32>
    %c1_i32_65 = arith.constant 1 : i32
    %157 = tpu.dynamic_rotate %138 by %c1_i32_65 dim 1 : vector<32x256xf32>, i32 -> vector<32x256xf32>
    %c3_66 = arith.constant 3 : index
    %c0_67 = arith.constant 0 : index
    %c0_68 = arith.constant 0 : index
    %158 = vector.load %arg9[%c3_66, %c0_67, %c0_68] : memref<9x1x256xf32, #tpu.memory_space<vmem>>, vector<1x1x256xf32>
    %159 = vector.shape_cast %158 : vector<1x1x256xf32> to vector<1x256xf32>
    %160 = vector.broadcast %159 : vector<1x256xf32> to vector<32x256xf32>
    %161 = arith.mulf %157, %160 : vector<32x256xf32>
    %c4_69 = arith.constant 4 : index
    %c0_70 = arith.constant 0 : index
    %c0_71 = arith.constant 0 : index
    %162 = vector.load %arg9[%c4_69, %c0_70, %c0_71] : memref<9x1x256xf32, #tpu.memory_space<vmem>>, vector<1x1x256xf32>
    %163 = vector.shape_cast %162 : vector<1x1x256xf32> to vector<1x256xf32>
    %164 = vector.broadcast %163 : vector<1x256xf32> to vector<32x256xf32>
    %165 = arith.mulf %138, %164 : vector<32x256xf32>
    %c255_i32_72 = arith.constant 255 : i32
    %166 = tpu.dynamic_rotate %138 by %c255_i32_72 dim 1 : vector<32x256xf32>, i32 -> vector<32x256xf32>
    %c5_73 = arith.constant 5 : index
    %c0_74 = arith.constant 0 : index
    %c0_75 = arith.constant 0 : index
    %167 = vector.load %arg9[%c5_73, %c0_74, %c0_75] : memref<9x1x256xf32, #tpu.memory_space<vmem>>, vector<1x1x256xf32>
    %168 = vector.shape_cast %167 : vector<1x1x256xf32> to vector<1x256xf32>
    %169 = vector.broadcast %168 : vector<1x256xf32> to vector<32x256xf32>
    %170 = arith.mulf %166, %169 : vector<32x256xf32>
    %c241_i32_76 = arith.constant 241 : i32
    %171 = tpu.dynamic_rotate %138 by %c241_i32_76 dim 1 : vector<32x256xf32>, i32 -> vector<32x256xf32>
    %c6_77 = arith.constant 6 : index
    %c0_78 = arith.constant 0 : index
    %c0_79 = arith.constant 0 : index
    %172 = vector.load %arg9[%c6_77, %c0_78, %c0_79] : memref<9x1x256xf32, #tpu.memory_space<vmem>>, vector<1x1x256xf32>
    %173 = vector.shape_cast %172 : vector<1x1x256xf32> to vector<1x256xf32>
    %174 = vector.broadcast %173 : vector<1x256xf32> to vector<32x256xf32>
    %175 = arith.mulf %171, %174 : vector<32x256xf32>
    %c240_i32_80 = arith.constant 240 : i32
    %176 = tpu.dynamic_rotate %138 by %c240_i32_80 dim 1 : vector<32x256xf32>, i32 -> vector<32x256xf32>
    %c7_81 = arith.constant 7 : index
    %c0_82 = arith.constant 0 : index
    %c0_83 = arith.constant 0 : index
    %177 = vector.load %arg9[%c7_81, %c0_82, %c0_83] : memref<9x1x256xf32, #tpu.memory_space<vmem>>, vector<1x1x256xf32>
    %178 = vector.shape_cast %177 : vector<1x1x256xf32> to vector<1x256xf32>
    %179 = vector.broadcast %178 : vector<1x256xf32> to vector<32x256xf32>
    %180 = arith.mulf %176, %179 : vector<32x256xf32>
    %c239_i32_84 = arith.constant 239 : i32
    %181 = tpu.dynamic_rotate %138 by %c239_i32_84 dim 1 : vector<32x256xf32>, i32 -> vector<32x256xf32>
    %c8_85 = arith.constant 8 : index
    %c0_86 = arith.constant 0 : index
    %c0_87 = arith.constant 0 : index
    %182 = vector.load %arg9[%c8_85, %c0_86, %c0_87] : memref<9x1x256xf32, #tpu.memory_space<vmem>>, vector<1x1x256xf32>
    %183 = vector.shape_cast %182 : vector<1x1x256xf32> to vector<1x256xf32>
    %184 = vector.broadcast %183 : vector<1x256xf32> to vector<32x256xf32>
    %185 = arith.mulf %181, %184 : vector<32x256xf32>
    %186 = tpu.concatenate %146, %151, %156, %161, %165, %170, %175, %180, %185 in 0 : vector<32x256xf32>, vector<32x256xf32>, vector<32x256xf32>, vector<32x256xf32>, vector<32x256xf32>, vector<32x256xf32>, vector<32x256xf32>, vector<32x256xf32>, vector<32x256xf32> -> vector<288x256xf32>
    %187 = arith.truncf %186 : vector<288x256xf32> to vector<288x256xbf16>
    %c0_88 = arith.constant 0 : index
    %c0_89 = arith.constant 0 : index
    %188 = vector.load %arg3[%c0_88, %c0_89] : memref<32x288xbf16, #tpu.memory_space<vmem>>, vector<32x288xbf16>
    %cst_90 = arith.constant dense<0.000000e+00> : vector<32x256xf32>
    %189 = tpu.matmul %188, %187, %cst_90 {dimension_numbers = #tpu.dot_dimension_numbers<[1], [0], [0], [1], [0, 0, 1, 1], [], []>} : vector<32x288xbf16>, vector<288x256xbf16>, vector<32x256xf32> -> vector<32x256xf32>
    %190 = arith.truncf %189 : vector<32x256xf32> to vector<32x256xbf16>
    %c0_91 = arith.constant 0 : index
    %c0_92 = arith.constant 0 : index
    %191 = vector.load %arg11[%c0_91, %c0_92] : memref<256x128xbf16, #tpu.memory_space<vmem>>, vector<256x128xbf16>
    %cst_93 = arith.constant dense<0.000000e+00> : vector<32x128xf32>
    %192 = tpu.matmul %190, %191, %cst_93 {dimension_numbers = #tpu.dot_dimension_numbers<[1], [0], [0], [1], [0, 0, 1, 1], [], []>} : vector<32x256xbf16>, vector<256x128xbf16>, vector<32x128xf32> -> vector<32x128xf32>
    %c1_94 = arith.constant 1 : index
    %c0_95 = arith.constant 0 : index
    %c0_96 = arith.constant 0 : index
    %193 = vector.load %arg6[%c1_94, %c0_95, %c0_96] : memref<4x32x1xf32, #tpu.memory_space<vmem>>, vector<1x32x1xf32>
    %194 = vector.shape_cast %193 : vector<1x32x1xf32> to vector<32x1xf32>
    %195 = vector.broadcast %194 : vector<32x1xf32> to vector<32x128xf32>
    %196 = arith.addf %192, %195 : vector<32x128xf32>
    %197 = tpu.iota {dimensions = array<i32: 1>} : vector<1x128xi32>
    %c64_i32 = arith.constant 64 : i32
    %198 = vector.broadcast %c64_i32 : i32 to vector<1x128xi32>
    %199 = arith.cmpi slt, %197, %198 : vector<1x128xi32>
    %200 = arith.extui %199 : vector<1x128xi1> to vector<1x128xi32>
    %201 = arith.sitofp %200 : vector<1x128xi32> to vector<1x128xf32>
    %202 = vector.broadcast %201 : vector<1x128xf32> to vector<32x128xf32>
    %203 = arith.mulf %196, %202 : vector<32x128xf32>
    %c1_97 = arith.constant 1 : index
    %c0_98 = arith.constant 0 : index
    %c0_99 = arith.constant 0 : index
    %204 = vector.load %arg7[%c1_97, %c0_98, %c0_99] : memref<4x32x1xf32, #tpu.memory_space<vmem>>, vector<1x32x1xf32>
    %205 = vector.shape_cast %204 : vector<1x32x1xf32> to vector<32x1xf32>
    %c1_100 = arith.constant 1 : index
    %c0_101 = arith.constant 0 : index
    %c0_102 = arith.constant 0 : index
    %206 = vector.load %arg8[%c1_100, %c0_101, %c0_102] : memref<4x32x1xf32, #tpu.memory_space<vmem>>, vector<1x32x1xf32>
    %207 = vector.shape_cast %206 : vector<1x32x1xf32> to vector<32x1xf32>
    %cst_103 = arith.constant dense<0.000000e+00> : vector<32xf32>
    %208 = vector.multi_reduction <add>, %203, %cst_103 [1] : vector<32x128xf32> to vector<32xf32>
    %209 = vector.shape_cast %208 : vector<32xf32> to vector<32x1xf32>
    %210 = arith.mulf %203, %203 : vector<32x128xf32>
    %cst_104 = arith.constant dense<0.000000e+00> : vector<32xf32>
    %211 = vector.multi_reduction <add>, %210, %cst_104 [1] : vector<32x128xf32> to vector<32xf32>
    %212 = vector.shape_cast %211 : vector<32xf32> to vector<32x1xf32>
    %213 = arith.mulf %209, %4 : vector<32x1xf32>
    %214 = vector.shape_cast %213 : vector<32x1xf32> to vector<1x32x1xf32>
    %cst_105 = arith.constant dense<0.000000e+00> : vector<1xf32>
    %215 = vector.multi_reduction <add>, %214, %cst_105 [1, 2] : vector<1x32x1xf32> to vector<1xf32>
    %216 = vector.shape_cast %215 : vector<1xf32> to vector<1x1x1xf32>
    %217 = vector.extract %216[0, 0, 0] : f32 from vector<1x1x1xf32>
    %218 = vector.broadcast %217 : f32 to vector<1x1xf32>
    %cst_106 = arith.constant 9.765625E-4 : f32
    %219 = vector.broadcast %cst_106 : f32 to vector<1x1xf32>
    %220 = arith.mulf %218, %219 : vector<1x1xf32>
    %221 = arith.mulf %209, %6 : vector<32x1xf32>
    %222 = vector.shape_cast %221 : vector<32x1xf32> to vector<1x32x1xf32>
    %cst_107 = arith.constant dense<0.000000e+00> : vector<1xf32>
    %223 = vector.multi_reduction <add>, %222, %cst_107 [1, 2] : vector<1x32x1xf32> to vector<1xf32>
    %224 = vector.shape_cast %223 : vector<1xf32> to vector<1x1x1xf32>
    %225 = vector.extract %224[0, 0, 0] : f32 from vector<1x1x1xf32>
    %226 = vector.broadcast %225 : f32 to vector<1x1xf32>
    %cst_108 = arith.constant 9.765625E-4 : f32
    %227 = vector.broadcast %cst_108 : f32 to vector<1x1xf32>
    %228 = arith.mulf %226, %227 : vector<1x1xf32>
    %229 = arith.mulf %212, %4 : vector<32x1xf32>
    %230 = vector.shape_cast %229 : vector<32x1xf32> to vector<1x32x1xf32>
    %cst_109 = arith.constant dense<0.000000e+00> : vector<1xf32>
    %231 = vector.multi_reduction <add>, %230, %cst_109 [1, 2] : vector<1x32x1xf32> to vector<1xf32>
    %232 = vector.shape_cast %231 : vector<1xf32> to vector<1x1x1xf32>
    %233 = vector.extract %232[0, 0, 0] : f32 from vector<1x1x1xf32>
    %234 = vector.broadcast %233 : f32 to vector<1x1xf32>
    %cst_110 = arith.constant 9.765625E-4 : f32
    %235 = vector.broadcast %cst_110 : f32 to vector<1x1xf32>
    %236 = arith.mulf %234, %235 : vector<1x1xf32>
    %237 = arith.mulf %220, %220 : vector<1x1xf32>
    %238 = arith.subf %236, %237 : vector<1x1xf32>
    %cst_111 = arith.constant 0.000000e+00 : f32
    %239 = vector.broadcast %cst_111 : f32 to vector<1x1xf32>
    %240 = arith.maximumf %238, %239 : vector<1x1xf32>
    %241 = arith.mulf %212, %6 : vector<32x1xf32>
    %242 = vector.shape_cast %241 : vector<32x1xf32> to vector<1x32x1xf32>
    %cst_112 = arith.constant dense<0.000000e+00> : vector<1xf32>
    %243 = vector.multi_reduction <add>, %242, %cst_112 [1, 2] : vector<1x32x1xf32> to vector<1xf32>
    %244 = vector.shape_cast %243 : vector<1xf32> to vector<1x1x1xf32>
    %245 = vector.extract %244[0, 0, 0] : f32 from vector<1x1x1xf32>
    %246 = vector.broadcast %245 : f32 to vector<1x1xf32>
    %cst_113 = arith.constant 9.765625E-4 : f32
    %247 = vector.broadcast %cst_113 : f32 to vector<1x1xf32>
    %248 = arith.mulf %246, %247 : vector<1x1xf32>
    %249 = arith.mulf %228, %228 : vector<1x1xf32>
    %250 = arith.subf %248, %249 : vector<1x1xf32>
    %cst_114 = arith.constant 0.000000e+00 : f32
    %251 = vector.broadcast %cst_114 : f32 to vector<1x1xf32>
    %252 = arith.maximumf %250, %251 : vector<1x1xf32>
    %253 = vector.broadcast %220 : vector<1x1xf32> to vector<32x1xf32>
    %254 = arith.mulf %253, %4 : vector<32x1xf32>
    %255 = vector.broadcast %228 : vector<1x1xf32> to vector<32x1xf32>
    %256 = arith.mulf %255, %6 : vector<32x1xf32>
    %257 = arith.addf %254, %256 : vector<32x1xf32>
    %cst_115 = arith.constant 9.99999974E-6 : f32
    %258 = vector.broadcast %cst_115 : f32 to vector<1x1xf32>
    %259 = arith.addf %240, %258 : vector<1x1xf32>
    %260 = math.rsqrt %259 : vector<1x1xf32>
    %261 = vector.broadcast %260 : vector<1x1xf32> to vector<32x1xf32>
    %262 = arith.mulf %261, %4 : vector<32x1xf32>
    %cst_116 = arith.constant 9.99999974E-6 : f32
    %263 = vector.broadcast %cst_116 : f32 to vector<1x1xf32>
    %264 = arith.addf %252, %263 : vector<1x1xf32>
    %265 = math.rsqrt %264 : vector<1x1xf32>
    %266 = vector.broadcast %265 : vector<1x1xf32> to vector<32x1xf32>
    %267 = arith.mulf %266, %6 : vector<32x1xf32>
    %268 = arith.addf %262, %267 : vector<32x1xf32>
    %269 = vector.broadcast %257 : vector<32x1xf32> to vector<32x128xf32>
    %270 = arith.subf %203, %269 : vector<32x128xf32>
    %271 = vector.broadcast %268 : vector<32x1xf32> to vector<32x128xf32>
    %272 = arith.mulf %270, %271 : vector<32x128xf32>
    %273 = vector.broadcast %205 : vector<32x1xf32> to vector<32x128xf32>
    %274 = arith.mulf %272, %273 : vector<32x128xf32>
    %275 = vector.broadcast %207 : vector<32x1xf32> to vector<32x128xf32>
    %276 = arith.addf %274, %275 : vector<32x128xf32>
    %cst_117 = arith.constant 0.000000e+00 : f32
    %277 = vector.broadcast %cst_117 : f32 to vector<32x128xf32>
    %278 = arith.cmpf oge, %276, %277 : vector<32x128xf32>
    %cst_118 = arith.constant 2.000000e-01 : f32
    %279 = vector.broadcast %cst_118 : f32 to vector<32x128xf32>
    %280 = arith.mulf %279, %276 : vector<32x128xf32>
    %281 = arith.select %278, %276, %280 : vector<32x128xi1>, vector<32x128xf32>
    %c9_i32 = arith.constant 9 : i32
    %282 = tpu.dynamic_rotate %281 by %c9_i32 dim 1 : vector<32x128xf32>, i32 -> vector<32x128xf32>
    %c0_119 = arith.constant 0 : index
    %c0_120 = arith.constant 0 : index
    %c0_121 = arith.constant 0 : index
    %283 = vector.load %arg10[%c0_119, %c0_120, %c0_121] : memref<9x1x128xf32, #tpu.memory_space<vmem>>, vector<1x1x128xf32>
    %284 = vector.shape_cast %283 : vector<1x1x128xf32> to vector<1x128xf32>
    %285 = vector.broadcast %284 : vector<1x128xf32> to vector<32x128xf32>
    %286 = arith.mulf %282, %285 : vector<32x128xf32>
    %c8_i32 = arith.constant 8 : i32
    %287 = tpu.dynamic_rotate %281 by %c8_i32 dim 1 : vector<32x128xf32>, i32 -> vector<32x128xf32>
    %c1_122 = arith.constant 1 : index
    %c0_123 = arith.constant 0 : index
    %c0_124 = arith.constant 0 : index
    %288 = vector.load %arg10[%c1_122, %c0_123, %c0_124] : memref<9x1x128xf32, #tpu.memory_space<vmem>>, vector<1x1x128xf32>
    %289 = vector.shape_cast %288 : vector<1x1x128xf32> to vector<1x128xf32>
    %290 = vector.broadcast %289 : vector<1x128xf32> to vector<32x128xf32>
    %291 = arith.mulf %287, %290 : vector<32x128xf32>
    %c7_i32 = arith.constant 7 : i32
    %292 = tpu.dynamic_rotate %281 by %c7_i32 dim 1 : vector<32x128xf32>, i32 -> vector<32x128xf32>
    %c2_125 = arith.constant 2 : index
    %c0_126 = arith.constant 0 : index
    %c0_127 = arith.constant 0 : index
    %293 = vector.load %arg10[%c2_125, %c0_126, %c0_127] : memref<9x1x128xf32, #tpu.memory_space<vmem>>, vector<1x1x128xf32>
    %294 = vector.shape_cast %293 : vector<1x1x128xf32> to vector<1x128xf32>
    %295 = vector.broadcast %294 : vector<1x128xf32> to vector<32x128xf32>
    %296 = arith.mulf %292, %295 : vector<32x128xf32>
    %c1_i32_128 = arith.constant 1 : i32
    %297 = tpu.dynamic_rotate %281 by %c1_i32_128 dim 1 : vector<32x128xf32>, i32 -> vector<32x128xf32>
    %c3_129 = arith.constant 3 : index
    %c0_130 = arith.constant 0 : index
    %c0_131 = arith.constant 0 : index
    %298 = vector.load %arg10[%c3_129, %c0_130, %c0_131] : memref<9x1x128xf32, #tpu.memory_space<vmem>>, vector<1x1x128xf32>
    %299 = vector.shape_cast %298 : vector<1x1x128xf32> to vector<1x128xf32>
    %300 = vector.broadcast %299 : vector<1x128xf32> to vector<32x128xf32>
    %301 = arith.mulf %297, %300 : vector<32x128xf32>
    %c4_132 = arith.constant 4 : index
    %c0_133 = arith.constant 0 : index
    %c0_134 = arith.constant 0 : index
    %302 = vector.load %arg10[%c4_132, %c0_133, %c0_134] : memref<9x1x128xf32, #tpu.memory_space<vmem>>, vector<1x1x128xf32>
    %303 = vector.shape_cast %302 : vector<1x1x128xf32> to vector<1x128xf32>
    %304 = vector.broadcast %303 : vector<1x128xf32> to vector<32x128xf32>
    %305 = arith.mulf %281, %304 : vector<32x128xf32>
    %c127_i32 = arith.constant 127 : i32
    %306 = tpu.dynamic_rotate %281 by %c127_i32 dim 1 : vector<32x128xf32>, i32 -> vector<32x128xf32>
    %c5_135 = arith.constant 5 : index
    %c0_136 = arith.constant 0 : index
    %c0_137 = arith.constant 0 : index
    %307 = vector.load %arg10[%c5_135, %c0_136, %c0_137] : memref<9x1x128xf32, #tpu.memory_space<vmem>>, vector<1x1x128xf32>
    %308 = vector.shape_cast %307 : vector<1x1x128xf32> to vector<1x128xf32>
    %309 = vector.broadcast %308 : vector<1x128xf32> to vector<32x128xf32>
    %310 = arith.mulf %306, %309 : vector<32x128xf32>
    %c121_i32 = arith.constant 121 : i32
    %311 = tpu.dynamic_rotate %281 by %c121_i32 dim 1 : vector<32x128xf32>, i32 -> vector<32x128xf32>
    %c6_138 = arith.constant 6 : index
    %c0_139 = arith.constant 0 : index
    %c0_140 = arith.constant 0 : index
    %312 = vector.load %arg10[%c6_138, %c0_139, %c0_140] : memref<9x1x128xf32, #tpu.memory_space<vmem>>, vector<1x1x128xf32>
    %313 = vector.shape_cast %312 : vector<1x1x128xf32> to vector<1x128xf32>
    %314 = vector.broadcast %313 : vector<1x128xf32> to vector<32x128xf32>
    %315 = arith.mulf %311, %314 : vector<32x128xf32>
    %c120_i32 = arith.constant 120 : i32
    %316 = tpu.dynamic_rotate %281 by %c120_i32 dim 1 : vector<32x128xf32>, i32 -> vector<32x128xf32>
    %c7_141 = arith.constant 7 : index
    %c0_142 = arith.constant 0 : index
    %c0_143 = arith.constant 0 : index
    %317 = vector.load %arg10[%c7_141, %c0_142, %c0_143] : memref<9x1x128xf32, #tpu.memory_space<vmem>>, vector<1x1x128xf32>
    %318 = vector.shape_cast %317 : vector<1x1x128xf32> to vector<1x128xf32>
    %319 = vector.broadcast %318 : vector<1x128xf32> to vector<32x128xf32>
    %320 = arith.mulf %316, %319 : vector<32x128xf32>
    %c119_i32 = arith.constant 119 : i32
    %321 = tpu.dynamic_rotate %281 by %c119_i32 dim 1 : vector<32x128xf32>, i32 -> vector<32x128xf32>
    %c8_144 = arith.constant 8 : index
    %c0_145 = arith.constant 0 : index
    %c0_146 = arith.constant 0 : index
    %322 = vector.load %arg10[%c8_144, %c0_145, %c0_146] : memref<9x1x128xf32, #tpu.memory_space<vmem>>, vector<1x1x128xf32>
    %323 = vector.shape_cast %322 : vector<1x1x128xf32> to vector<1x128xf32>
    %324 = vector.broadcast %323 : vector<1x128xf32> to vector<32x128xf32>
    %325 = arith.mulf %321, %324 : vector<32x128xf32>
    %326 = tpu.concatenate %286, %291, %296, %301, %305, %310, %315, %320, %325 in 0 : vector<32x128xf32>, vector<32x128xf32>, vector<32x128xf32>, vector<32x128xf32>, vector<32x128xf32>, vector<32x128xf32>, vector<32x128xf32>, vector<32x128xf32>, vector<32x128xf32> -> vector<288x128xf32>
    %327 = arith.truncf %326 : vector<288x128xf32> to vector<288x128xbf16>
    %c0_147 = arith.constant 0 : index
    %c0_148 = arith.constant 0 : index
    %328 = vector.load %arg4[%c0_147, %c0_148] : memref<32x288xbf16, #tpu.memory_space<vmem>>, vector<32x288xbf16>
    %cst_149 = arith.constant dense<0.000000e+00> : vector<32x128xf32>
    %329 = tpu.matmul %328, %327, %cst_149 {dimension_numbers = #tpu.dot_dimension_numbers<[1], [0], [0], [1], [0, 0, 1, 1], [], []>} : vector<32x288xbf16>, vector<288x128xbf16>, vector<32x128xf32> -> vector<32x128xf32>
    %c2_150 = arith.constant 2 : index
    %c0_151 = arith.constant 0 : index
    %c0_152 = arith.constant 0 : index
    %330 = vector.load %arg6[%c2_150, %c0_151, %c0_152] : memref<4x32x1xf32, #tpu.memory_space<vmem>>, vector<1x32x1xf32>
    %331 = vector.shape_cast %330 : vector<1x32x1xf32> to vector<32x1xf32>
    %332 = vector.broadcast %331 : vector<32x1xf32> to vector<32x128xf32>
    %333 = arith.addf %329, %332 : vector<32x128xf32>
    %334 = tpu.iota {dimensions = array<i32: 1>} : vector<1x128xi32>
    %c64_i32_153 = arith.constant 64 : i32
    %335 = vector.broadcast %c64_i32_153 : i32 to vector<1x128xi32>
    %336 = arith.cmpi slt, %334, %335 : vector<1x128xi32>
    %337 = arith.extui %336 : vector<1x128xi1> to vector<1x128xi32>
    %338 = arith.sitofp %337 : vector<1x128xi32> to vector<1x128xf32>
    %339 = vector.broadcast %338 : vector<1x128xf32> to vector<32x128xf32>
    %340 = arith.mulf %333, %339 : vector<32x128xf32>
    %c2_154 = arith.constant 2 : index
    %c0_155 = arith.constant 0 : index
    %c0_156 = arith.constant 0 : index
    %341 = vector.load %arg7[%c2_154, %c0_155, %c0_156] : memref<4x32x1xf32, #tpu.memory_space<vmem>>, vector<1x32x1xf32>
    %342 = vector.shape_cast %341 : vector<1x32x1xf32> to vector<32x1xf32>
    %c2_157 = arith.constant 2 : index
    %c0_158 = arith.constant 0 : index
    %c0_159 = arith.constant 0 : index
    %343 = vector.load %arg8[%c2_157, %c0_158, %c0_159] : memref<4x32x1xf32, #tpu.memory_space<vmem>>, vector<1x32x1xf32>
    %344 = vector.shape_cast %343 : vector<1x32x1xf32> to vector<32x1xf32>
    %cst_160 = arith.constant dense<0.000000e+00> : vector<32xf32>
    %345 = vector.multi_reduction <add>, %340, %cst_160 [1] : vector<32x128xf32> to vector<32xf32>
    %346 = vector.shape_cast %345 : vector<32xf32> to vector<32x1xf32>
    %347 = arith.mulf %340, %340 : vector<32x128xf32>
    %cst_161 = arith.constant dense<0.000000e+00> : vector<32xf32>
    %348 = vector.multi_reduction <add>, %347, %cst_161 [1] : vector<32x128xf32> to vector<32xf32>
    %349 = vector.shape_cast %348 : vector<32xf32> to vector<32x1xf32>
    %350 = arith.mulf %346, %4 : vector<32x1xf32>
    %351 = vector.shape_cast %350 : vector<32x1xf32> to vector<1x32x1xf32>
    %cst_162 = arith.constant dense<0.000000e+00> : vector<1xf32>
    %352 = vector.multi_reduction <add>, %351, %cst_162 [1, 2] : vector<1x32x1xf32> to vector<1xf32>
    %353 = vector.shape_cast %352 : vector<1xf32> to vector<1x1x1xf32>
    %354 = vector.extract %353[0, 0, 0] : f32 from vector<1x1x1xf32>
    %355 = vector.broadcast %354 : f32 to vector<1x1xf32>
    %cst_163 = arith.constant 9.765625E-4 : f32
    %356 = vector.broadcast %cst_163 : f32 to vector<1x1xf32>
    %357 = arith.mulf %355, %356 : vector<1x1xf32>
    %358 = arith.mulf %346, %6 : vector<32x1xf32>
    %359 = vector.shape_cast %358 : vector<32x1xf32> to vector<1x32x1xf32>
    %cst_164 = arith.constant dense<0.000000e+00> : vector<1xf32>
    %360 = vector.multi_reduction <add>, %359, %cst_164 [1, 2] : vector<1x32x1xf32> to vector<1xf32>
    %361 = vector.shape_cast %360 : vector<1xf32> to vector<1x1x1xf32>
    %362 = vector.extract %361[0, 0, 0] : f32 from vector<1x1x1xf32>
    %363 = vector.broadcast %362 : f32 to vector<1x1xf32>
    %cst_165 = arith.constant 9.765625E-4 : f32
    %364 = vector.broadcast %cst_165 : f32 to vector<1x1xf32>
    %365 = arith.mulf %363, %364 : vector<1x1xf32>
    %366 = arith.mulf %349, %4 : vector<32x1xf32>
    %367 = vector.shape_cast %366 : vector<32x1xf32> to vector<1x32x1xf32>
    %cst_166 = arith.constant dense<0.000000e+00> : vector<1xf32>
    %368 = vector.multi_reduction <add>, %367, %cst_166 [1, 2] : vector<1x32x1xf32> to vector<1xf32>
    %369 = vector.shape_cast %368 : vector<1xf32> to vector<1x1x1xf32>
    %370 = vector.extract %369[0, 0, 0] : f32 from vector<1x1x1xf32>
    %371 = vector.broadcast %370 : f32 to vector<1x1xf32>
    %cst_167 = arith.constant 9.765625E-4 : f32
    %372 = vector.broadcast %cst_167 : f32 to vector<1x1xf32>
    %373 = arith.mulf %371, %372 : vector<1x1xf32>
    %374 = arith.mulf %357, %357 : vector<1x1xf32>
    %375 = arith.subf %373, %374 : vector<1x1xf32>
    %cst_168 = arith.constant 0.000000e+00 : f32
    %376 = vector.broadcast %cst_168 : f32 to vector<1x1xf32>
    %377 = arith.maximumf %375, %376 : vector<1x1xf32>
    %378 = arith.mulf %349, %6 : vector<32x1xf32>
    %379 = vector.shape_cast %378 : vector<32x1xf32> to vector<1x32x1xf32>
    %cst_169 = arith.constant dense<0.000000e+00> : vector<1xf32>
    %380 = vector.multi_reduction <add>, %379, %cst_169 [1, 2] : vector<1x32x1xf32> to vector<1xf32>
    %381 = vector.shape_cast %380 : vector<1xf32> to vector<1x1x1xf32>
    %382 = vector.extract %381[0, 0, 0] : f32 from vector<1x1x1xf32>
    %383 = vector.broadcast %382 : f32 to vector<1x1xf32>
    %cst_170 = arith.constant 9.765625E-4 : f32
    %384 = vector.broadcast %cst_170 : f32 to vector<1x1xf32>
    %385 = arith.mulf %383, %384 : vector<1x1xf32>
    %386 = arith.mulf %365, %365 : vector<1x1xf32>
    %387 = arith.subf %385, %386 : vector<1x1xf32>
    %cst_171 = arith.constant 0.000000e+00 : f32
    %388 = vector.broadcast %cst_171 : f32 to vector<1x1xf32>
    %389 = arith.maximumf %387, %388 : vector<1x1xf32>
    %390 = vector.broadcast %357 : vector<1x1xf32> to vector<32x1xf32>
    %391 = arith.mulf %390, %4 : vector<32x1xf32>
    %392 = vector.broadcast %365 : vector<1x1xf32> to vector<32x1xf32>
    %393 = arith.mulf %392, %6 : vector<32x1xf32>
    %394 = arith.addf %391, %393 : vector<32x1xf32>
    %cst_172 = arith.constant 9.99999974E-6 : f32
    %395 = vector.broadcast %cst_172 : f32 to vector<1x1xf32>
    %396 = arith.addf %377, %395 : vector<1x1xf32>
    %397 = math.rsqrt %396 : vector<1x1xf32>
    %398 = vector.broadcast %397 : vector<1x1xf32> to vector<32x1xf32>
    %399 = arith.mulf %398, %4 : vector<32x1xf32>
    %cst_173 = arith.constant 9.99999974E-6 : f32
    %400 = vector.broadcast %cst_173 : f32 to vector<1x1xf32>
    %401 = arith.addf %389, %400 : vector<1x1xf32>
    %402 = math.rsqrt %401 : vector<1x1xf32>
    %403 = vector.broadcast %402 : vector<1x1xf32> to vector<32x1xf32>
    %404 = arith.mulf %403, %6 : vector<32x1xf32>
    %405 = arith.addf %399, %404 : vector<32x1xf32>
    %406 = vector.broadcast %394 : vector<32x1xf32> to vector<32x128xf32>
    %407 = arith.subf %340, %406 : vector<32x128xf32>
    %408 = vector.broadcast %405 : vector<32x1xf32> to vector<32x128xf32>
    %409 = arith.mulf %407, %408 : vector<32x128xf32>
    %410 = vector.broadcast %342 : vector<32x1xf32> to vector<32x128xf32>
    %411 = arith.mulf %409, %410 : vector<32x128xf32>
    %412 = vector.broadcast %344 : vector<32x1xf32> to vector<32x128xf32>
    %413 = arith.addf %411, %412 : vector<32x128xf32>
    %cst_174 = arith.constant 0.000000e+00 : f32
    %414 = vector.broadcast %cst_174 : f32 to vector<32x128xf32>
    %415 = arith.cmpf oge, %413, %414 : vector<32x128xf32>
    %cst_175 = arith.constant 2.000000e-01 : f32
    %416 = vector.broadcast %cst_175 : f32 to vector<32x128xf32>
    %417 = arith.mulf %416, %413 : vector<32x128xf32>
    %418 = arith.select %415, %413, %417 : vector<32x128xi1>, vector<32x128xf32>
    %c9_i32_176 = arith.constant 9 : i32
    %419 = tpu.dynamic_rotate %418 by %c9_i32_176 dim 1 : vector<32x128xf32>, i32 -> vector<32x128xf32>
    %c0_177 = arith.constant 0 : index
    %c0_178 = arith.constant 0 : index
    %c0_179 = arith.constant 0 : index
    %420 = vector.load %arg10[%c0_177, %c0_178, %c0_179] : memref<9x1x128xf32, #tpu.memory_space<vmem>>, vector<1x1x128xf32>
    %421 = vector.shape_cast %420 : vector<1x1x128xf32> to vector<1x128xf32>
    %422 = vector.broadcast %421 : vector<1x128xf32> to vector<32x128xf32>
    %423 = arith.mulf %419, %422 : vector<32x128xf32>
    %c8_i32_180 = arith.constant 8 : i32
    %424 = tpu.dynamic_rotate %418 by %c8_i32_180 dim 1 : vector<32x128xf32>, i32 -> vector<32x128xf32>
    %c1_181 = arith.constant 1 : index
    %c0_182 = arith.constant 0 : index
    %c0_183 = arith.constant 0 : index
    %425 = vector.load %arg10[%c1_181, %c0_182, %c0_183] : memref<9x1x128xf32, #tpu.memory_space<vmem>>, vector<1x1x128xf32>
    %426 = vector.shape_cast %425 : vector<1x1x128xf32> to vector<1x128xf32>
    %427 = vector.broadcast %426 : vector<1x128xf32> to vector<32x128xf32>
    %428 = arith.mulf %424, %427 : vector<32x128xf32>
    %c7_i32_184 = arith.constant 7 : i32
    %429 = tpu.dynamic_rotate %418 by %c7_i32_184 dim 1 : vector<32x128xf32>, i32 -> vector<32x128xf32>
    %c2_185 = arith.constant 2 : index
    %c0_186 = arith.constant 0 : index
    %c0_187 = arith.constant 0 : index
    %430 = vector.load %arg10[%c2_185, %c0_186, %c0_187] : memref<9x1x128xf32, #tpu.memory_space<vmem>>, vector<1x1x128xf32>
    %431 = vector.shape_cast %430 : vector<1x1x128xf32> to vector<1x128xf32>
    %432 = vector.broadcast %431 : vector<1x128xf32> to vector<32x128xf32>
    %433 = arith.mulf %429, %432 : vector<32x128xf32>
    %c1_i32_188 = arith.constant 1 : i32
    %434 = tpu.dynamic_rotate %418 by %c1_i32_188 dim 1 : vector<32x128xf32>, i32 -> vector<32x128xf32>
    %c3_189 = arith.constant 3 : index
    %c0_190 = arith.constant 0 : index
    %c0_191 = arith.constant 0 : index
    %435 = vector.load %arg10[%c3_189, %c0_190, %c0_191] : memref<9x1x128xf32, #tpu.memory_space<vmem>>, vector<1x1x128xf32>
    %436 = vector.shape_cast %435 : vector<1x1x128xf32> to vector<1x128xf32>
    %437 = vector.broadcast %436 : vector<1x128xf32> to vector<32x128xf32>
    %438 = arith.mulf %434, %437 : vector<32x128xf32>
    %c4_192 = arith.constant 4 : index
    %c0_193 = arith.constant 0 : index
    %c0_194 = arith.constant 0 : index
    %439 = vector.load %arg10[%c4_192, %c0_193, %c0_194] : memref<9x1x128xf32, #tpu.memory_space<vmem>>, vector<1x1x128xf32>
    %440 = vector.shape_cast %439 : vector<1x1x128xf32> to vector<1x128xf32>
    %441 = vector.broadcast %440 : vector<1x128xf32> to vector<32x128xf32>
    %442 = arith.mulf %418, %441 : vector<32x128xf32>
    %c127_i32_195 = arith.constant 127 : i32
    %443 = tpu.dynamic_rotate %418 by %c127_i32_195 dim 1 : vector<32x128xf32>, i32 -> vector<32x128xf32>
    %c5_196 = arith.constant 5 : index
    %c0_197 = arith.constant 0 : index
    %c0_198 = arith.constant 0 : index
    %444 = vector.load %arg10[%c5_196, %c0_197, %c0_198] : memref<9x1x128xf32, #tpu.memory_space<vmem>>, vector<1x1x128xf32>
    %445 = vector.shape_cast %444 : vector<1x1x128xf32> to vector<1x128xf32>
    %446 = vector.broadcast %445 : vector<1x128xf32> to vector<32x128xf32>
    %447 = arith.mulf %443, %446 : vector<32x128xf32>
    %c121_i32_199 = arith.constant 121 : i32
    %448 = tpu.dynamic_rotate %418 by %c121_i32_199 dim 1 : vector<32x128xf32>, i32 -> vector<32x128xf32>
    %c6_200 = arith.constant 6 : index
    %c0_201 = arith.constant 0 : index
    %c0_202 = arith.constant 0 : index
    %449 = vector.load %arg10[%c6_200, %c0_201, %c0_202] : memref<9x1x128xf32, #tpu.memory_space<vmem>>, vector<1x1x128xf32>
    %450 = vector.shape_cast %449 : vector<1x1x128xf32> to vector<1x128xf32>
    %451 = vector.broadcast %450 : vector<1x128xf32> to vector<32x128xf32>
    %452 = arith.mulf %448, %451 : vector<32x128xf32>
    %c120_i32_203 = arith.constant 120 : i32
    %453 = tpu.dynamic_rotate %418 by %c120_i32_203 dim 1 : vector<32x128xf32>, i32 -> vector<32x128xf32>
    %c7_204 = arith.constant 7 : index
    %c0_205 = arith.constant 0 : index
    %c0_206 = arith.constant 0 : index
    %454 = vector.load %arg10[%c7_204, %c0_205, %c0_206] : memref<9x1x128xf32, #tpu.memory_space<vmem>>, vector<1x1x128xf32>
    %455 = vector.shape_cast %454 : vector<1x1x128xf32> to vector<1x128xf32>
    %456 = vector.broadcast %455 : vector<1x128xf32> to vector<32x128xf32>
    %457 = arith.mulf %453, %456 : vector<32x128xf32>
    %c119_i32_207 = arith.constant 119 : i32
    %458 = tpu.dynamic_rotate %418 by %c119_i32_207 dim 1 : vector<32x128xf32>, i32 -> vector<32x128xf32>
    %c8_208 = arith.constant 8 : index
    %c0_209 = arith.constant 0 : index
    %c0_210 = arith.constant 0 : index
    %459 = vector.load %arg10[%c8_208, %c0_209, %c0_210] : memref<9x1x128xf32, #tpu.memory_space<vmem>>, vector<1x1x128xf32>
    %460 = vector.shape_cast %459 : vector<1x1x128xf32> to vector<1x128xf32>
    %461 = vector.broadcast %460 : vector<1x128xf32> to vector<32x128xf32>
    %462 = arith.mulf %458, %461 : vector<32x128xf32>
    %463 = tpu.concatenate %423, %428, %433, %438, %442, %447, %452, %457, %462 in 0 : vector<32x128xf32>, vector<32x128xf32>, vector<32x128xf32>, vector<32x128xf32>, vector<32x128xf32>, vector<32x128xf32>, vector<32x128xf32>, vector<32x128xf32>, vector<32x128xf32> -> vector<288x128xf32>
    %464 = arith.truncf %463 : vector<288x128xf32> to vector<288x128xbf16>
    %c0_211 = arith.constant 0 : index
    %c0_212 = arith.constant 0 : index
    %465 = vector.load %arg5[%c0_211, %c0_212] : memref<32x288xbf16, #tpu.memory_space<vmem>>, vector<32x288xbf16>
    %cst_213 = arith.constant dense<0.000000e+00> : vector<32x128xf32>
    %466 = tpu.matmul %465, %464, %cst_213 {dimension_numbers = #tpu.dot_dimension_numbers<[1], [0], [0], [1], [0, 0, 1, 1], [], []>} : vector<32x288xbf16>, vector<288x128xbf16>, vector<32x128xf32> -> vector<32x128xf32>
    %467 = arith.truncf %466 : vector<32x128xf32> to vector<32x128xbf16>
    %c0_214 = arith.constant 0 : index
    %c0_215 = arith.constant 0 : index
    %468 = vector.load %arg12[%c0_214, %c0_215] : memref<128x16xbf16, #tpu.memory_space<vmem>>, vector<128x16xbf16>
    %cst_216 = arith.constant dense<0.000000e+00> : vector<32x16xf32>
    %469 = tpu.matmul %467, %468, %cst_216 {dimension_numbers = #tpu.dot_dimension_numbers<[1], [0], [0], [1], [0, 0, 1, 1], [], []>} : vector<32x128xbf16>, vector<128x16xbf16>, vector<32x16xf32> -> vector<32x16xf32>
    %c3_217 = arith.constant 3 : index
    %c0_218 = arith.constant 0 : index
    %c0_219 = arith.constant 0 : index
    %470 = vector.load %arg6[%c3_217, %c0_218, %c0_219] : memref<4x32x1xf32, #tpu.memory_space<vmem>>, vector<1x32x1xf32>
    %471 = vector.shape_cast %470 : vector<1x32x1xf32> to vector<32x1xf32>
    %472 = vector.broadcast %471 : vector<32x1xf32> to vector<32x16xf32>
    %473 = arith.addf %469, %472 : vector<32x16xf32>
    %c3_220 = arith.constant 3 : index
    %c0_221 = arith.constant 0 : index
    %c0_222 = arith.constant 0 : index
    %474 = vector.load %arg7[%c3_220, %c0_221, %c0_222] : memref<4x32x1xf32, #tpu.memory_space<vmem>>, vector<1x32x1xf32>
    %475 = vector.shape_cast %474 : vector<1x32x1xf32> to vector<32x1xf32>
    %c3_223 = arith.constant 3 : index
    %c0_224 = arith.constant 0 : index
    %c0_225 = arith.constant 0 : index
    %476 = vector.load %arg8[%c3_223, %c0_224, %c0_225] : memref<4x32x1xf32, #tpu.memory_space<vmem>>, vector<1x32x1xf32>
    %477 = vector.shape_cast %476 : vector<1x32x1xf32> to vector<32x1xf32>
    %cst_226 = arith.constant dense<0.000000e+00> : vector<32xf32>
    %478 = vector.multi_reduction <add>, %473, %cst_226 [1] : vector<32x16xf32> to vector<32xf32>
    %479 = vector.shape_cast %478 : vector<32xf32> to vector<32x1xf32>
    %480 = arith.mulf %473, %473 : vector<32x16xf32>
    %cst_227 = arith.constant dense<0.000000e+00> : vector<32xf32>
    %481 = vector.multi_reduction <add>, %480, %cst_227 [1] : vector<32x16xf32> to vector<32xf32>
    %482 = vector.shape_cast %481 : vector<32xf32> to vector<32x1xf32>
    %483 = arith.mulf %479, %4 : vector<32x1xf32>
    %484 = vector.shape_cast %483 : vector<32x1xf32> to vector<1x32x1xf32>
    %cst_228 = arith.constant dense<0.000000e+00> : vector<1xf32>
    %485 = vector.multi_reduction <add>, %484, %cst_228 [1, 2] : vector<1x32x1xf32> to vector<1xf32>
    %486 = vector.shape_cast %485 : vector<1xf32> to vector<1x1x1xf32>
    %487 = vector.extract %486[0, 0, 0] : f32 from vector<1x1x1xf32>
    %488 = vector.broadcast %487 : f32 to vector<1x1xf32>
    %cst_229 = arith.constant 3.906250e-03 : f32
    %489 = vector.broadcast %cst_229 : f32 to vector<1x1xf32>
    %490 = arith.mulf %488, %489 : vector<1x1xf32>
    %491 = arith.mulf %479, %6 : vector<32x1xf32>
    %492 = vector.shape_cast %491 : vector<32x1xf32> to vector<1x32x1xf32>
    %cst_230 = arith.constant dense<0.000000e+00> : vector<1xf32>
    %493 = vector.multi_reduction <add>, %492, %cst_230 [1, 2] : vector<1x32x1xf32> to vector<1xf32>
    %494 = vector.shape_cast %493 : vector<1xf32> to vector<1x1x1xf32>
    %495 = vector.extract %494[0, 0, 0] : f32 from vector<1x1x1xf32>
    %496 = vector.broadcast %495 : f32 to vector<1x1xf32>
    %cst_231 = arith.constant 3.906250e-03 : f32
    %497 = vector.broadcast %cst_231 : f32 to vector<1x1xf32>
    %498 = arith.mulf %496, %497 : vector<1x1xf32>
    %499 = arith.mulf %482, %4 : vector<32x1xf32>
    %500 = vector.shape_cast %499 : vector<32x1xf32> to vector<1x32x1xf32>
    %cst_232 = arith.constant dense<0.000000e+00> : vector<1xf32>
    %501 = vector.multi_reduction <add>, %500, %cst_232 [1, 2] : vector<1x32x1xf32> to vector<1xf32>
    %502 = vector.shape_cast %501 : vector<1xf32> to vector<1x1x1xf32>
    %503 = vector.extract %502[0, 0, 0] : f32 from vector<1x1x1xf32>
    %504 = vector.broadcast %503 : f32 to vector<1x1xf32>
    %cst_233 = arith.constant 3.906250e-03 : f32
    %505 = vector.broadcast %cst_233 : f32 to vector<1x1xf32>
    %506 = arith.mulf %504, %505 : vector<1x1xf32>
    %507 = arith.mulf %490, %490 : vector<1x1xf32>
    %508 = arith.subf %506, %507 : vector<1x1xf32>
    %cst_234 = arith.constant 0.000000e+00 : f32
    %509 = vector.broadcast %cst_234 : f32 to vector<1x1xf32>
    %510 = arith.maximumf %508, %509 : vector<1x1xf32>
    %511 = arith.mulf %482, %6 : vector<32x1xf32>
    %512 = vector.shape_cast %511 : vector<32x1xf32> to vector<1x32x1xf32>
    %cst_235 = arith.constant dense<0.000000e+00> : vector<1xf32>
    %513 = vector.multi_reduction <add>, %512, %cst_235 [1, 2] : vector<1x32x1xf32> to vector<1xf32>
    %514 = vector.shape_cast %513 : vector<1xf32> to vector<1x1x1xf32>
    %515 = vector.extract %514[0, 0, 0] : f32 from vector<1x1x1xf32>
    %516 = vector.broadcast %515 : f32 to vector<1x1xf32>
    %cst_236 = arith.constant 3.906250e-03 : f32
    %517 = vector.broadcast %cst_236 : f32 to vector<1x1xf32>
    %518 = arith.mulf %516, %517 : vector<1x1xf32>
    %519 = arith.mulf %498, %498 : vector<1x1xf32>
    %520 = arith.subf %518, %519 : vector<1x1xf32>
    %cst_237 = arith.constant 0.000000e+00 : f32
    %521 = vector.broadcast %cst_237 : f32 to vector<1x1xf32>
    %522 = arith.maximumf %520, %521 : vector<1x1xf32>
    %523 = vector.broadcast %490 : vector<1x1xf32> to vector<32x1xf32>
    %524 = arith.mulf %523, %4 : vector<32x1xf32>
    %525 = vector.broadcast %498 : vector<1x1xf32> to vector<32x1xf32>
    %526 = arith.mulf %525, %6 : vector<32x1xf32>
    %527 = arith.addf %524, %526 : vector<32x1xf32>
    %cst_238 = arith.constant 9.99999974E-6 : f32
    %528 = vector.broadcast %cst_238 : f32 to vector<1x1xf32>
    %529 = arith.addf %510, %528 : vector<1x1xf32>
    %530 = math.rsqrt %529 : vector<1x1xf32>
    %531 = vector.broadcast %530 : vector<1x1xf32> to vector<32x1xf32>
    %532 = arith.mulf %531, %4 : vector<32x1xf32>
    %cst_239 = arith.constant 9.99999974E-6 : f32
    %533 = vector.broadcast %cst_239 : f32 to vector<1x1xf32>
    %534 = arith.addf %522, %533 : vector<1x1xf32>
    %535 = math.rsqrt %534 : vector<1x1xf32>
    %536 = vector.broadcast %535 : vector<1x1xf32> to vector<32x1xf32>
    %537 = arith.mulf %536, %6 : vector<32x1xf32>
    %538 = arith.addf %532, %537 : vector<32x1xf32>
    %539 = vector.broadcast %527 : vector<32x1xf32> to vector<32x16xf32>
    %540 = arith.subf %473, %539 : vector<32x16xf32>
    %541 = vector.broadcast %538 : vector<32x1xf32> to vector<32x16xf32>
    %542 = arith.mulf %540, %541 : vector<32x16xf32>
    %543 = vector.broadcast %475 : vector<32x1xf32> to vector<32x16xf32>
    %544 = arith.mulf %542, %543 : vector<32x16xf32>
    %545 = vector.broadcast %477 : vector<32x1xf32> to vector<32x16xf32>
    %546 = arith.addf %544, %545 : vector<32x16xf32>
    %cst_240 = arith.constant 0.000000e+00 : f32
    %547 = vector.broadcast %cst_240 : f32 to vector<32x16xf32>
    %548 = arith.cmpf oge, %546, %547 : vector<32x16xf32>
    %cst_241 = arith.constant 2.000000e-01 : f32
    %549 = vector.broadcast %cst_241 : f32 to vector<32x16xf32>
    %550 = arith.mulf %549, %546 : vector<32x16xf32>
    %551 = arith.select %548, %546, %550 : vector<32x16xi1>, vector<32x16xf32>
    %c0_242 = arith.constant 0 : index
    %c0_243 = arith.constant 0 : index
    %c0_244 = arith.constant 0 : index
    %552 = vector.load %arg13[%c0_242, %c0_243, %c0_244] : memref<1x32x16xf32, #tpu.memory_space<vmem>>, vector<1x32x16xf32>
    %553 = vector.shape_cast %552 : vector<1x32x16xf32> to vector<32x16xf32>
    %554 = vector.shape_cast %551 : vector<32x16xf32> to vector<1x32x16xf32>
    tpu.vector_store %arg13[%c0_242, %c0_243, %c0_244], %554 {strides = array<i32>} : memref<1x32x16xf32, #tpu.memory_space<vmem>>, vector<1x32x16xf32>,
    return
  }
  func.func @transform_0(%arg0: i32) -> (i32, i32, i32) {
    %c0_i32 = arith.constant 0 : i32
    %c0_i32_0 = arith.constant 0 : i32
    %c0_i32_1 = arith.constant 0 : i32
    return %arg0, %c0_i32, %c0_i32_0 : i32, i32, i32
  }
  func.func @transform_1(%arg0: i32) -> (i32, i32) {
    %c0_i32 = arith.constant 0 : i32
    %c0_i32_0 = arith.constant 0 : i32
    %c0_i32_1 = arith.constant 0 : i32
    return %c0_i32, %c0_i32_0 : i32, i32
  }
  func.func @transform_2(%arg0: i32) -> (i32, i32) {
    %c0_i32 = arith.constant 0 : i32
    %c0_i32_0 = arith.constant 0 : i32
    %c0_i32_1 = arith.constant 0 : i32
    return %c0_i32, %c0_i32_0 : i32, i32
  }
  func.func @transform_3(%arg0: i32) -> (i32, i32) {
    %c0_i32 = arith.constant 0 : i32
    %c0_i32_0 = arith.constant 0 : i32
    %c0_i32_1 = arith.constant 0 : i32
    return %c0_i32, %c0_i32_0 : i32, i32
  }
  func.func @transform_4(%arg0: i32) -> (i32, i32) {
    %c0_i32 = arith.constant 0 : i32
    %c0_i32_0 = arith.constant 0 : i32
    %c0_i32_1 = arith.constant 0 : i32
    return %c0_i32, %c0_i32_0 : i32, i32
  }
  func.func @transform_5(%arg0: i32) -> (i32, i32, i32) {
    %c0_i32 = arith.constant 0 : i32
    %c0_i32_0 = arith.constant 0 : i32
    %c0_i32_1 = arith.constant 0 : i32
    %c0_i32_2 = arith.constant 0 : i32
    return %c0_i32, %c0_i32_0, %c0_i32_1 : i32, i32, i32
  }
  func.func @transform_6(%arg0: i32) -> (i32, i32, i32) {
    %c0_i32 = arith.constant 0 : i32
    %c0_i32_0 = arith.constant 0 : i32
    %c0_i32_1 = arith.constant 0 : i32
    %c0_i32_2 = arith.constant 0 : i32
    return %c0_i32, %c0_i32_0, %c0_i32_1 : i32, i32, i32
  }
  func.func @transform_7(%arg0: i32) -> (i32, i32, i32) {
    %c0_i32 = arith.constant 0 : i32
    %c0_i32_0 = arith.constant 0 : i32
    %c0_i32_1 = arith.constant 0 : i32
    %c0_i32_2 = arith.constant 0 : i32
    return %c0_i32, %c0_i32_0, %c0_i32_1 : i32, i32, i32
  }
  func.func @transform_8(%arg0: i32) -> (i32, i32, i32) {
    %c0_i32 = arith.constant 0 : i32
    %c0_i32_0 = arith.constant 0 : i32
    %c0_i32_1 = arith.constant 0 : i32
    %c0_i32_2 = arith.constant 0 : i32
    return %c0_i32, %c0_i32_0, %c0_i32_1 : i32, i32, i32
  }
  func.func @transform_9(%arg0: i32) -> (i32, i32, i32) {
    %c0_i32 = arith.constant 0 : i32
    %c0_i32_0 = arith.constant 0 : i32
    %c0_i32_1 = arith.constant 0 : i32
    %c0_i32_2 = arith.constant 0 : i32
    return %c0_i32, %c0_i32_0, %c0_i32_1 : i32, i32, i32
  }
  func.func @transform_10(%arg0: i32) -> (i32, i32) {
    %c0_i32 = arith.constant 0 : i32
    %c0_i32_0 = arith.constant 0 : i32
    %c0_i32_1 = arith.constant 0 : i32
    return %c0_i32, %c0_i32_0 : i32, i32
  }
  func.func @transform_11(%arg0: i32) -> (i32, i32) {
    %c0_i32 = arith.constant 0 : i32
    %c0_i32_0 = arith.constant 0 : i32
    %c0_i32_1 = arith.constant 0 : i32
    return %c0_i32, %c0_i32_0 : i32, i32
  }
  func.func @transform_12(%arg0: i32) -> (i32, i32, i32) {
    %c0_i32 = arith.constant 0 : i32
    %c0_i32_0 = arith.constant 0 : i32
    %c0_i32_1 = arith.constant 0 : i32
    return %arg0, %c0_i32, %c0_i32_0 : i32, i32, i32
  }
  func.func @transform_13(%arg0: i32) -> (i32, i32, i32) {
    %c0_i32 = arith.constant 0 : i32
    %c0_i32_0 = arith.constant 0 : i32
    %c0_i32_1 = arith.constant 0 : i32
    return %arg0, %c0_i32, %c0_i32_0 : i32, i32, i32
  }
}

</mosaic_0001>

<llo_original>
// kernel: cnn_encoder_forward.1
$region0: #{cnn_encoder_forward.1}
  #allocation0 [shape = 'u32[]', space=smem, size = 0x4, offset = 0x4, fixed_abs, tag = 'smem constant byte address 0x4 - core index']
  #allocation1 [shape = 'u32[72,128]{1,0:T(1,128)}', space=vmem, size = 0x9000, scoped, tag = 'internal scratch']
  %s0 = inlined_call_operand.vmem [shape: f32[2,8,256], index: 0, kind: input, shape index: {}]
  %s1 = inlined_call_operand.vmem [shape: bf16[32,72], index: 1, kind: input, shape index: {}]
  %s2 = inlined_call_operand.vmem [shape: bf16[32,288], index: 2, kind: input, shape index: {}]
  %s3 = inlined_call_operand.vmem [shape: bf16[32,288], index: 3, kind: input, shape index: {}]
  %s4 = inlined_call_operand.vmem [shape: bf16[32,288], index: 4, kind: input, shape index: {}]
  %s5 = inlined_call_operand.vmem [shape: f32[4,32,1], index: 5, kind: input, shape index: {}]
  %s6 = inlined_call_operand.vmem [shape: f32[4,32,1], index: 6, kind: input, shape index: {}]
  %s7 = inlined_call_operand.vmem [shape: f32[4,32,1], index: 7, kind: input, shape index: {}]
  %s8 = inlined_call_operand.vmem [shape: f32[9,1,256], index: 8, kind: input, shape index: {}]
  %s9 = inlined_call_operand.vmem [shape: f32[9,1,128], index: 9, kind: input, shape index: {}]
  %s10 = inlined_call_operand.vmem [shape: bf16[256,128], index: 10, kind: input, shape index: {}]
  %s11 = inlined_call_operand.vmem [shape: bf16[128,16], index: 11, kind: input, shape index: {}]
  %s12 = inlined_call_operand.vmem [shape: f32[2,32,16], index: 12, kind: output, shape index: {0}]
  %s13 = inlined_call_operand.vmem [shape: f32[2,32,256], index: 13, kind: output, shape index: {1}]
  %14 = xla_tuple %s12, %s13
  %s15 = sld [smem:[#allocation0]]
  $region89: #{cnn_encoder_forward.1} parent=0
    _
  %s17 = ssub.s32 1, %s15
  %s18 = scalar_select 0, %s17, %s15
  loop: start=0, step=1, limit=4
  $region2: #{cnn_encoder_forward.1} parent=0 // loop_pre_header
    _
  $region3: #{cnn_encoder_forward.1} parent=0 // loop_header
    %s20 = sphi 0, %s24
    %p21 = scmp.ge.s32.totalorder %s20, 4
    %s30 = sphi 0, %s32
    %s33 = sphi 0, %s30
    %s34 = sphi 0, %s33
    %s50 = sphi 0, %s34
    %s54 = sphi 0, %s54
    %s56 = sphi 0, %s54
    %s57 = sphi 0, %s56
    %s71 = sphi 0, %s57
    %s75 = sphi 0, %s75
    %s77 = sphi 0, %s75
    %s78 = sphi 0, %s77
    %s92 = sphi 0, %s78
    %s96 = sphi 0, %s96
    %s98 = sphi 0, %s96
    %s99 = sphi 0, %s98
    %s113 = sphi 0, %s99
    %s117 = sphi 0, %s117
    %s119 = sphi 0, %s117
    %s120 = sphi 0, %s119
    %s134 = sphi 0, %s120
    %s138 = sphi 0, %s138
    %s140 = sphi 0, %s138
    %s141 = sphi 0, %s140
    %s155 = sphi 0, %s141
    %s159 = sphi 0, %s159
    %s161 = sphi 0, %s159
    %s162 = sphi 0, %s161
    %s176 = sphi 0, %s162
    %s180 = sphi 0, %s180
    %s182 = sphi 0, %s180
    %s183 = sphi 0, %s182
    %s197 = sphi 0, %s183
    %s201 = sphi 0, %s201
    %s203 = sphi 0, %s201
    %s204 = sphi 0, %s203
    %s218 = sphi 0, %s204
    %s222 = sphi 0, %s222
    %s224 = sphi 0, %s222
    %s225 = sphi 0, %s224
    %s239 = sphi 0, %s225
    %s243 = sphi 0, %s243
    %s245 = sphi 0, %s243
    %s246 = sphi 0, %s245
    %s260 = sphi 0, %s246
    %s264 = sphi 0, %s264
    %s266 = sphi 0, %s264
    %s267 = sphi 0, %s266
    %s281 = sphi 0, %s267
    %s287 = sphi 0, %s289
    %s290 = sphi 0, %s287
    %s291 = sphi 0, %s290
    %s307 = sphi 0, %s291
    %s313 = sphi 0, %s315
    %s316 = sphi 0, %s313
    %s317 = sphi 0, %s316
    %s333 = sphi 0, %s317
  $region4: #{cnn_encoder_forward.1} parent=0 // loop_header_branch
    %23 = sbr.rel (%p21) target = $region8
  $region5: #{cnn_encoder_forward.1} parent=0 // loop_body
    %s25 = ssub.s32 %s20, 1
    %s26 = ssub.s32 %s20, 2
    %s27 = sadd.s32 %s20, 1
    %s28 = ssub.s32 %s20, %s27
    %p29 = scmp.eq.s32.totalorder %s28, 0
    %s31 = sadd.s32 %s30, 1
    %s32 = scalar_select %p29, %s30, %s31
    %p35 = pneg %p29
    %p36 = scmp.eq.s32.totalorder %s20, 1
    %p37 = por %p35, %p36
    %p38 = scmp.ne.s32.totalorder %s30, %s33
    %p39 = scmp.eq.s32.totalorder %s20, 0
    %p40 = por %p38, %p39
    %p41 = scmp.ne.s32.totalorder %s30, %s33
    %p42 = scmp.eq.s32.totalorder %s25, 1
    %p43 = por %p41, %p42
    %p44 = scmp.ne.s32.totalorder %s33, %s34
    %p45 = scmp.eq.s32.totalorder %s25, 0
    %p46 = por %p44, %p45
    %p47 = scmp.ne.s32.totalorder %s33, %s34
    %p48 = scmp.eq.s32.totalorder %s26, 1
    %p49 = por %p47, %p48
    %p51 = scmp.ne.s32.totalorder %s34, %s50
    %p52 = scmp.eq.s32.totalorder %s26, 0
    %p53 = por %p51, %p52
    %s55 = sadd.s32 %s54, 1
    %p58 = scmp.eq.s32.totalorder %s20, 1
    %p59 = scmp.ne.s32.totalorder %s54, %s56
    %p60 = scmp.eq.s32.totalorder %s20, 0
    %p61 = por %p59, %p60
    %p62 = scmp.ne.s32.totalorder %s54, %s56
    %p63 = scmp.eq.s32.totalorder %s25, 1
    %p64 = por %p62, %p63
    %p65 = scmp.ne.s32.totalorder %s56, %s57
    %p66 = scmp.eq.s32.totalorder %s25, 0
    %p67 = por %p65, %p66
    %p68 = scmp.ne.s32.totalorder %s56, %s57
    %p69 = scmp.eq.s32.totalorder %s26, 1
    %p70 = por %p68, %p69
    %p72 = scmp.ne.s32.totalorder %s57, %s71
    %p73 = scmp.eq.s32.totalorder %s26, 0
    %p74 = por %p72, %p73
    %s76 = sadd.s32 %s75, 1
    %p79 = scmp.eq.s32.totalorder %s20, 1
    %p80 = scmp.ne.s32.totalorder %s75, %s77
    %p81 = scmp.eq.s32.totalorder %s20, 0
    %p82 = por %p80, %p81
    %p83 = scmp.ne.s32.totalorder %s75, %s77
    %p84 = scmp.eq.s32.totalorder %s25, 1
    %p85 = por %p83, %p84
    %p86 = scmp.ne.s32.totalorder %s77, %s78
    %p87 = scmp.eq.s32.totalorder %s25, 0
    %p88 = por %p86, %p87
    %p89 = scmp.ne.s32.totalorder %s77, %s78
    %p90 = scmp.eq.s32.totalorder %s26, 1
    %p91 = por %p89, %p90
    %p93 = scmp.ne.s32.totalorder %s78, %s92
    %p94 = scmp.eq.s32.totalorder %s26, 0
    %p95 = por %p93, %p94
    %s97 = sadd.s32 %s96, 1
    %p100 = scmp.eq.s32.totalorder %s20, 1
    %p101 = scmp.ne.s32.totalorder %s96, %s98
    %p102 = scmp.eq.s32.totalorder %s20, 0
    %p103 = por %p101, %p102
    %p104 = scmp.ne.s32.totalorder %s96, %s98
    %p105 = scmp.eq.s32.totalorder %s25, 1
    %p106 = por %p104, %p105
    %p107 = scmp.ne.s32.totalorder %s98, %s99
    %p108 = scmp.eq.s32.totalorder %s25, 0
    %p109 = por %p107, %p108
    %p110 = scmp.ne.s32.totalorder %s98, %s99
    %p111 = scmp.eq.s32.totalorder %s26, 1
    %p112 = por %p110, %p111
    %p114 = scmp.ne.s32.totalorder %s99, %s113
    %p115 = scmp.eq.s32.totalorder %s26, 0
    %p116 = por %p114, %p115
    %s118 = sadd.s32 %s117, 1
    %p121 = scmp.eq.s32.totalorder %s20, 1
    %p122 = scmp.ne.s32.totalorder %s117, %s119
    %p123 = scmp.eq.s32.totalorder %s20, 0
    %p124 = por %p122, %p123
    %p125 = scmp.ne.s32.totalorder %s117, %s119
    %p126 = scmp.eq.s32.totalorder %s25, 1
    %p127 = por %p125, %p126
    %p128 = scmp.ne.s32.totalorder %s119, %s120
    %p129 = scmp.eq.s32.totalorder %s25, 0
    %p130 = por %p128, %p129
    %p131 = scmp.ne.s32.totalorder %s119, %s120
    %p132 = scmp.eq.s32.totalorder %s26, 1
    %p133 = por %p131, %p132
    %p135 = scmp.ne.s32.totalorder %s120, %s134
    %p136 = scmp.eq.s32.totalorder %s26, 0
    %p137 = por %p135, %p136
    %s139 = sadd.s32 %s138, 1
    %p142 = scmp.eq.s32.totalorder %s20, 1
    %p143 = scmp.ne.s32.totalorder %s138, %s140
    %p144 = scmp.eq.s32.totalorder %s20, 0
    %p145 = por %p143, %p144
    %p146 = scmp.ne.s32.totalorder %s138, %s140
    %p147 = scmp.eq.s32.totalorder %s25, 1
    %p148 = por %p146, %p147
    %p149 = scmp.ne.s32.totalorder %s140, %s141
    %p150 = scmp.eq.s32.totalorder %s25, 0
    %p151 = por %p149, %p150
    %p152 = scmp.ne.s32.totalorder %s140, %s141
    %p153 = scmp.eq.s32.totalorder %s26, 1
    %p154 = por %p152, %p153
    %p156 = scmp.ne.s32.totalorder %s141, %s155
    %p157 = scmp.eq.s32.totalorder %s26, 0
    %p158 = por %p156, %p157
    %s160 = sadd.s32 %s159, 1
    %p163 = scmp.eq.s32.totalorder %s20, 1
    %p164 = scmp.ne.s32.totalorder %s159, %s161
    %p165 = scmp.eq.s32.totalorder %s20, 0
    %p166 = por %p164, %p165
    %p167 = scmp.ne.s32.totalorder %s159, %s161
    %p168 = scmp.eq.s32.totalorder %s25, 1
    %p169 = por %p167, %p168
    %p170 = scmp.ne.s32.totalorder %s161, %s162
    %p171 = scmp.eq.s32.totalorder %s25, 0
    %p172 = por %p170, %p171
    %p173 = scmp.ne.s32.totalorder %s161, %s162
    %p174 = scmp.eq.s32.totalorder %s26, 1
    %p175 = por %p173, %p174
    %p177 = scmp.ne.s32.totalorder %s162, %s176
    %p178 = scmp.eq.s32.totalorder %s26, 0
    %p179 = por %p177, %p178
    %s181 = sadd.s32 %s180, 1
    %p184 = scmp.eq.s32.totalorder %s20, 1
    %p185 = scmp.ne.s32.totalorder %s180, %s182
    %p186 = scmp.eq.s32.totalorder %s20, 0
    %p187 = por %p185, %p186
    %p188 = scmp.ne.s32.totalorder %s180, %s182
    %p189 = scmp.eq.s32.totalorder %s25, 1
    %p190 = por %p188, %p189
    %p191 = scmp.ne.s32.totalorder %s182, %s183
    %p192 = scmp.eq.s32.totalorder %s25, 0
    %p193 = por %p191, %p192
    %p194 = scmp.ne.s32.totalorder %s182, %s183
    %p195 = scmp.eq.s32.totalorder %s26, 1
    %p196 = por %p194, %p195
    %p198 = scmp.ne.s32.totalorder %s183, %s197
    %p199 = scmp.eq.s32.totalorder %s26, 0
    %p200 = por %p198, %p199
    %s202 = sadd.s32 %s201, 1
    %p205 = scmp.eq.s32.totalorder %s20, 1
    %p206 = scmp.ne.s32.totalorder %s201, %s203
    %p207 = scmp.eq.s32.totalorder %s20, 0
    %p208 = por %p206, %p207
    %p209 = scmp.ne.s32.totalorder %s201, %s203
    %p210 = scmp.eq.s32.totalorder %s25, 1
    %p211 = por %p209, %p210
    %p212 = scmp.ne.s32.totalorder %s203, %s204
    %p213 = scmp.eq.s32.totalorder %s25, 0
    %p214 = por %p212, %p213
    %p215 = scmp.ne.s32.totalorder %s203, %s204
    %p216 = scmp.eq.s32.totalorder %s26, 1
    %p217 = por %p215, %p216
    %p219 = scmp.ne.s32.totalorder %s204, %s218
    %p220 = scmp.eq.s32.totalorder %s26, 0
    %p221 = por %p219, %p220
    %s223 = sadd.s32 %s222, 1
    %p226 = scmp.eq.s32.totalorder %s20, 1
    %p227 = scmp.ne.s32.totalorder %s222, %s224
    %p228 = scmp.eq.s32.totalorder %s20, 0
    %p229 = por %p227, %p228
    %p230 = scmp.ne.s32.totalorder %s222, %s224
    %p231 = scmp.eq.s32.totalorder %s25, 1
    %p232 = por %p230, %p231
    %p233 = scmp.ne.s32.totalorder %s224, %s225
    %p234 = scmp.eq.s32.totalorder %s25, 0
    %p235 = por %p233, %p234
    %p236 = scmp.ne.s32.totalorder %s224, %s225
    %p237 = scmp.eq.s32.totalorder %s26, 1
    %p238 = por %p236, %p237
    %p240 = scmp.ne.s32.totalorder %s225, %s239
    %p241 = scmp.eq.s32.totalorder %s26, 0
    %p242 = por %p240, %p241
    %s244 = sadd.s32 %s243, 1
    %p247 = scmp.eq.s32.totalorder %s20, 1
    %p248 = scmp.ne.s32.totalorder %s243, %s245
    %p249 = scmp.eq.s32.totalorder %s20, 0
    %p250 = por %p248, %p249
    %p251 = scmp.ne.s32.totalorder %s243, %s245
    %p252 = scmp.eq.s32.totalorder %s25, 1
    %p253 = por %p251, %p252
    %p254 = scmp.ne.s32.totalorder %s245, %s246
    %p255 = scmp.eq.s32.totalorder %s25, 0
    %p256 = por %p254, %p255
    %p257 = scmp.ne.s32.totalorder %s245, %s246
    %p258 = scmp.eq.s32.totalorder %s26, 1
    %p259 = por %p257, %p258
    %p261 = scmp.ne.s32.totalorder %s246, %s260
    %p262 = scmp.eq.s32.totalorder %s26, 0
    %p263 = por %p261, %p262
    %s265 = sadd.s32 %s264, 1
    %p268 = scmp.eq.s32.totalorder %s20, 1
    %p269 = scmp.ne.s32.totalorder %s264, %s266
    %p270 = scmp.eq.s32.totalorder %s20, 0
    %p271 = por %p269, %p270
    %p272 = scmp.ne.s32.totalorder %s264, %s266
    %p273 = scmp.eq.s32.totalorder %s25, 1
    %p274 = por %p272, %p273
    %p275 = scmp.ne.s32.totalorder %s266, %s267
    %p276 = scmp.eq.s32.totalorder %s25, 0
    %p277 = por %p275, %p276
    %p278 = scmp.ne.s32.totalorder %s266, %s267
    %p279 = scmp.eq.s32.totalorder %s26, 1
    %p280 = por %p278, %p279
    %p282 = scmp.ne.s32.totalorder %s267, %s281
    %p283 = scmp.eq.s32.totalorder %s26, 0
    %p284 = por %p282, %p283
    %s285 = ssub.s32 %s20, %s27
    %p286 = scmp.eq.s32.totalorder %s285, 0
    %s288 = sadd.s32 %s287, 1
    %s289 = scalar_select %p286, %s287, %s288
    %p292 = pneg %p286
    %p293 = scmp.eq.s32.totalorder %s20, 1
    %p294 = por %p292, %p293
    %p295 = scmp.ne.s32.totalorder %s287, %s290
    %p296 = scmp.eq.s32.totalorder %s20, 0
    %p297 = por %p295, %p296
    %p298 = scmp.ne.s32.totalorder %s287, %s290
    %p299 = scmp.eq.s32.totalorder %s25, 1
    %p300 = por %p298, %p299
    %p301 = scmp.ne.s32.totalorder %s290, %s291
    %p302 = scmp.eq.s32.totalorder %s25, 0
    %p303 = por %p301, %p302
    %p304 = scmp.ne.s32.totalorder %s290, %s291
    %p305 = scmp.eq.s32.totalorder %s26, 1
    %p306 = por %p304, %p305
    %p308 = scmp.ne.s32.totalorder %s291, %s307
    %p309 = scmp.eq.s32.totalorder %s26, 0
    %p310 = por %p308, %p309
    %s311 = ssub.s32 %s20, %s27
    %p312 = scmp.eq.s32.totalorder %s311, 0
    %s314 = sadd.s32 %s313, 1
    %s315 = scalar_select %p312, %s313, %s314
    %p318 = pneg %p312
    %p319 = scmp.eq.s32.totalorder %s20, 1
    %p320 = por %p318, %p319
    %p321 = scmp.ne.s32.totalorder %s313, %s316
    %p322 = scmp.eq.s32.totalorder %s20, 0
    %p323 = por %p321, %p322
    %p324 = scmp.ne.s32.totalorder %s313, %s316
    %p325 = scmp.eq.s32.totalorder %s25, 1
    %p326 = por %p324, %p325
    %p327 = scmp.ne.s32.totalorder %s316, %s317
    %p328 = scmp.eq.s32.totalorder %s25, 0
    %p329 = por %p327, %p328
    %p330 = scmp.ne.s32.totalorder %s316, %s317
    %p331 = scmp.eq.s32.totalorder %s26, 1
    %p332 = por %p330, %p331
    %p334 = scmp.ne.s32.totalorder %s317, %s333
    %p335 = scmp.eq.s32.totalorder %s26, 0
    %p336 = por %p334, %p335
    %p337 = scmp.le.s32.totalorder 1, %s20
    %p338 = scmp.lt.s32.totalorder %s20, 3
    %p339 = pnand %p337, %p338
    %p340 = pneg %p339
    // Predicated region
    $region9: #{cnn_encoder_forward.1} parent=5 // pred_check
      _
    $region10: #{cnn_encoder_forward.1} parent=5 // pred_check_branch
      %342 = sbr.rel (%p339) target = $region12
    $region11: #{cnn_encoder_forward.1} parent=5 // pred_region
      %s343 = ssub.s32 %s20, 1
      // Predicated region
      $region13: #{cnn_encoder_forward.1} parent=11 // pred_check
        %p344 = pneg %p67
      $region14: #{cnn_encoder_forward.1} parent=11 // pred_check_branch
        %346 = sbr.rel (%p344) target = $region16
      $region15: #{cnn_encoder_forward.1} parent=11 // pred_region
        _
      $region16: #{cnn_encoder_forward.1} parent=11 // pred_fallthru
        _
      // Predicated region
      $region17: #{cnn_encoder_forward.1} parent=11 // pred_check
        %p347 = pneg %p88
      $region18: #{cnn_encoder_forward.1} parent=11 // pred_check_branch
        %349 = sbr.rel (%p347) target = $region20
      $region19: #{cnn_encoder_forward.1} parent=11 // pred_region
        _
      $region20: #{cnn_encoder_forward.1} parent=11 // pred_fallthru
        _
      // Predicated region
      $region21: #{cnn_encoder_forward.1} parent=11 // pred_check
        %p350 = pneg %p109
      $region22: #{cnn_encoder_forward.1} parent=11 // pred_check_branch
        %352 = sbr.rel (%p350) target = $region24
      $region23: #{cnn_encoder_forward.1} parent=11 // pred_region
        _
      $region24: #{cnn_encoder_forward.1} parent=11 // pred_fallthru
        _
      // Predicated region
      $region25: #{cnn_encoder_forward.1} parent=11 // pred_check
        %p353 = pneg %p130
      $region26: #{cnn_encoder_forward.1} parent=11 // pred_check_branch
        %355 = sbr.rel (%p353) target = $region28
      $region27: #{cnn_encoder_forward.1} parent=11 // pred_region
        _
      $region28: #{cnn_encoder_forward.1} parent=11 // pred_fallthru
        _
      // Predicated region
      $region29: #{cnn_encoder_forward.1} parent=11 // pred_check
        %p356 = pneg %p151
      $region30: #{cnn_encoder_forward.1} parent=11 // pred_check_branch
        %358 = sbr.rel (%p356) target = $region32
      $region31: #{cnn_encoder_forward.1} parent=11 // pred_region
        _
      $region32: #{cnn_encoder_forward.1} parent=11 // pred_fallthru
        _
      // Predicated region
      $region33: #{cnn_encoder_forward.1} parent=11 // pred_check
        %p359 = pneg %p172
      $region34: #{cnn_encoder_forward.1} parent=11 // pred_check_branch
        %361 = sbr.rel (%p359) target = $region36
      $region35: #{cnn_encoder_forward.1} parent=11 // pred_region
        _
      $region36: #{cnn_encoder_forward.1} parent=11 // pred_fallthru
        _
      // Predicated region
      $region37: #{cnn_encoder_forward.1} parent=11 // pred_check
        %p362 = pneg %p193
      $region38: #{cnn_encoder_forward.1} parent=11 // pred_check_branch
        %364 = sbr.rel (%p362) target = $region40
      $region39: #{cnn_encoder_forward.1} parent=11 // pred_region
        _
      $region40: #{cnn_encoder_forward.1} parent=11 // pred_fallthru
        _
      // Predicated region
      $region41: #{cnn_encoder_forward.1} parent=11 // pred_check
        %p365 = pneg %p214
      $region42: #{cnn_encoder_forward.1} parent=11 // pred_check_branch
        %367 = sbr.rel (%p365) target = $region44
      $region43: #{cnn_encoder_forward.1} parent=11 // pred_region
        _
      $region44: #{cnn_encoder_forward.1} parent=11 // pred_fallthru
        _
      // Predicated region
      $region45: #{cnn_encoder_forward.1} parent=11 // pred_check
        %p368 = pneg %p235
      $region46: #{cnn_encoder_forward.1} parent=11 // pred_check_branch
        %370 = sbr.rel (%p368) target = $region48
      $region47: #{cnn_encoder_forward.1} parent=11 // pred_region
        _
      $region48: #{cnn_encoder_forward.1} parent=11 // pred_fallthru
        _
      // Predicated region
      $region49: #{cnn_encoder_forward.1} parent=11 // pred_check
        %p371 = pneg %p256
      $region50: #{cnn_encoder_forward.1} parent=11 // pred_check_branch
        %373 = sbr.rel (%p371) target = $region52
      $region51: #{cnn_encoder_forward.1} parent=11 // pred_region
        _
      $region52: #{cnn_encoder_forward.1} parent=11 // pred_fallthru
        _
      // Predicated region
      $region53: #{cnn_encoder_forward.1} parent=11 // pred_check
        %p374 = pneg %p277
      $region54: #{cnn_encoder_forward.1} parent=11 // pred_check_branch
        %376 = sbr.rel (%p374) target = $region56
      $region55: #{cnn_encoder_forward.1} parent=11 // pred_region
        _
      $region56: #{cnn_encoder_forward.1} parent=11 // pred_fallthru
        _
    $region12: #{cnn_encoder_forward.1} parent=5 // pred_fallthru
      _
    %p377 = scmp.lt.s32.totalorder %s20, 2
    // Predicated region
    $region57: #{cnn_encoder_forward.1} parent=5 // pred_check
      %p378 = pneg %p377
    $region58: #{cnn_encoder_forward.1} parent=5 // pred_check_branch
      %380 = sbr.rel (%p378) target = $region60
    $region59: #{cnn_encoder_forward.1} parent=5 // pred_region
      // Predicated region
      $region61: #{cnn_encoder_forward.1} parent=59 // pred_check
        %p381 = pneg %p40
      $region62: #{cnn_encoder_forward.1} parent=59 // pred_check_branch
        %383 = sbr.rel (%p381) target = $region64
      $region63: #{cnn_encoder_forward.1} parent=59 // pred_region
        %p384 = scmp.lt.s32.totalorder %s20, 1
        %s385 = scalar_select %p384, %s20, 1
        %s386 = smul.addr %s385, 2
        %s387 = smul.addr %s386, 8
        %s388 = scalar_lea.vmem %s0, %s387
      $region64: #{cnn_encoder_forward.1} parent=59 // pred_fallthru
        _
    $region60: #{cnn_encoder_forward.1} parent=5 // pred_fallthru
      _
    %p389 = scmp.le.s32.totalorder 1, %s20
    %p390 = scmp.lt.s32.totalorder %s20, 3
    %p391 = pnand %p389, %p390
    %p392 = pneg %p391
    // Predicated region
    $region65: #{cnn_encoder_forward.1} parent=5 // pred_check
      _
    $region66: #{cnn_encoder_forward.1} parent=5 // pred_check_branch
      %394 = sbr.rel (%p391) target = $region68
    $region67: #{cnn_encoder_forward.1} parent=5 // pred_region
      %s395 = ssub.s32 %s20, 1
      %p396 = scmp.lt.s32.totalorder %s25, 1
      %s397 = scalar_select %p396, %s25, 1
      %s398 = smul.addr %s397, 2
      %s399 = smul.addr %s398, 8
      %s400 = scalar_lea.vmem %s0, %s399
      %p401 = pneg %p46
      %p402 = pneg %p43
      %p403 = pneg %p67
      %p404 = pneg %p64
      %p405 = pneg %p88
      %p406 = pneg %p85
      %p407 = pneg %p109
      %p408 = pneg %p106
      %p409 = pneg %p130
      %p410 = pneg %p127
      %p411 = pneg %p151
      %p412 = pneg %p148
      %p413 = pneg %p172
      %p414 = pneg %p169
      %p415 = pneg %p193
      %p416 = pneg %p190
      %p417 = pneg %p214
      %p418 = pneg %p211
      %p419 = pneg %p235
      %p420 = pneg %p232
      %p421 = pneg %p256
      %p422 = pneg %p253
      %p423 = pneg %p277
      %p424 = pneg %p274
      %p425 = pneg %p303
      %p426 = pneg %p300
      %p427 = scmp.lt.s32.totalorder %s25, 1
      %s428 = scalar_select %p427, %s25, 1
      %s429 = smul.addr %s428, 4
      %s430 = smul.addr %s429, 8
      %s431 = scalar_lea.vmem %s12, %s430
      %p432 = pneg %p329
      %p433 = pneg %p326
      %p434 = scmp.lt.s32.totalorder %s25, 1
      %s435 = scalar_select %p434, %s25, 1
      %s436 = smul.addr %s435, 8
      %s437 = smul.addr %s436, 8
      %s438 = scalar_lea.vmem %s13, %s437
      %p439 = scmp.lt.s32.totalorder %s25, 1
      %s440 = scalar_select %p439, %s25, 1
      %s441 = smul.addr %s440, 2
      %s442 = smul.addr %s441, 8
      %s443 = scalar_lea.vmem %s0, %s442
      %p444 = scmp.lt.s32.totalorder %s25, 1
      %s445 = scalar_select %p444, %s25, 1
      %s446 = smul.addr %s445, 4
      %s447 = smul.addr %s446, 8
      %s448 = scalar_lea.vmem %s12, %s447
      %p449 = scmp.lt.s32.totalorder %s25, 1
      %s450 = scalar_select %p449, %s25, 1
      %s451 = smul.addr %s450, 8
      %s452 = smul.addr %s451, 8
      %s453 = scalar_lea.vmem %s13, %s452
      %v455 = vlaneseq
      %v456 = vshrl.u32 %v455, 7
      %v457 = vadd.s32 %v456, 8
      %v458 = vadd.s32 %v456, 16
      %v459 = vadd.s32 %v456, 24
      %vm460 = vcmp.lt.s32.totalorder %v456, 16
      %vm461 = vcmp.lt.s32.totalorder %v457, 16
      %vm462 = vcmp.lt.s32.totalorder %v458, 16
      %vm463 = vcmp.lt.s32.totalorder %v459, 16
      %v464 = vsel %vm460, 1, 0
      %v465 = vsel %vm461, 1, 0
      %v466 = vsel %vm462, 1, 0
      %v467 = vsel %vm463, 1, 0
      %v468 = vcvt.s32.f32 %v464
      %v469 = vcvt.s32.f32 %v465
      %v470 = vcvt.s32.f32 %v466
      %v471 = vcvt.s32.f32 %v467
      %v472 = vsub.f32 1.0, %v468
      %v473 = vsub.f32 1.0, %v469
      %v474 = vsub.f32 1.0, %v470
      %v475 = vsub.f32 1.0, %v471
      %v476 = vld [vmem:[%s443] sm:$0xff]
      %v477 = vld [vmem:[%s443 + $0x8] sm:$0xff]
      %478 = vrot.lane.b32.xlu0 %v476, 17
      %v479 = vpop.permute.xlu0 %478
      %480 = vrot.lane.b32.xlu0 %v477, 17
      %v481 = vpop.permute.xlu0 %480
      %v482 = vlaneseq
      %v483 = vand.u32 %v482, 127
      %vm484 = vcmp.lt.s32.totalorder %v483, 17
      %v485 = vsel %vm484, %v479, %v481
      %v486 = vsel %vm484, %v481, %v479
      %v487 = vld [vmem:[%s8] sm:$0x3]
      %v489 = vperm.slane %v487, 0
      %v490 = vperm.slane %v487, 1
      %v493 = vmul.f32 %v486, %v489
      %v494 = vmul.f32 %v485, %v490
      %495 = vrot.lane.b32.xlu0 %v476, 16
      %v496 = vpop.permute.xlu0 %495
      %497 = vrot.lane.b32.xlu0 %v477, 16
      %v498 = vpop.permute.xlu0 %497
      %vm499 = vcmp.lt.s32.totalorder %v483, 16
      %v500 = vsel %vm499, %v496, %v498
      %v501 = vsel %vm499, %v498, %v496
      %s502 = scalar_lea.vmem %s8, 2
      %v503 = vld [vmem:[%s502] sm:$0x3]
      %v505 = vperm.slane %v503, 0
      %v506 = vperm.slane %v503, 1
      %v509 = vmul.f32 %v501, %v505
      %v510 = vmul.f32 %v500, %v506
      %511 = vrot.lane.b32.xlu0 %v476, 15
      %v512 = vpop.permute.xlu0 %511
      %513 = vrot.lane.b32.xlu0 %v477, 15
      %v514 = vpop.permute.xlu0 %513
      %vm515 = vcmp.lt.s32.totalorder %v483, 15
      %v516 = vsel %vm515, %v512, %v514
      %v517 = vsel %vm515, %v514, %v512
      %s518 = scalar_lea.vmem %s8, 4
      %v519 = vld [vmem:[%s518] sm:$0x3]
      %v521 = vperm.slane %v519, 0
      %v522 = vperm.slane %v519, 1
      %v525 = vmul.f32 %v517, %v521
      %v526 = vmul.f32 %v516, %v522
      %527 = vrot.lane.b32.xlu0 %v476, 1
      %v528 = vpop.permute.xlu0 %527
      %529 = vrot.lane.b32.xlu0 %v477, 1
      %v530 = vpop.permute.xlu0 %529
      %vm531 = vcmp.lt.s32.totalorder %v483, 1
      %v532 = vsel %vm531, %v528, %v530
      %v533 = vsel %vm531, %v530, %v528
      %s534 = scalar_lea.vmem %s8, 6
      %v535 = vld [vmem:[%s534] sm:$0x3]
      %v537 = vperm.slane %v535, 0
      %v538 = vperm.slane %v535, 1
      %v541 = vmul.f32 %v533, %v537
      %v542 = vmul.f32 %v532, %v538
      %s543 = scalar_lea.vmem %s8, 8
      %v544 = vld [vmem:[%s543] sm:$0x3]
      %v546 = vperm.slane %v544, 0
      %v547 = vperm.slane %v544, 1
      %v550 = vmul.f32 %v476, %v546
      %v551 = vmul.f32 %v477, %v547
      %552 = vrot.lane.b32.xlu0 %v476, 127
      %v553 = vpop.permute.xlu0 %552
      %554 = vrot.lane.b32.xlu0 %v477, 127
      %v555 = vpop.permute.xlu0 %554
      %vm556 = vcmp.lt.s32.totalorder %v483, 127
      %v557 = vsel %vm556, %v553, %v555
      %v558 = vsel %vm556, %v555, %v553
      %s559 = scalar_lea.vmem %s8, 10
      %v560 = vld [vmem:[%s559] sm:$0x3]
      %v562 = vperm.slane %v560, 0
      %v563 = vperm.slane %v560, 1
      %v566 = vmul.f32 %v557, %v562
      %v567 = vmul.f32 %v558, %v563
      %568 = vrot.lane.b32.xlu0 %v476, 113
      %v569 = vpop.permute.xlu0 %568
      %570 = vrot.lane.b32.xlu0 %v477, 113
      %v571 = vpop.permute.xlu0 %570
      %vm572 = vcmp.lt.s32.totalorder %v483, 113
      %v573 = vsel %vm572, %v569, %v571
      %v574 = vsel %vm572, %v571, %v569
      %s575 = scalar_lea.vmem %s8, 12
      %v576 = vld [vmem:[%s575] sm:$0x3]
      %v578 = vperm.slane %v576, 0
      %v579 = vperm.slane %v576, 1
      %v582 = vmul.f32 %v573, %v578
      %v583 = vmul.f32 %v574, %v579
      %584 = vrot.lane.b32.xlu0 %v476, 112
      %v585 = vpop.permute.xlu0 %584
      %586 = vrot.lane.b32.xlu0 %v477, 112
      %v587 = vpop.permute.xlu0 %586
      %vm588 = vcmp.lt.s32.totalorder %v483, 112
      %v589 = vsel %vm588, %v585, %v587
      %v590 = vsel %vm588, %v587, %v585
      %s591 = scalar_lea.vmem %s8, 14
      %v592 = vld [vmem:[%s591] sm:$0x3]
      %v594 = vperm.slane %v592, 0
      %v595 = vperm.slane %v592, 1
      %v598 = vmul.f32 %v589, %v594
      %v599 = vmul.f32 %v590, %v595
      %600 = vrot.lane.b32.xlu0 %v476, 111
      %v601 = vpop.permute.xlu0 %600
      %602 = vrot.lane.b32.xlu0 %v477, 111
      %v603 = vpop.permute.xlu0 %602
      %vm604 = vcmp.lt.s32.totalorder %v483, 111
      %v605 = vsel %vm604, %v601, %v603
      %v606 = vsel %vm604, %v603, %v601
      %s607 = scalar_lea.vmem %s8, 16
      %v608 = vld [vmem:[%s607] sm:$0x3]
      %v610 = vperm.slane %v608, 0
      %v611 = vperm.slane %v608, 1
      %v614 = vmul.f32 %v605, %v610
      %v615 = vmul.f32 %v606, %v611
      %v616 = vpack.c.bf16 %v509, %v493
      %v617 = vpack.c.bf16 %v510, %v494
      %v618 = vpack.c.bf16 %v541, %v525
      %v619 = vpack.c.bf16 %v542, %v526
      %v620 = vpack.c.bf16 %v566, %v550
      %v621 = vpack.c.bf16 %v567, %v551
      %v622 = vpack.c.bf16 %v598, %v582
      %v623 = vpack.c.bf16 %v599, %v583
      %v624 = vpack.c.bf16 %v614, %v614
      %v625 = vpack.c.bf16 %v615, %v615
      %v626 = vld [vmem:[%s1] sm:$0xf]
      %v627 = vld [vmem:[%s1 + $0x4] sm:$0xf]
      %v628 = vld [vmem:[%s1 + $0x8] sm:$0xf]
      %v629 = vld [vmem:[%s1 + $0xc] sm:$0xf]
      %v630 = vld [vmem:[%s5] sm:$0xff]
      %v631 = vld [vmem:[%s5 + $0x8] sm:$0xff]
      %v632 = vld [vmem:[%s5 + $0x10] sm:$0xff]
      %v633 = vld [vmem:[%s5 + $0x18] sm:$0xff]
      %635 = vset.pattern.permute.xlu0 0
      %636 = vperm.xlu0 %635, %v630
      %v637 = vpop.permute.xlu0 %636
      %640 = vset.pattern.permute.xlu0 0
      %641 = vperm.xlu0 %640, %v631
      %v642 = vpop.permute.xlu0 %641
      %645 = vset.pattern.permute.xlu0 0
      %646 = vperm.xlu0 %645, %v632
      %v647 = vpop.permute.xlu0 %646
      %650 = vset.pattern.permute.xlu0 0
      %651 = vperm.xlu0 %650, %v633
      %v652 = vpop.permute.xlu0 %651
      %v658 = vunpack.c.l.b16 %v626
      %v659 = vunpack.c.l.b16 %v627
      %v660 = vunpack.c.l.b16 %v628
      %v661 = vunpack.c.l.b16 %v629
      %v662 = vpack.c.b16 %v659, %v658
      %v663 = vpack.c.b16 %v661, %v660
      %vm664 = vcmask 588800
      %v666 = vsel %vm664, %v662, 0
      %v669 = vsel %vm664, %v663, 0
      %vm671 = vcmask 1043456
      %v673 = vsel %vm671, %v624, 0
      %v676 = vsel %vm671, %v625, 0
      %678 = vmatpush.bf16.msra.mxu0 0
      %679 = vmatpush.bf16.msra.mxu0 0
      %680 = vmatpush.bf16.msra.mxu0 0
      %681 = vmatpush.bf16.msra.mxu0 %v673
      %682 = vmatpush.bf16.msra.mxu0 %v622
      %683 = vmatpush.bf16.msra.mxu0 %v620
      %684 = vmatpush.bf16.msra.mxu0 %v618
      %685 = vmatpush.bf16.msra.mxu0 %v616
      %686 = vmatmul.bf16.gmra.mxu0 %v666
      %v687 = vpop.f32.mrf.mxu0
      %v688 = vadd.f32 %v637, %v687
      %v689 = vpop.f32.mrf.mxu0
      %v690 = vadd.f32 %v642, %v689
      %691 = vmatmul.bf16.gmra.mxu0 %v669
      %v692 = vpop.f32.mrf.mxu0
      %v693 = vadd.f32 %v647, %v692
      %v694 = vpop.f32.mrf.mxu0
      %v695 = vadd.f32 %v652, %v694
      %696 = vdwg.mxu0
      %697 = vmatpush.bf16.msra.mxu0 0
      %698 = vmatpush.bf16.msra.mxu0 0
      %699 = vmatpush.bf16.msra.mxu0 0
      %700 = vmatpush.bf16.msra.mxu0 %v676
      %701 = vmatpush.bf16.msra.mxu0 %v623
      %702 = vmatpush.bf16.msra.mxu0 %v621
      %703 = vmatpush.bf16.msra.mxu0 %v619
      %704 = vmatpush.bf16.msra.mxu0 %v617
      %705 = vmatmul.bf16.gmra.mxu0 %v666
      %v706 = vpop.f32.mrf.mxu0
      %v707 = vadd.f32 %v637, %v706
      %v708 = vpop.f32.mrf.mxu0
      %v709 = vadd.f32 %v642, %v708
      %710 = vmatmul.bf16.gmra.mxu0 %v669
      %v711 = vpop.f32.mrf.mxu0
      %v712 = vadd.f32 %v647, %v711
      %v713 = vpop.f32.mrf.mxu0
      %v714 = vadd.f32 %v652, %v713
      %715 = vdwg.mxu0
      %v716 = vld [vmem:[%s6] sm:$0xff]
      %v717 = vld [vmem:[%s6 + $0x8] sm:$0xff]
      %v718 = vld [vmem:[%s6 + $0x10] sm:$0xff]
      %v719 = vld [vmem:[%s6 + $0x18] sm:$0xff]
      %v720 = vld [vmem:[%s7] sm:$0xff]
      %v721 = vld [vmem:[%s7 + $0x8] sm:$0xff]
      %v722 = vld [vmem:[%s7 + $0x10] sm:$0xff]
      %v723 = vld [vmem:[%s7 + $0x18] sm:$0xff]
      %v724 = vadd.f32 %v688, %v707
      %725 = vadd.xlane.f32.xlu0 %v724
      %v726 = vpop.xlane.xlu0 %725
      %v727 = vadd.f32 %v690, %v709
      %728 = vadd.xlane.f32.xlu0 %v727
      %v729 = vpop.xlane.xlu0 %728
      %v730 = vadd.f32 %v693, %v712
      %731 = vadd.xlane.f32.xlu0 %v730
      %v732 = vpop.xlane.xlu0 %731
      %v733 = vadd.f32 %v695, %v714
      %734 = vadd.xlane.f32.xlu0 %v733
      %v735 = vpop.xlane.xlu0 %734
      %v736 = vmul.f32 %v688, %v688
      %v737 = vmul.f32 %v707, %v707
      %v738 = vmul.f32 %v690, %v690
      %v739 = vmul.f32 %v709, %v709
      %v740 = vmul.f32 %v693, %v693
      %v741 = vmul.f32 %v712, %v712
      %v742 = vmul.f32 %v695, %v695
      %v743 = vmul.f32 %v714, %v714
      %v744 = vadd.f32 %v736, %v737
      %745 = vadd.xlane.f32.xlu0 %v744
      %v746 = vpop.xlane.xlu0 %745
      %v747 = vadd.f32 %v738, %v739
      %748 = vadd.xlane.f32.xlu0 %v747
      %v749 = vpop.xlane.xlu0 %748
      %v750 = vadd.f32 %v740, %v741
      %751 = vadd.xlane.f32.xlu0 %v750
      %v752 = vpop.xlane.xlu0 %751
      %v753 = vadd.f32 %v742, %v743
      %754 = vadd.xlane.f32.xlu0 %v753
      %v755 = vpop.xlane.xlu0 %754
      %v756 = vmul.f32 %v726, %v468
      %v757 = vmul.f32 %v729, %v469
      %v758 = vmul.f32 %v732, %v470
      %v759 = vmul.f32 %v735, %v471
      %vm760 = vcmask 7168
      %v761 = vsel %vm760, %v756, 0.0
      %v762 = vsel %vm760, %v757, 0.0
      %v763 = vadd.f32 %v761, %v762
      %v764 = vsel %vm760, %v758, 0.0
      %v765 = vadd.f32 %v763, %v764
      %v766 = vsel %vm760, %v759, 0.0
      %v767 = vadd.f32 %v765, %v766
      %768 = vadd.xlane.f32.xlu0 %v767
      %v769 = vpop.xlane.xlu0 %768
      %v770 = vrot.slane %v769, 4
      %v771 = vadd.f32 %v769, %v770
      %v772 = vrot.slane %v771, 2
      %v773 = vadd.f32 %v771, %v772
      %v774 = vrot.slane %v773, 1
      %v775 = vadd.f32 %v773, %v774
      %s776 = vtos %v775
      %v777 = vstv %s776
      %v778 = vmul.f32 %v777, 0.00024414063
      %v779 = vmul.f32 %v726, %v472
      %v780 = vmul.f32 %v729, %v473
      %v781 = vmul.f32 %v732, %v474
      %v782 = vmul.f32 %v735, %v475
      %v783 = vsel %vm760, %v779, 0.0
      %v784 = vsel %vm760, %v780, 0.0
      %v785 = vadd.f32 %v783, %v784
      %v786 = vsel %vm760, %v781, 0.0
      %v787 = vadd.f32 %v785, %v786
      %v788 = vsel %vm760, %v782, 0.0
      %v789 = vadd.f32 %v787, %v788
      %790 = vadd.xlane.f32.xlu0 %v789
      %v791 = vpop.xlane.xlu0 %790
      %v792 = vrot.slane %v791, 4
      %v793 = vadd.f32 %v791, %v792
      %v794 = vrot.slane %v793, 2
      %v795 = vadd.f32 %v793, %v794
      %v796 = vrot.slane %v795, 1
      %v797 = vadd.f32 %v795, %v796
      %s798 = vtos %v797
      %v799 = vstv %s798
      %v800 = vmul.f32 %v799, 0.00024414063
      %v801 = vmul.f32 %v746, %v468
      %v802 = vmul.f32 %v749, %v469
      %v803 = vmul.f32 %v752, %v470
      %v804 = vmul.f32 %v755, %v471
      %v805 = vsel %vm760, %v801, 0.0
      %v806 = vsel %vm760, %v802, 0.0
      %v807 = vadd.f32 %v805, %v806
      %v808 = vsel %vm760, %v803, 0.0
      %v809 = vadd.f32 %v807, %v808
      %v810 = vsel %vm760, %v804, 0.0
      %v811 = vadd.f32 %v809, %v810
      %812 = vadd.xlane.f32.xlu0 %v811
      %v813 = vpop.xlane.xlu0 %812
      %v814 = vrot.slane %v813, 4
      %v815 = vadd.f32 %v813, %v814
      %v816 = vrot.slane %v815, 2
      %v817 = vadd.f32 %v815, %v816
      %v818 = vrot.slane %v817, 1
      %v819 = vadd.f32 %v817, %v818
      %s820 = vtos %v819
      %v821 = vstv %s820
      %v822 = vmul.f32 %v821, 0.00024414063
      %v823 = vmul.f32 %v778, %v778
      %v824 = vsub.f32 %v822, %v823
      %v825 = vmax.f32 %v824, 0.0
      %v826 = vmul.f32 %v746, %v472
      %v827 = vmul.f32 %v749, %v473
      %v828 = vmul.f32 %v752, %v474
      %v829 = vmul.f32 %v755, %v475
      %v830 = vsel %vm760, %v826, 0.0
      %v831 = vsel %vm760, %v827, 0.0
      %v832 = vadd.f32 %v830, %v831
      %v833 = vsel %vm760, %v828, 0.0
      %v834 = vadd.f32 %v832, %v833
      %v835 = vsel %vm760, %v829, 0.0
      %v836 = vadd.f32 %v834, %v835
      %837 = vadd.xlane.f32.xlu0 %v836
      %v838 = vpop.xlane.xlu0 %837
      %v839 = vrot.slane %v838, 4
      %v840 = vadd.f32 %v838, %v839
      %v841 = vrot.slane %v840, 2
      %v842 = vadd.f32 %v840, %v841
      %v843 = vrot.slane %v842, 1
      %v844 = vadd.f32 %v842, %v843
      %s845 = vtos %v844
      %v846 = vstv %s845
      %v847 = vmul.f32 %v846, 0.00024414063
      %v848 = vmul.f32 %v800, %v800
      %v849 = vsub.f32 %v847, %v848
      %v850 = vmax.f32 %v849, 0.0
      %v851 = vmul.f32 %v778, %v468
      %v852 = vmul.f32 %v778, %v469
      %v853 = vmul.f32 %v778, %v470
      %v854 = vmul.f32 %v778, %v471
      %v855 = vmul.f32 %v800, %v472
      %v856 = vmul.f32 %v800, %v473
      %v857 = vmul.f32 %v800, %v474
      %v858 = vmul.f32 %v800, %v475
      %v859 = vadd.f32 %v851, %v855
      %v860 = vadd.f32 %v852, %v856
      %v861 = vadd.f32 %v853, %v857
      %v862 = vadd.f32 %v854, %v858
      %v863 = vadd.f32 %v825, 1e-05
      %v864 = vrsqrt.pop %v863
      %v865 = vmul.f32 %v864, %v863
      %v866 = vmul.f32 %v865, %v864
      %v867 = vmul.f32 0.5, %v866
      %v868 = vsub.f32 1.5, %v867
      %v869 = vmul.f32 %v864, %v868
      %vm870 = vweird.f32 %v863
      %vm871 = vweird.f32 %v864
      %vm872 = vmor %vm870, %vm871
      %v873 = vsel %vm872, %v864, %v869
      %v874 = vmul.f32 %v873, %v468
      %v875 = vmul.f32 %v873, %v469
      %v876 = vmul.f32 %v873, %v470
      %v877 = vmul.f32 %v873, %v471
      %v878 = vadd.f32 %v850, 1e-05
      %v879 = vrsqrt.pop %v878
      %v880 = vmul.f32 %v879, %v878
      %v881 = vmul.f32 %v880, %v879
      %v882 = vmul.f32 0.5, %v881
      %v883 = vsub.f32 1.5, %v882
      %v884 = vmul.f32 %v879, %v883
      %vm885 = vweird.f32 %v878
      %vm886 = vweird.f32 %v879
      %vm887 = vmor %vm885, %vm886
      %v888 = vsel %vm887, %v879, %v884
      %v889 = vmul.f32 %v888, %v472
      %v890 = vmul.f32 %v888, %v473
      %v891 = vmul.f32 %v888, %v474
      %v892 = vmul.f32 %v888, %v475
      %v893 = vadd.f32 %v874, %v889
      %v894 = vadd.f32 %v875, %v890
      %v895 = vadd.f32 %v876, %v891
      %v896 = vadd.f32 %v877, %v892
      %v897 = vsub.f32 %v688, %v859
      %v898 = vsub.f32 %v707, %v859
      %v899 = vsub.f32 %v690, %v860
      %v900 = vsub.f32 %v709, %v860
      %v901 = vsub.f32 %v693, %v861
      %v902 = vsub.f32 %v712, %v861
      %v903 = vsub.f32 %v695, %v862
      %v904 = vsub.f32 %v714, %v862
      %v905 = vmul.f32 %v897, %v893
      %v906 = vmul.f32 %v898, %v893
      %v907 = vmul.f32 %v899, %v894
      %v908 = vmul.f32 %v900, %v894
      %v909 = vmul.f32 %v901, %v895
      %v910 = vmul.f32 %v902, %v895
      %v911 = vmul.f32 %v903, %v896
      %v912 = vmul.f32 %v904, %v896
      %914 = vset.pattern.permute.xlu0 0
      %915 = vperm.xlu0 %914, %v716
      %v916 = vpop.permute.xlu0 %915
      %919 = vset.pattern.permute.xlu0 0
      %920 = vperm.xlu0 %919, %v717
      %v921 = vpop.permute.xlu0 %920
      %924 = vset.pattern.permute.xlu0 0
      %925 = vperm.xlu0 %924, %v718
      %v926 = vpop.permute.xlu0 %925
      %929 = vset.pattern.permute.xlu0 0
      %930 = vperm.xlu0 %929, %v719
      %v931 = vpop.permute.xlu0 %930
      %v933 = vmul.f32 %v905, %v916
      %v934 = vmul.f32 %v906, %v916
      %v935 = vmul.f32 %v907, %v921
      %v936 = vmul.f32 %v908, %v921
      %v937 = vmul.f32 %v909, %v926
      %v938 = vmul.f32 %v910, %v926
      %v939 = vmul.f32 %v911, %v931
      %v940 = vmul.f32 %v912, %v931
      %942 = vset.pattern.permute.xlu0 0
      %943 = vperm.xlu0 %942, %v720
      %v944 = vpop.permute.xlu0 %943
      %947 = vset.pattern.permute.xlu0 0
      %948 = vperm.xlu0 %947, %v721
      %v949 = vpop.permute.xlu0 %948
      %952 = vset.pattern.permute.xlu0 0
      %953 = vperm.xlu0 %952, %v722
      %v954 = vpop.permute.xlu0 %953
      %957 = vset.pattern.permute.xlu0 0
      %958 = vperm.xlu0 %957, %v723
      %v959 = vpop.permute.xlu0 %958
      %v961 = vadd.f32 %v933, %v944
      %v962 = vadd.f32 %v934, %v944
      %v963 = vadd.f32 %v935, %v949
      %v964 = vadd.f32 %v936, %v949
      %v965 = vadd.f32 %v937, %v954
      %v966 = vadd.f32 %v938, %v954
      %v967 = vadd.f32 %v939, %v959
      %v968 = vadd.f32 %v940, %v959
      %vm969 = vcmp.ge.f32.partialorder %v961, 0.0
      %vm970 = vcmp.ge.f32.partialorder %v962, 0.0
      %vm971 = vcmp.ge.f32.partialorder %v963, 0.0
      %vm972 = vcmp.ge.f32.partialorder %v964, 0.0
      %vm973 = vcmp.ge.f32.partialorder %v965, 0.0
      %vm974 = vcmp.ge.f32.partialorder %v966, 0.0
      %vm975 = vcmp.ge.f32.partialorder %v967, 0.0
      %vm976 = vcmp.ge.f32.partialorder %v968, 0.0
      %v977 = vmul.f32 %v961, 0.2
      %v978 = vmul.f32 %v962, 0.2
      %v979 = vmul.f32 %v963, 0.2
      %v980 = vmul.f32 %v964, 0.2
      %v981 = vmul.f32 %v965, 0.2
      %v982 = vmul.f32 %v966, 0.2
      %v983 = vmul.f32 %v967, 0.2
      %v984 = vmul.f32 %v968, 0.2
      %v985 = vsel %vm969, %v961, %v977
      %v986 = vsel %vm970, %v962, %v978
      %v987 = vsel %vm971, %v963, %v979
      %v988 = vsel %vm972, %v964, %v980
      %v989 = vsel %vm973, %v965, %v981
      %v990 = vsel %vm974, %v966, %v982
      %v991 = vsel %vm975, %v967, %v983
      %v992 = vsel %vm976, %v968, %v984
      %993 = vst [vmem:[%s453] sm:$0xff] %v985
      %994 = vst [vmem:[%s453 + $0x8] sm:$0xff] %v986
      %995 = vst [vmem:[%s453 + $0x10] sm:$0xff] %v987
      %996 = vst [vmem:[%s453 + $0x18] sm:$0xff] %v988
      %997 = vst [vmem:[%s453 + $0x20] sm:$0xff] %v989
      %998 = vst [vmem:[%s453 + $0x28] sm:$0xff] %v990
      %999 = vst [vmem:[%s453 + $0x30] sm:$0xff] %v991
      %1000 = vst [vmem:[%s453 + $0x38] sm:$0xff] %v992
      %1001 = vrot.lane.b32.xlu0 %v985, 17
      %v1002 = vpop.permute.xlu0 %1001
      %1003 = vrot.lane.b32.xlu0 %v987, 17
      %v1004 = vpop.permute.xlu0 %1003
      %1005 = vrot.lane.b32.xlu0 %v989, 17
      %v1006 = vpop.permute.xlu0 %1005
      %1007 = vrot.lane.b32.xlu0 %v991, 17
      %v1008 = vpop.permute.xlu0 %1007
      %1009 = vrot.lane.b32.xlu0 %v986, 17
      %v1010 = vpop.permute.xlu0 %1009
      %1011 = vrot.lane.b32.xlu0 %v988, 17
      %v1012 = vpop.permute.xlu0 %1011
      %1013 = vrot.lane.b32.xlu0 %v990, 17
      %v1014 = vpop.permute.xlu0 %1013
      %1015 = vrot.lane.b32.xlu0 %v992, 17
      %v1016 = vpop.permute.xlu0 %1015
      %v1017 = vsel %vm484, %v1002, %v1010
      %v1018 = vsel %vm484, %v1004, %v1012
      %v1019 = vsel %vm484, %v1006, %v1014
      %v1020 = vsel %vm484, %v1008, %v1016
      %v1021 = vsel %vm484, %v1010, %v1002
      %v1022 = vsel %vm484, %v1012, %v1004
      %v1023 = vsel %vm484, %v1014, %v1006
      %v1024 = vsel %vm484, %v1016, %v1008
      %v1025 = vld [vmem:[%s8] sm:$0x3]
      %v1027 = vperm.slane %v1025, 0
      %v1028 = vperm.slane %v1025, 1
      %v1031 = vmul.f32 %v1021, %v1027
      %v1032 = vmul.f32 %v1017, %v1028
      %v1033 = vmul.f32 %v1022, %v1027
      %v1034 = vmul.f32 %v1018, %v1028
      %v1035 = vmul.f32 %v1023, %v1027
      %v1036 = vmul.f32 %v1019, %v1028
      %v1037 = vmul.f32 %v1024, %v1027
      %v1038 = vmul.f32 %v1020, %v1028
      %1039 = vrot.lane.b32.xlu0 %v985, 16
      %v1040 = vpop.permute.xlu0 %1039
      %1041 = vrot.lane.b32.xlu0 %v987, 16
      %v1042 = vpop.permute.xlu0 %1041
      %1043 = vrot.lane.b32.xlu0 %v989, 16
      %v1044 = vpop.permute.xlu0 %1043
      %1045 = vrot.lane.b32.xlu0 %v991, 16
      %v1046 = vpop.permute.xlu0 %1045
      %1047 = vrot.lane.b32.xlu0 %v986, 16
      %v1048 = vpop.permute.xlu0 %1047
      %1049 = vrot.lane.b32.xlu0 %v988, 16
      %v1050 = vpop.permute.xlu0 %1049
      %1051 = vrot.lane.b32.xlu0 %v990, 16
      %v1052 = vpop.permute.xlu0 %1051
      %1053 = vrot.lane.b32.xlu0 %v992, 16
      %v1054 = vpop.permute.xlu0 %1053
      %v1055 = vsel %vm499, %v1040, %v1048
      %v1056 = vsel %vm499, %v1042, %v1050
      %v1057 = vsel %vm499, %v1044, %v1052
      %v1058 = vsel %vm499, %v1046, %v1054
      %v1059 = vsel %vm499, %v1048, %v1040
      %v1060 = vsel %vm499, %v1050, %v1042
      %v1061 = vsel %vm499, %v1052, %v1044
      %v1062 = vsel %vm499, %v1054, %v1046
      %v1063 = vld [vmem:[%s502] sm:$0x3]
      %v1065 = vperm.slane %v1063, 0
      %v1066 = vperm.slane %v1063, 1
      %v1069 = vmul.f32 %v1059, %v1065
      %v1070 = vmul.f32 %v1055, %v1066
      %v1071 = vmul.f32 %v1060, %v1065
      %v1072 = vmul.f32 %v1056, %v1066
      %v1073 = vmul.f32 %v1061, %v1065
      %v1074 = vmul.f32 %v1057, %v1066
      %v1075 = vmul.f32 %v1062, %v1065
      %v1076 = vmul.f32 %v1058, %v1066
      %1077 = vrot.lane.b32.xlu0 %v985, 15
      %v1078 = vpop.permute.xlu0 %1077
      %1079 = vrot.lane.b32.xlu0 %v987, 15
      %v1080 = vpop.permute.xlu0 %1079
      %1081 = vrot.lane.b32.xlu0 %v989, 15
      %v1082 = vpop.permute.xlu0 %1081
      %1083 = vrot.lane.b32.xlu0 %v991, 15
      %v1084 = vpop.permute.xlu0 %1083
      %1085 = vrot.lane.b32.xlu0 %v986, 15
      %v1086 = vpop.permute.xlu0 %1085
      %1087 = vrot.lane.b32.xlu0 %v988, 15
      %v1088 = vpop.permute.xlu0 %1087
      %1089 = vrot.lane.b32.xlu0 %v990, 15
      %v1090 = vpop.permute.xlu0 %1089
      %1091 = vrot.lane.b32.xlu0 %v992, 15
      %v1092 = vpop.permute.xlu0 %1091
      %v1093 = vsel %vm515, %v1078, %v1086
      %v1094 = vsel %vm515, %v1080, %v1088
      %v1095 = vsel %vm515, %v1082, %v1090
      %v1096 = vsel %vm515, %v1084, %v1092
      %v1097 = vsel %vm515, %v1086, %v1078
      %v1098 = vsel %vm515, %v1088, %v1080
      %v1099 = vsel %vm515, %v1090, %v1082
      %v1100 = vsel %vm515, %v1092, %v1084
      %v1101 = vld [vmem:[%s518] sm:$0x3]
      %v1103 = vperm.slane %v1101, 0
      %v1104 = vperm.slane %v1101, 1
      %v1107 = vmul.f32 %v1097, %v1103
      %v1108 = vmul.f32 %v1093, %v1104
      %v1109 = vmul.f32 %v1098, %v1103
      %v1110 = vmul.f32 %v1094, %v1104
      %v1111 = vmul.f32 %v1099, %v1103
      %v1112 = vmul.f32 %v1095, %v1104
      %v1113 = vmul.f32 %v1100, %v1103
      %v1114 = vmul.f32 %v1096, %v1104
      %1115 = vrot.lane.b32.xlu0 %v985, 1
      %v1116 = vpop.permute.xlu0 %1115
      %1117 = vrot.lane.b32.xlu0 %v987, 1
      %v1118 = vpop.permute.xlu0 %1117
      %1119 = vrot.lane.b32.xlu0 %v989, 1
      %v1120 = vpop.permute.xlu0 %1119
      %1121 = vrot.lane.b32.xlu0 %v991, 1
      %v1122 = vpop.permute.xlu0 %1121
      %1123 = vrot.lane.b32.xlu0 %v986, 1
      %v1124 = vpop.permute.xlu0 %1123
      %1125 = vrot.lane.b32.xlu0 %v988, 1
      %v1126 = vpop.permute.xlu0 %1125
      %1127 = vrot.lane.b32.xlu0 %v990, 1
      %v1128 = vpop.permute.xlu0 %1127
      %1129 = vrot.lane.b32.xlu0 %v992, 1
      %v1130 = vpop.permute.xlu0 %1129
      %v1131 = vsel %vm531, %v1116, %v1124
      %v1132 = vsel %vm531, %v1118, %v1126
      %v1133 = vsel %vm531, %v1120, %v1128
      %v1134 = vsel %vm531, %v1122, %v1130
      %v1135 = vsel %vm531, %v1124, %v1116
      %v1136 = vsel %vm531, %v1126, %v1118
      %v1137 = vsel %vm531, %v1128, %v1120
      %v1138 = vsel %vm531, %v1130, %v1122
      %v1139 = vld [vmem:[%s534] sm:$0x3]
      %v1141 = vperm.slane %v1139, 0
      %v1142 = vperm.slane %v1139, 1
      %v1145 = vmul.f32 %v1135, %v1141
      %v1146 = vmul.f32 %v1131, %v1142
      %v1147 = vmul.f32 %v1136, %v1141
      %v1148 = vmul.f32 %v1132, %v1142
      %v1149 = vmul.f32 %v1137, %v1141
      %v1150 = vmul.f32 %v1133, %v1142
      %v1151 = vmul.f32 %v1138, %v1141
      %v1152 = vmul.f32 %v1134, %v1142
      %v1153 = vld [vmem:[%s543] sm:$0x3]
      %v1155 = vperm.slane %v1153, 0
      %v1156 = vperm.slane %v1153, 1
      %v1159 = vmul.f32 %v985, %v1155
      %v1160 = vmul.f32 %v986, %v1156
      %v1161 = vmul.f32 %v987, %v1155
      %v1162 = vmul.f32 %v988, %v1156
      %v1163 = vmul.f32 %v989, %v1155
      %v1164 = vmul.f32 %v990, %v1156
      %v1165 = vmul.f32 %v991, %v1155
      %v1166 = vmul.f32 %v992, %v1156
      %1167 = vrot.lane.b32.xlu0 %v985, 127
      %v1168 = vpop.permute.xlu0 %1167
      %1169 = vrot.lane.b32.xlu0 %v987, 127
      %v1170 = vpop.permute.xlu0 %1169
      %1171 = vrot.lane.b32.xlu0 %v989, 127
      %v1172 = vpop.permute.xlu0 %1171
      %1173 = vrot.lane.b32.xlu0 %v991, 127
      %v1174 = vpop.permute.xlu0 %1173
      %1175 = vrot.lane.b32.xlu0 %v986, 127
      %v1176 = vpop.permute.xlu0 %1175
      %1177 = vrot.lane.b32.xlu0 %v988, 127
      %v1178 = vpop.permute.xlu0 %1177
      %1179 = vrot.lane.b32.xlu0 %v990, 127
      %v1180 = vpop.permute.xlu0 %1179
      %1181 = vrot.lane.b32.xlu0 %v992, 127
      %v1182 = vpop.permute.xlu0 %1181
      %v1183 = vsel %vm556, %v1168, %v1176
      %v1184 = vsel %vm556, %v1170, %v1178
      %v1185 = vsel %vm556, %v1172, %v1180
      %v1186 = vsel %vm556, %v1174, %v1182
      %v1187 = vsel %vm556, %v1176, %v1168
      %v1188 = vsel %vm556, %v1178, %v1170
      %v1189 = vsel %vm556, %v1180, %v1172
      %v1190 = vsel %vm556, %v1182, %v1174
      %v1191 = vld [vmem:[%s559] sm:$0x3]
      %v1193 = vperm.slane %v1191, 0
      %v1194 = vperm.slane %v1191, 1
      %v1197 = vmul.f32 %v1183, %v1193
      %v1198 = vmul.f32 %v1187, %v1194
      %v1199 = vmul.f32 %v1184, %v1193
      %v1200 = vmul.f32 %v1188, %v1194
      %v1201 = vmul.f32 %v1185, %v1193
      %v1202 = vmul.f32 %v1189, %v1194
      %v1203 = vmul.f32 %v1186, %v1193
      %v1204 = vmul.f32 %v1190, %v1194
      %1205 = vrot.lane.b32.xlu0 %v985, 113
      %v1206 = vpop.permute.xlu0 %1205
      %1207 = vrot.lane.b32.xlu0 %v987, 113
      %v1208 = vpop.permute.xlu0 %1207
      %1209 = vrot.lane.b32.xlu0 %v989, 113
      %v1210 = vpop.permute.xlu0 %1209
      %1211 = vrot.lane.b32.xlu0 %v991, 113
      %v1212 = vpop.permute.xlu0 %1211
      %1213 = vrot.lane.b32.xlu0 %v986, 113
      %v1214 = vpop.permute.xlu0 %1213
      %1215 = vrot.lane.b32.xlu0 %v988, 113
      %v1216 = vpop.permute.xlu0 %1215
      %1217 = vrot.lane.b32.xlu0 %v990, 113
      %v1218 = vpop.permute.xlu0 %1217
      %1219 = vrot.lane.b32.xlu0 %v992, 113
      %v1220 = vpop.permute.xlu0 %1219
      %v1221 = vsel %vm572, %v1206, %v1214
      %v1222 = vsel %vm572, %v1208, %v1216
      %v1223 = vsel %vm572, %v1210, %v1218
      %v1224 = vsel %vm572, %v1212, %v1220
      %v1225 = vsel %vm572, %v1214, %v1206
      %v1226 = vsel %vm572, %v1216, %v1208
      %v1227 = vsel %vm572, %v1218, %v1210
      %v1228 = vsel %vm572, %v1220, %v1212
      %v1229 = vld [vmem:[%s575] sm:$0x3]
      %v1231 = vperm.slane %v1229, 0
      %v1232 = vperm.slane %v1229, 1
      %v1235 = vmul.f32 %v1221, %v1231
      %v1236 = vmul.f32 %v1225, %v1232
      %v1237 = vmul.f32 %v1222, %v1231
      %v1238 = vmul.f32 %v1226, %v1232
      %v1239 = vmul.f32 %v1223, %v1231
      %v1240 = vmul.f32 %v1227, %v1232
      %v1241 = vmul.f32 %v1224, %v1231
      %v1242 = vmul.f32 %v1228, %v1232
      %1243 = vrot.lane.b32.xlu0 %v985, 112
      %v1244 = vpop.permute.xlu0 %1243
      %1245 = vrot.lane.b32.xlu0 %v987, 112
      %v1246 = vpop.permute.xlu0 %1245
      %1247 = vrot.lane.b32.xlu0 %v989, 112
      %v1248 = vpop.permute.xlu0 %1247
      %1249 = vrot.lane.b32.xlu0 %v991, 112
      %v1250 = vpop.permute.xlu0 %1249
      %1251 = vrot.lane.b32.xlu0 %v986, 112
      %v1252 = vpop.permute.xlu0 %1251
      %1253 = vrot.lane.b32.xlu0 %v988, 112
      %v1254 = vpop.permute.xlu0 %1253
      %1255 = vrot.lane.b32.xlu0 %v990, 112
      %v1256 = vpop.permute.xlu0 %1255
      %1257 = vrot.lane.b32.xlu0 %v992, 112
      %v1258 = vpop.permute.xlu0 %1257
      %v1259 = vsel %vm588, %v1244, %v1252
      %v1260 = vsel %vm588, %v1246, %v1254
      %v1261 = vsel %vm588, %v1248, %v1256
      %v1262 = vsel %vm588, %v1250, %v1258
      %v1263 = vsel %vm588, %v1252, %v1244
      %v1264 = vsel %vm588, %v1254, %v1246
      %v1265 = vsel %vm588, %v1256, %v1248
      %v1266 = vsel %vm588, %v1258, %v1250
      %v1267 = vld [vmem:[%s591] sm:$0x3]
      %v1269 = vperm.slane %v1267, 0
      %v1270 = vperm.slane %v1267, 1
      %v1273 = vmul.f32 %v1259, %v1269
      %v1274 = vmul.f32 %v1263, %v1270
      %v1275 = vmul.f32 %v1260, %v1269
      %v1276 = vmul.f32 %v1264, %v1270
      %v1277 = vmul.f32 %v1261, %v1269
      %v1278 = vmul.f32 %v1265, %v1270
      %v1279 = vmul.f32 %v1262, %v1269
      %v1280 = vmul.f32 %v1266, %v1270
      %1281 = vrot.lane.b32.xlu0 %v985, 111
      %v1282 = vpop.permute.xlu0 %1281
      %1283 = vrot.lane.b32.xlu0 %v987, 111
      %v1284 = vpop.permute.xlu0 %1283
      %1285 = vrot.lane.b32.xlu0 %v989, 111
      %v1286 = vpop.permute.xlu0 %1285
      %1287 = vrot.lane.b32.xlu0 %v991, 111
      %v1288 = vpop.permute.xlu0 %1287
      %1289 = vrot.lane.b32.xlu0 %v986, 111
      %v1290 = vpop.permute.xlu0 %1289
      %1291 = vrot.lane.b32.xlu0 %v988, 111
      %v1292 = vpop.permute.xlu0 %1291
      %1293 = vrot.lane.b32.xlu0 %v990, 111
      %v1294 = vpop.permute.xlu0 %1293
      %1295 = vrot.lane.b32.xlu0 %v992, 111
      %v1296 = vpop.permute.xlu0 %1295
      %v1297 = vsel %vm604, %v1282, %v1290
      %v1298 = vsel %vm604, %v1284, %v1292
      %v1299 = vsel %vm604, %v1286, %v1294
      %v1300 = vsel %vm604, %v1288, %v1296
      %v1301 = vsel %vm604, %v1290, %v1282
      %v1302 = vsel %vm604, %v1292, %v1284
      %v1303 = vsel %vm604, %v1294, %v1286
      %v1304 = vsel %vm604, %v1296, %v1288
      %v1305 = vld [vmem:[%s607] sm:$0x3]
      %v1307 = vperm.slane %v1305, 0
      %v1308 = vperm.slane %v1305, 1
      %v1311 = vmul.f32 %v1297, %v1307
      %v1312 = vmul.f32 %v1301, %v1308
      %v1313 = vmul.f32 %v1298, %v1307
      %v1314 = vmul.f32 %v1302, %v1308
      %v1315 = vmul.f32 %v1299, %v1307
      %v1316 = vmul.f32 %v1303, %v1308
      %v1317 = vmul.f32 %v1300, %v1307
      %v1318 = vmul.f32 %v1304, %v1308
      %v1319 = vpack.c.bf16 %v1033, %v1031
      %v1320 = vpack.c.bf16 %v1034, %v1032
      %v1321 = vpack.c.bf16 %v1037, %v1035
      %v1322 = vpack.c.bf16 %v1038, %v1036
      %v1323 = vpack.c.bf16 %v1071, %v1069
      %v1324 = vpack.c.bf16 %v1072, %v1070
      %v1325 = vpack.c.bf16 %v1075, %v1073
      %v1326 = vpack.c.bf16 %v1076, %v1074
      %v1327 = vpack.c.bf16 %v1109, %v1107
      %v1328 = vpack.c.bf16 %v1110, %v1108
      %v1329 = vpack.c.bf16 %v1113, %v1111
      %v1330 = vpack.c.bf16 %v1114, %v1112
      %v1331 = vpack.c.bf16 %v1147, %v1145
      %v1332 = vpack.c.bf16 %v1148, %v1146
      %v1333 = vpack.c.bf16 %v1151, %v1149
      %v1334 = vpack.c.bf16 %v1152, %v1150
      %v1335 = vpack.c.bf16 %v1161, %v1159
      %v1336 = vpack.c.bf16 %v1162, %v1160
      %v1337 = vpack.c.bf16 %v1165, %v1163
      %v1338 = vpack.c.bf16 %v1166, %v1164
      %v1339 = vpack.c.bf16 %v1199, %v1197
      %v1340 = vpack.c.bf16 %v1200, %v1198
      %v1341 = vpack.c.bf16 %v1203, %v1201
      %v1342 = vpack.c.bf16 %v1204, %v1202
      %v1343 = vpack.c.bf16 %v1237, %v1235
      %v1344 = vpack.c.bf16 %v1238, %v1236
      %v1345 = vpack.c.bf16 %v1241, %v1239
      %v1346 = vpack.c.bf16 %v1242, %v1240
      %v1347 = vpack.c.bf16 %v1275, %v1273
      %v1348 = vpack.c.bf16 %v1276, %v1274
      %v1349 = vpack.c.bf16 %v1279, %v1277
      %v1350 = vpack.c.bf16 %v1280, %v1278
      %v1351 = vpack.c.bf16 %v1313, %v1311
      %v1352 = vpack.c.bf16 %v1314, %v1312
      %v1353 = vpack.c.bf16 %v1317, %v1315
      %v1354 = vpack.c.bf16 %v1318, %v1316
      %v1355 = vld [vmem:[%s2] sm:$0xff]
      %v1356 = vld [vmem:[%s2 + $0x8] sm:$0xf]
      %v1357 = vld [vmem:[%s2 + $0xc] sm:$0xff]
      %v1358 = vld [vmem:[%s2 + $0x14] sm:$0xf]
      %v1359 = vld [vmem:[%s2 + $0x18] sm:$0xff]
      %v1360 = vld [vmem:[%s2 + $0x20] sm:$0xf]
      %v1361 = vld [vmem:[%s2 + $0x24] sm:$0xff]
      %v1362 = vld [vmem:[%s2 + $0x2c] sm:$0xf]
      %v1371 = vunpack.c.l.b16 %v1355
      %v1372 = vunpack.c.h.b16 %v1355
      %v1373 = vunpack.c.l.b16 %v1356
      %v1374 = vunpack.c.l.b16 %v1357
      %v1375 = vunpack.c.h.b16 %v1357
      %v1376 = vunpack.c.l.b16 %v1358
      %v1377 = vunpack.c.l.b16 %v1359
      %v1378 = vunpack.c.h.b16 %v1359
      %v1379 = vunpack.c.l.b16 %v1360
      %v1380 = vunpack.c.l.b16 %v1361
      %v1381 = vunpack.c.h.b16 %v1361
      %v1382 = vunpack.c.l.b16 %v1362
      %v1383 = vpack.c.b16 %v1374, %v1371
      %v1384 = vpack.c.b16 %v1375, %v1372
      %v1385 = vpack.c.b16 %v1376, %v1373
      %v1386 = vpack.c.b16 %v1380, %v1377
      %v1387 = vpack.c.b16 %v1381, %v1378
      %v1388 = vpack.c.b16 %v1382, %v1379
      %vm1393 = vcmask 261120
      %v1395 = vsel %vm1393, %v1385, 0
      %v1398 = vsel %vm1393, %v1388, 0
      %1400 = vmatpush.bf16.msra.mxu0 %v1333
      %1401 = vmatpush.bf16.msra.mxu0 %v1331
      %1402 = vmatpush.bf16.msra.mxu0 %v1329
      %1403 = vmatpush.bf16.msra.mxu0 %v1327
      %1404 = vmatpush.bf16.msra.mxu0 %v1325
      %1405 = vmatpush.bf16.msra.mxu0 %v1323
      %1406 = vmatpush.bf16.msra.mxu0 %v1321
      %1407 = vmatpush.bf16.msra.mxu0 %v1319
      %1408 = vmatmul.bf16.gmra.mxu0 %v1383
      %v1409 = vpop.f32.mrf.mxu0
      %v1410 = vadd.f32 0.0, %v1409
      %v1411 = vpop.f32.mrf.mxu0
      %v1412 = vadd.f32 0.0, %v1411
      %1413 = vmatmul.bf16.gmra.mxu0 %v1386
      %v1414 = vpop.f32.mrf.mxu0
      %v1415 = vadd.f32 0.0, %v1414
      %v1416 = vpop.f32.mrf.mxu0
      %v1417 = vadd.f32 0.0, %v1416
      %1418 = vdwg.mxu0
      %1419 = vmatpush.bf16.msra.mxu0 %v1349
      %1420 = vmatpush.bf16.msra.mxu0 %v1347
      %1421 = vmatpush.bf16.msra.mxu0 %v1345
      %1422 = vmatpush.bf16.msra.mxu0 %v1343
      %1423 = vmatpush.bf16.msra.mxu0 %v1341
      %1424 = vmatpush.bf16.msra.mxu0 %v1339
      %1425 = vmatpush.bf16.msra.mxu0 %v1337
      %1426 = vmatpush.bf16.msra.mxu0 %v1335
      %1427 = vmatmul.bf16.gmra.mxu0 %v1384
      %v1428 = vpop.f32.mrf.mxu0
      %v1429 = vadd.f32 %v1410, %v1428
      %v1430 = vpop.f32.mrf.mxu0
      %v1431 = vadd.f32 %v1412, %v1430
      %1432 = vmatmul.bf16.gmra.mxu0 %v1387
      %v1433 = vpop.f32.mrf.mxu0
      %v1434 = vadd.f32 %v1415, %v1433
      %v1435 = vpop.f32.mrf.mxu0
      %v1436 = vadd.f32 %v1417, %v1435
      %1437 = vdwg.mxu0
      %1438 = vmatpush.bf16.msra.mxu0 0
      %1439 = vmatpush.bf16.msra.mxu0 0
      %1440 = vmatpush.bf16.msra.mxu0 0
      %1441 = vmatpush.bf16.msra.mxu0 0
      %1442 = vmatpush.bf16.msra.mxu0 0
      %1443 = vmatpush.bf16.msra.mxu0 0
      %1444 = vmatpush.bf16.msra.mxu0 %v1353
      %1445 = vmatpush.bf16.msra.mxu0 %v1351
      %1446 = vmatmul.bf16.gmra.mxu0 %v1395
      %v1447 = vpop.f32.mrf.mxu0
      %v1448 = vadd.f32 %v1429, %v1447
      %v1449 = vpop.f32.mrf.mxu0
      %v1450 = vadd.f32 %v1431, %v1449
      %1451 = vmatmul.bf16.gmra.mxu0 %v1398
      %v1452 = vpop.f32.mrf.mxu0
      %v1453 = vadd.f32 %v1434, %v1452
      %v1454 = vpop.f32.mrf.mxu0
      %v1455 = vadd.f32 %v1436, %v1454
      %1456 = vdwg.mxu0
      %1457 = vmatpush.bf16.msra.mxu0 %v1334
      %1458 = vmatpush.bf16.msra.mxu0 %v1332
      %1459 = vmatpush.bf16.msra.mxu0 %v1330
      %1460 = vmatpush.bf16.msra.mxu0 %v1328
      %1461 = vmatpush.bf16.msra.mxu0 %v1326
      %1462 = vmatpush.bf16.msra.mxu0 %v1324
      %1463 = vmatpush.bf16.msra.mxu0 %v1322
      %1464 = vmatpush.bf16.msra.mxu0 %v1320
      %1465 = vmatmul.bf16.gmra.mxu0 %v1383
      %v1466 = vpop.f32.mrf.mxu0
      %v1467 = vadd.f32 0.0, %v1466
      %v1468 = vpop.f32.mrf.mxu0
      %v1469 = vadd.f32 0.0, %v1468
      %1470 = vmatmul.bf16.gmra.mxu0 %v1386
      %v1471 = vpop.f32.mrf.mxu0
      %v1472 = vadd.f32 0.0, %v1471
      %v1473 = vpop.f32.mrf.mxu0
      %v1474 = vadd.f32 0.0, %v1473
      %1475 = vdwg.mxu0
      %1476 = vmatpush.bf16.msra.mxu0 %v1350
      %1477 = vmatpush.bf16.msra.mxu0 %v1348
      %1478 = vmatpush.bf16.msra.mxu0 %v1346
      %1479 = vmatpush.bf16.msra.mxu0 %v1344
      %1480 = vmatpush.bf16.msra.mxu0 %v1342
      %1481 = vmatpush.bf16.msra.mxu0 %v1340
      %1482 = vmatpush.bf16.msra.mxu0 %v1338
      %1483 = vmatpush.bf16.msra.mxu0 %v1336
      %1484 = vmatmul.bf16.gmra.mxu0 %v1384
      %v1485 = vpop.f32.mrf.mxu0
      %v1486 = vadd.f32 %v1467, %v1485
      %v1487 = vpop.f32.mrf.mxu0
      %v1488 = vadd.f32 %v1469, %v1487
      %1489 = vmatmul.bf16.gmra.mxu0 %v1387
      %v1490 = vpop.f32.mrf.mxu0
      %v1491 = vadd.f32 %v1472, %v1490
      %v1492 = vpop.f32.mrf.mxu0
      %v1493 = vadd.f32 %v1474, %v1492
      %1494 = vdwg.mxu0
      %1495 = vmatpush.bf16.msra.mxu0 0
      %1496 = vmatpush.bf16.msra.mxu0 0
      %1497 = vmatpush.bf16.msra.mxu0 0
      %1498 = vmatpush.bf16.msra.mxu0 0
      %1499 = vmatpush.bf16.msra.mxu0 0
      %1500 = vmatpush.bf16.msra.mxu0 0
      %1501 = vmatpush.bf16.msra.mxu0 %v1354
      %1502 = vmatpush.bf16.msra.mxu0 %v1352
      %1503 = vmatmul.bf16.gmra.mxu0 %v1395
      %v1504 = vpop.f32.mrf.mxu0
      %v1505 = vadd.f32 %v1486, %v1504
      %v1506 = vpop.f32.mrf.mxu0
      %v1507 = vadd.f32 %v1488, %v1506
      %1508 = vmatmul.bf16.gmra.mxu0 %v1398
      %v1509 = vpop.f32.mrf.mxu0
      %v1510 = vadd.f32 %v1491, %v1509
      %v1511 = vpop.f32.mrf.mxu0
      %v1512 = vadd.f32 %v1493, %v1511
      %1513 = vdwg.mxu0
      %v1514 = vpack.c.bf16 %v1450, %v1448
      %v1515 = vpack.c.bf16 %v1507, %v1505
      %v1516 = vpack.c.bf16 %v1455, %v1453
      %v1517 = vpack.c.bf16 %v1512, %v1510
      %v1518 = vld [vmem:[%s10] sm:$0xf]
      %v1519 = vld [vmem:[%s10 + $0x4] sm:$0xf]
      %v1520 = vld [vmem:[%s10 + $0x8] sm:$0xf]
      %v1521 = vld [vmem:[%s10 + $0xc] sm:$0xf]
      %v1522 = vld [vmem:[%s10 + $0x10] sm:$0xf]
      %v1523 = vld [vmem:[%s10 + $0x14] sm:$0xf]
      %v1524 = vld [vmem:[%s10 + $0x18] sm:$0xf]
      %v1525 = vld [vmem:[%s10 + $0x1c] sm:$0xf]
      %v1526 = vld [vmem:[%s10 + $0x20] sm:$0xf]
      %v1527 = vld [vmem:[%s10 + $0x24] sm:$0xf]
      %v1528 = vld [vmem:[%s10 + $0x28] sm:$0xf]
      %v1529 = vld [vmem:[%s10 + $0x2c] sm:$0xf]
      %v1530 = vld [vmem:[%s10 + $0x30] sm:$0xf]
      %v1531 = vld [vmem:[%s10 + $0x34] sm:$0xf]
      %v1532 = vld [vmem:[%s10 + $0x38] sm:$0xf]
      %v1533 = vld [vmem:[%s10 + $0x3c] sm:$0xf]
      %v1534 = vld [vmem:[%s10 + $0x40] sm:$0xf]
      %v1535 = vld [vmem:[%s10 + $0x44] sm:$0xf]
      %v1536 = vld [vmem:[%s10 + $0x48] sm:$0xf]
      %v1537 = vld [vmem:[%s10 + $0x4c] sm:$0xf]
      %v1538 = vld [vmem:[%s10 + $0x50] sm:$0xf]
      %v1539 = vld [vmem:[%s10 + $0x54] sm:$0xf]
      %v1540 = vld [vmem:[%s10 + $0x58] sm:$0xf]
      %v1541 = vld [vmem:[%s10 + $0x5c] sm:$0xf]
      %v1542 = vld [vmem:[%s10 + $0x60] sm:$0xf]
      %v1543 = vld [vmem:[%s10 + $0x64] sm:$0xf]
      %v1544 = vld [vmem:[%s10 + $0x68] sm:$0xf]
      %v1545 = vld [vmem:[%s10 + $0x6c] sm:$0xf]
      %v1546 = vld [vmem:[%s10 + $0x70] sm:$0xf]
      %v1547 = vld [vmem:[%s10 + $0x74] sm:$0xf]
      %v1548 = vld [vmem:[%s10 + $0x78] sm:$0xf]
      %v1549 = vld [vmem:[%s10 + $0x7c] sm:$0xf]
      %s1550 = scalar_lea.vmem %s5, 32
      %v1551 = vld [vmem:[%s1550] sm:$0xff]
      %v1552 = vld [vmem:[%s1550 + $0x8] sm:$0xff]
      %v1553 = vld [vmem:[%s1550 + $0x10] sm:$0xff]
      %v1554 = vld [vmem:[%s1550 + $0x18] sm:$0xff]
      %1556 = vset.pattern.permute.xlu0 0
      %1557 = vperm.xlu0 %1556, %v1551
      %v1558 = vpop.permute.xlu0 %1557
      %1561 = vset.pattern.permute.xlu0 0
      %1562 = vperm.xlu0 %1561, %v1552
      %v1563 = vpop.permute.xlu0 %1562
      %1566 = vset.pattern.permute.xlu0 0
      %1567 = vperm.xlu0 %1566, %v1553
      %v1568 = vpop.permute.xlu0 %1567
      %1571 = vset.pattern.permute.xlu0 0
      %1572 = vperm.xlu0 %1571, %v1554
      %v1573 = vpop.permute.xlu0 %1572
      %v1607 = vunpack.c.l.b16 %v1518
      %v1608 = vunpack.c.l.b16 %v1519
      %v1609 = vunpack.c.l.b16 %v1520
      %v1610 = vunpack.c.l.b16 %v1521
      %v1611 = vunpack.c.l.b16 %v1522
      %v1612 = vunpack.c.l.b16 %v1523
      %v1613 = vunpack.c.l.b16 %v1524
      %v1614 = vunpack.c.l.b16 %v1525
      %v1615 = vunpack.c.l.b16 %v1526
      %v1616 = vunpack.c.l.b16 %v1527
      %v1617 = vunpack.c.l.b16 %v1528
      %v1618 = vunpack.c.l.b16 %v1529
      %v1619 = vunpack.c.l.b16 %v1530
      %v1620 = vunpack.c.l.b16 %v1531
      %v1621 = vunpack.c.l.b16 %v1532
      %v1622 = vunpack.c.l.b16 %v1533
      %v1623 = vunpack.c.l.b16 %v1534
      %v1624 = vunpack.c.l.b16 %v1535
      %v1625 = vunpack.c.l.b16 %v1536
      %v1626 = vunpack.c.l.b16 %v1537
      %v1627 = vunpack.c.l.b16 %v1538
      %v1628 = vunpack.c.l.b16 %v1539
      %v1629 = vunpack.c.l.b16 %v1540
      %v1630 = vunpack.c.l.b16 %v1541
      %v1631 = vunpack.c.l.b16 %v1542
      %v1632 = vunpack.c.l.b16 %v1543
      %v1633 = vunpack.c.l.b16 %v1544
      %v1634 = vunpack.c.l.b16 %v1545
      %v1635 = vunpack.c.l.b16 %v1546
      %v1636 = vunpack.c.l.b16 %v1547
      %v1637 = vunpack.c.l.b16 %v1548
      %v1638 = vunpack.c.l.b16 %v1549
      %v1639 = vpack.c.b16 %v1608, %v1607
      %v1640 = vpack.c.b16 %v1610, %v1609
      %v1641 = vpack.c.b16 %v1612, %v1611
      %v1642 = vpack.c.b16 %v1614, %v1613
      %v1643 = vpack.c.b16 %v1616, %v1615
      %v1644 = vpack.c.b16 %v1618, %v1617
      %v1645 = vpack.c.b16 %v1620, %v1619
      %v1646 = vpack.c.b16 %v1622, %v1621
      %v1647 = vpack.c.b16 %v1624, %v1623
      %v1648 = vpack.c.b16 %v1626, %v1625
      %v1649 = vpack.c.b16 %v1628, %v1627
      %v1650 = vpack.c.b16 %v1630, %v1629
      %v1651 = vpack.c.b16 %v1632, %v1631
      %v1652 = vpack.c.b16 %v1634, %v1633
      %v1653 = vpack.c.b16 %v1636, %v1635
      %v1654 = vpack.c.b16 %v1638, %v1637
      %1671 = vmatpush.bf16.msra.mxu0 %v1646
      %1672 = vmatpush.bf16.msra.mxu0 %v1645
      %1673 = vmatpush.bf16.msra.mxu0 %v1644
      %1674 = vmatpush.bf16.msra.mxu0 %v1643
      %1675 = vmatpush.bf16.msra.mxu0 %v1642
      %1676 = vmatpush.bf16.msra.mxu0 %v1641
      %1677 = vmatpush.bf16.msra.mxu0 %v1640
      %1678 = vmatpush.bf16.msra.mxu0 %v1639
      %1679 = vmatmul.bf16.gmra.mxu0 %v1514
      %v1680 = vpop.f32.mrf.mxu0
      %v1681 = vadd.f32 %v1558, %v1680
      %v1682 = vpop.f32.mrf.mxu0
      %v1683 = vadd.f32 %v1563, %v1682
      %1684 = vmatmul.bf16.gmra.mxu0 %v1516
      %v1685 = vpop.f32.mrf.mxu0
      %v1686 = vadd.f32 %v1568, %v1685
      %v1687 = vpop.f32.mrf.mxu0
      %v1688 = vadd.f32 %v1573, %v1687
      %1689 = vdwg.mxu0
      %1690 = vmatpush.bf16.msra.mxu0 %v1654
      %1691 = vmatpush.bf16.msra.mxu0 %v1653
      %1692 = vmatpush.bf16.msra.mxu0 %v1652
      %1693 = vmatpush.bf16.msra.mxu0 %v1651
      %1694 = vmatpush.bf16.msra.mxu0 %v1650
      %1695 = vmatpush.bf16.msra.mxu0 %v1649
      %1696 = vmatpush.bf16.msra.mxu0 %v1648
      %1697 = vmatpush.bf16.msra.mxu0 %v1647
      %1698 = vmatmul.bf16.gmra.mxu0 %v1515
      %v1699 = vpop.f32.mrf.mxu0
      %v1700 = vadd.f32 %v1681, %v1699
      %v1701 = vpop.f32.mrf.mxu0
      %v1702 = vadd.f32 %v1683, %v1701
      %1703 = vmatmul.bf16.gmra.mxu0 %v1517
      %v1704 = vpop.f32.mrf.mxu0
      %v1705 = vadd.f32 %v1686, %v1704
      %v1706 = vpop.f32.mrf.mxu0
      %v1707 = vadd.f32 %v1688, %v1706
      %1708 = vdwg.mxu0
      %vm1709 = vcmp.lt.s32.totalorder %v483, 64
      %v1710 = vsel %vm1709, 1, 0
      %v1711 = vcvt.s32.f32 %v1710
      %v1712 = vmul.f32 %v1700, %v1711
      %v1713 = vmul.f32 %v1702, %v1711
      %v1714 = vmul.f32 %v1705, %v1711
      %v1715 = vmul.f32 %v1707, %v1711
      %s1716 = scalar_lea.vmem %s6, 32
      %v1717 = vld [vmem:[%s1716] sm:$0xff]
      %v1718 = vld [vmem:[%s1716 + $0x8] sm:$0xff]
      %v1719 = vld [vmem:[%s1716 + $0x10] sm:$0xff]
      %v1720 = vld [vmem:[%s1716 + $0x18] sm:$0xff]
      %s1721 = scalar_lea.vmem %s7, 32
      %v1722 = vld [vmem:[%s1721] sm:$0xff]
      %v1723 = vld [vmem:[%s1721 + $0x8] sm:$0xff]
      %v1724 = vld [vmem:[%s1721 + $0x10] sm:$0xff]
      %v1725 = vld [vmem:[%s1721 + $0x18] sm:$0xff]
      %1726 = vadd.xlane.f32.xlu0 %v1712
      %v1727 = vpop.xlane.xlu0 %1726
      %1728 = vadd.xlane.f32.xlu0 %v1713
      %v1729 = vpop.xlane.xlu0 %1728
      %1730 = vadd.xlane.f32.xlu0 %v1714
      %v1731 = vpop.xlane.xlu0 %1730
      %1732 = vadd.xlane.f32.xlu0 %v1715
      %v1733 = vpop.xlane.xlu0 %1732
      %v1734 = vmul.f32 %v1712, %v1712
      %v1735 = vmul.f32 %v1713, %v1713
      %v1736 = vmul.f32 %v1714, %v1714
      %v1737 = vmul.f32 %v1715, %v1715
      %1738 = vadd.xlane.f32.xlu0 %v1734
      %v1739 = vpop.xlane.xlu0 %1738
      %1740 = vadd.xlane.f32.xlu0 %v1735
      %v1741 = vpop.xlane.xlu0 %1740
      %1742 = vadd.xlane.f32.xlu0 %v1736
      %v1743 = vpop.xlane.xlu0 %1742
      %1744 = vadd.xlane.f32.xlu0 %v1737
      %v1745 = vpop.xlane.xlu0 %1744
      %v1746 = vmul.f32 %v1727, %v468
      %v1747 = vmul.f32 %v1729, %v469
      %v1748 = vmul.f32 %v1731, %v470
      %v1749 = vmul.f32 %v1733, %v471
      %v1750 = vsel %vm760, %v1746, 0.0
      %v1751 = vsel %vm760, %v1747, 0.0
      %v1752 = vadd.f32 %v1750, %v1751
      %v1753 = vsel %vm760, %v1748, 0.0
      %v1754 = vadd.f32 %v1752, %v1753
      %v1755 = vsel %vm760, %v1749, 0.0
      %v1756 = vadd.f32 %v1754, %v1755
      %1757 = vadd.xlane.f32.xlu0 %v1756
      %v1758 = vpop.xlane.xlu0 %1757
      %v1759 = vrot.slane %v1758, 4
      %v1760 = vadd.f32 %v1758, %v1759
      %v1761 = vrot.slane %v1760, 2
      %v1762 = vadd.f32 %v1760, %v1761
      %v1763 = vrot.slane %v1762, 1
      %v1764 = vadd.f32 %v1762, %v1763
      %s1765 = vtos %v1764
      %v1766 = vstv %s1765
      %v1767 = vmul.f32 %v1766, 0.0009765625
      %v1768 = vmul.f32 %v1727, %v472
      %v1769 = vmul.f32 %v1729, %v473
      %v1770 = vmul.f32 %v1731, %v474
      %v1771 = vmul.f32 %v1733, %v475
      %v1772 = vsel %vm760, %v1768, 0.0
      %v1773 = vsel %vm760, %v1769, 0.0
      %v1774 = vadd.f32 %v1772, %v1773
      %v1775 = vsel %vm760, %v1770, 0.0
      %v1776 = vadd.f32 %v1774, %v1775
      %v1777 = vsel %vm760, %v1771, 0.0
      %v1778 = vadd.f32 %v1776, %v1777
      %1779 = vadd.xlane.f32.xlu0 %v1778
      %v1780 = vpop.xlane.xlu0 %1779
      %v1781 = vrot.slane %v1780, 4
      %v1782 = vadd.f32 %v1780, %v1781
      %v1783 = vrot.slane %v1782, 2
      %v1784 = vadd.f32 %v1782, %v1783
      %v1785 = vrot.slane %v1784, 1
      %v1786 = vadd.f32 %v1784, %v1785
      %s1787 = vtos %v1786
      %v1788 = vstv %s1787
      %v1789 = vmul.f32 %v1788, 0.0009765625
      %v1790 = vmul.f32 %v1739, %v468
      %v1791 = vmul.f32 %v1741, %v469
      %v1792 = vmul.f32 %v1743, %v470
      %v1793 = vmul.f32 %v1745, %v471
      %v1794 = vsel %vm760, %v1790, 0.0
      %v1795 = vsel %vm760, %v1791, 0.0
      %v1796 = vadd.f32 %v1794, %v1795
      %v1797 = vsel %vm760, %v1792, 0.0
      %v1798 = vadd.f32 %v1796, %v1797
      %v1799 = vsel %vm760, %v1793, 0.0
      %v1800 = vadd.f32 %v1798, %v1799
      %1801 = vadd.xlane.f32.xlu0 %v1800
      %v1802 = vpop.xlane.xlu0 %1801
      %v1803 = vrot.slane %v1802, 4
      %v1804 = vadd.f32 %v1802, %v1803
      %v1805 = vrot.slane %v1804, 2
      %v1806 = vadd.f32 %v1804, %v1805
      %v1807 = vrot.slane %v1806, 1
      %v1808 = vadd.f32 %v1806, %v1807
      %s1809 = vtos %v1808
      %v1810 = vstv %s1809
      %v1811 = vmul.f32 %v1810, 0.0009765625
      %v1812 = vmul.f32 %v1767, %v1767
      %v1813 = vsub.f32 %v1811, %v1812
      %v1814 = vmax.f32 %v1813, 0.0
      %v1815 = vmul.f32 %v1739, %v472
      %v1816 = vmul.f32 %v1741, %v473
      %v1817 = vmul.f32 %v1743, %v474
      %v1818 = vmul.f32 %v1745, %v475
      %v1819 = vsel %vm760, %v1815, 0.0
      %v1820 = vsel %vm760, %v1816, 0.0
      %v1821 = vadd.f32 %v1819, %v1820
      %v1822 = vsel %vm760, %v1817, 0.0
      %v1823 = vadd.f32 %v1821, %v1822
      %v1824 = vsel %vm760, %v1818, 0.0
      %v1825 = vadd.f32 %v1823, %v1824
      %1826 = vadd.xlane.f32.xlu0 %v1825
      %v1827 = vpop.xlane.xlu0 %1826
      %v1828 = vrot.slane %v1827, 4
      %v1829 = vadd.f32 %v1827, %v1828
      %v1830 = vrot.slane %v1829, 2
      %v1831 = vadd.f32 %v1829, %v1830
      %v1832 = vrot.slane %v1831, 1
      %v1833 = vadd.f32 %v1831, %v1832
      %s1834 = vtos %v1833
      %v1835 = vstv %s1834
      %v1836 = vmul.f32 %v1835, 0.0009765625
      %v1837 = vmul.f32 %v1789, %v1789
      %v1838 = vsub.f32 %v1836, %v1837
      %v1839 = vmax.f32 %v1838, 0.0
      %v1840 = vmul.f32 %v1767, %v468
      %v1841 = vmul.f32 %v1767, %v469
      %v1842 = vmul.f32 %v1767, %v470
      %v1843 = vmul.f32 %v1767, %v471
      %v1844 = vmul.f32 %v1789, %v472
      %v1845 = vmul.f32 %v1789, %v473
      %v1846 = vmul.f32 %v1789, %v474
      %v1847 = vmul.f32 %v1789, %v475
      %v1848 = vadd.f32 %v1840, %v1844
      %v1849 = vadd.f32 %v1841, %v1845
      %v1850 = vadd.f32 %v1842, %v1846
      %v1851 = vadd.f32 %v1843, %v1847
      %v1852 = vadd.f32 %v1814, 1e-05
      %v1853 = vrsqrt.pop %v1852
      %v1854 = vmul.f32 %v1853, %v1852
      %v1855 = vmul.f32 %v1854, %v1853
      %v1856 = vmul.f32 0.5, %v1855
      %v1857 = vsub.f32 1.5, %v1856
      %v1858 = vmul.f32 %v1853, %v1857
      %vm1859 = vweird.f32 %v1852
      %vm1860 = vweird.f32 %v1853
      %vm1861 = vmor %vm1859, %vm1860
      %v1862 = vsel %vm1861, %v1853, %v1858
      %v1863 = vmul.f32 %v1862, %v468
      %v1864 = vmul.f32 %v1862, %v469
      %v1865 = vmul.f32 %v1862, %v470
      %v1866 = vmul.f32 %v1862, %v471
      %v1867 = vadd.f32 %v1839, 1e-05
      %v1868 = vrsqrt.pop %v1867
      %v1869 = vmul.f32 %v1868, %v1867
      %v1870 = vmul.f32 %v1869, %v1868
      %v1871 = vmul.f32 0.5, %v1870
      %v1872 = vsub.f32 1.5, %v1871
      %v1873 = vmul.f32 %v1868, %v1872
      %vm1874 = vweird.f32 %v1867
      %vm1875 = vweird.f32 %v1868
      %vm1876 = vmor %vm1874, %vm1875
      %v1877 = vsel %vm1876, %v1868, %v1873
      %v1878 = vmul.f32 %v1877, %v472
      %v1879 = vmul.f32 %v1877, %v473
      %v1880 = vmul.f32 %v1877, %v474
      %v1881 = vmul.f32 %v1877, %v475
      %v1882 = vadd.f32 %v1863, %v1878
      %v1883 = vadd.f32 %v1864, %v1879
      %v1884 = vadd.f32 %v1865, %v1880
      %v1885 = vadd.f32 %v1866, %v1881
      %v1886 = vsub.f32 %v1712, %v1848
      %v1887 = vsub.f32 %v1713, %v1849
      %v1888 = vsub.f32 %v1714, %v1850
      %v1889 = vsub.f32 %v1715, %v1851
      %v1890 = vmul.f32 %v1886, %v1882
      %v1891 = vmul.f32 %v1887, %v1883
      %v1892 = vmul.f32 %v1888, %v1884
      %v1893 = vmul.f32 %v1889, %v1885
      %1895 = vset.pattern.permute.xlu0 0
      %1896 = vperm.xlu0 %1895, %v1717
      %v1897 = vpop.permute.xlu0 %1896
      %1900 = vset.pattern.permute.xlu0 0
      %1901 = vperm.xlu0 %1900, %v1718
      %v1902 = vpop.permute.xlu0 %1901
      %1905 = vset.pattern.permute.xlu0 0
      %1906 = vperm.xlu0 %1905, %v1719
      %v1907 = vpop.permute.xlu0 %1906
      %1910 = vset.pattern.permute.xlu0 0
      %1911 = vperm.xlu0 %1910, %v1720
      %v1912 = vpop.permute.xlu0 %1911
      %v1914 = vmul.f32 %v1890, %v1897
      %v1915 = vmul.f32 %v1891, %v1902
      %v1916 = vmul.f32 %v1892, %v1907
      %v1917 = vmul.f32 %v1893, %v1912
      %1919 = vset.pattern.permute.xlu0 0
      %1920 = vperm.xlu0 %1919, %v1722
      %v1921 = vpop.permute.xlu0 %1920
      %1924 = vset.pattern.permute.xlu0 0
      %1925 = vperm.xlu0 %1924, %v1723
      %v1926 = vpop.permute.xlu0 %1925
      %1929 = vset.pattern.permute.xlu0 0
      %1930 = vperm.xlu0 %1929, %v1724
      %v1931 = vpop.permute.xlu0 %1930
      %1934 = vset.pattern.permute.xlu0 0
      %1935 = vperm.xlu0 %1934, %v1725
      %v1936 = vpop.permute.xlu0 %1935
      %v1938 = vadd.f32 %v1914, %v1921
      %v1939 = vadd.f32 %v1915, %v1926
      %v1940 = vadd.f32 %v1916, %v1931
      %v1941 = vadd.f32 %v1917, %v1936
      %vm1942 = vcmp.ge.f32.partialorder %v1938, 0.0
      %vm1943 = vcmp.ge.f32.partialorder %v1939, 0.0
      %vm1944 = vcmp.ge.f32.partialorder %v1940, 0.0
      %vm1945 = vcmp.ge.f32.partialorder %v1941, 0.0
      %v1946 = vmul.f32 %v1938, 0.2
      %v1947 = vmul.f32 %v1939, 0.2
      %v1948 = vmul.f32 %v1940, 0.2
      %v1949 = vmul.f32 %v1941, 0.2
      %v1950 = vsel %vm1942, %v1938, %v1946
      %v1951 = vsel %vm1943, %v1939, %v1947
      %v1952 = vsel %vm1944, %v1940, %v1948
      %v1953 = vsel %vm1945, %v1941, %v1949
      %1954 = vrot.lane.b32.xlu0 %v1950, 9
      %v1955 = vpop.permute.xlu0 %1954
      %1956 = vrot.lane.b32.xlu0 %v1951, 9
      %v1957 = vpop.permute.xlu0 %1956
      %1958 = vrot.lane.b32.xlu0 %v1952, 9
      %v1959 = vpop.permute.xlu0 %1958
      %1960 = vrot.lane.b32.xlu0 %v1953, 9
      %v1961 = vpop.permute.xlu0 %1960
      %v1962 = vld [vmem:[%s9] sm:$0x1]
      %v1964 = vperm.slane %v1962, 0
      %v1966 = vmul.f32 %v1955, %v1964
      %v1967 = vmul.f32 %v1957, %v1964
      %v1968 = vmul.f32 %v1959, %v1964
      %v1969 = vmul.f32 %v1961, %v1964
      %1970 = vrot.lane.b32.xlu0 %v1950, 8
      %v1971 = vpop.permute.xlu0 %1970
      %1972 = vrot.lane.b32.xlu0 %v1951, 8
      %v1973 = vpop.permute.xlu0 %1972
      %1974 = vrot.lane.b32.xlu0 %v1952, 8
      %v1975 = vpop.permute.xlu0 %1974
      %1976 = vrot.lane.b32.xlu0 %v1953, 8
      %v1977 = vpop.permute.xlu0 %1976
      %s1978 = scalar_lea.vmem %s9, 1
      %v1979 = vld [vmem:[%s1978] sm:$0x1]
      %v1981 = vperm.slane %v1979, 0
      %v1983 = vmul.f32 %v1971, %v1981
      %v1984 = vmul.f32 %v1973, %v1981
      %v1985 = vmul.f32 %v1975, %v1981
      %v1986 = vmul.f32 %v1977, %v1981
      %1987 = vrot.lane.b32.xlu0 %v1950, 7
      %v1988 = vpop.permute.xlu0 %1987
      %1989 = vrot.lane.b32.xlu0 %v1951, 7
      %v1990 = vpop.permute.xlu0 %1989
      %1991 = vrot.lane.b32.xlu0 %v1952, 7
      %v1992 = vpop.permute.xlu0 %1991
      %1993 = vrot.lane.b32.xlu0 %v1953, 7
      %v1994 = vpop.permute.xlu0 %1993
      %s1995 = scalar_lea.vmem %s9, 2
      %v1996 = vld [vmem:[%s1995] sm:$0x1]
      %v1998 = vperm.slane %v1996, 0
      %v2000 = vmul.f32 %v1988, %v1998
      %v2001 = vmul.f32 %v1990, %v1998
      %v2002 = vmul.f32 %v1992, %v1998
      %v2003 = vmul.f32 %v1994, %v1998
      %2004 = vrot.lane.b32.xlu0 %v1950, 1
      %v2005 = vpop.permute.xlu0 %2004
      %2006 = vrot.lane.b32.xlu0 %v1951, 1
      %v2007 = vpop.permute.xlu0 %2006
      %2008 = vrot.lane.b32.xlu0 %v1952, 1
      %v2009 = vpop.permute.xlu0 %2008
      %2010 = vrot.lane.b32.xlu0 %v1953, 1
      %v2011 = vpop.permute.xlu0 %2010
      %s2012 = scalar_lea.vmem %s9, 3
      %v2013 = vld [vmem:[%s2012] sm:$0x1]
      %v2015 = vperm.slane %v2013, 0
      %v2017 = vmul.f32 %v2005, %v2015
      %v2018 = vmul.f32 %v2007, %v2015
      %v2019 = vmul.f32 %v2009, %v2015
      %v2020 = vmul.f32 %v2011, %v2015
      %s2021 = scalar_lea.vmem %s9, 4
      %v2022 = vld [vmem:[%s2021] sm:$0x1]
      %v2024 = vperm.slane %v2022, 0
      %v2026 = vmul.f32 %v1950, %v2024
      %v2027 = vmul.f32 %v1951, %v2024
      %v2028 = vmul.f32 %v1952, %v2024
      %v2029 = vmul.f32 %v1953, %v2024
      %2030 = vrot.lane.b32.xlu0 %v1950, 127
      %v2031 = vpop.permute.xlu0 %2030
      %2032 = vrot.lane.b32.xlu0 %v1951, 127
      %v2033 = vpop.permute.xlu0 %2032
      %2034 = vrot.lane.b32.xlu0 %v1952, 127
      %v2035 = vpop.permute.xlu0 %2034
      %2036 = vrot.lane.b32.xlu0 %v1953, 127
      %v2037 = vpop.permute.xlu0 %2036
      %s2038 = scalar_lea.vmem %s9, 5
      %v2039 = vld [vmem:[%s2038] sm:$0x1]
      %v2041 = vperm.slane %v2039, 0
      %v2043 = vmul.f32 %v2031, %v2041
      %v2044 = vmul.f32 %v2033, %v2041
      %v2045 = vmul.f32 %v2035, %v2041
      %v2046 = vmul.f32 %v2037, %v2041
      %2047 = vrot.lane.b32.xlu0 %v1950, 121
      %v2048 = vpop.permute.xlu0 %2047
      %2049 = vrot.lane.b32.xlu0 %v1951, 121
      %v2050 = vpop.permute.xlu0 %2049
      %2051 = vrot.lane.b32.xlu0 %v1952, 121
      %v2052 = vpop.permute.xlu0 %2051
      %2053 = vrot.lane.b32.xlu0 %v1953, 121
      %v2054 = vpop.permute.xlu0 %2053
      %s2055 = scalar_lea.vmem %s9, 6
      %v2056 = vld [vmem:[%s2055] sm:$0x1]
      %v2058 = vperm.slane %v2056, 0
      %v2060 = vmul.f32 %v2048, %v2058
      %v2061 = vmul.f32 %v2050, %v2058
      %v2062 = vmul.f32 %v2052, %v2058
      %v2063 = vmul.f32 %v2054, %v2058
      %2064 = vrot.lane.b32.xlu0 %v1950, 120
      %v2065 = vpop.permute.xlu0 %2064
      %2066 = vrot.lane.b32.xlu0 %v1951, 120
      %v2067 = vpop.permute.xlu0 %2066
      %2068 = vrot.lane.b32.xlu0 %v1952, 120
      %v2069 = vpop.permute.xlu0 %2068
      %2070 = vrot.lane.b32.xlu0 %v1953, 120
      %v2071 = vpop.permute.xlu0 %2070
      %s2072 = scalar_lea.vmem %s9, 7
      %v2073 = vld [vmem:[%s2072] sm:$0x1]
      %v2075 = vperm.slane %v2073, 0
      %v2077 = vmul.f32 %v2065, %v2075
      %v2078 = vmul.f32 %v2067, %v2075
      %v2079 = vmul.f32 %v2069, %v2075
      %v2080 = vmul.f32 %v2071, %v2075
      %2081 = vrot.lane.b32.xlu0 %v1950, 119
      %v2082 = vpop.permute.xlu0 %2081
      %2083 = vrot.lane.b32.xlu0 %v1951, 119
      %v2084 = vpop.permute.xlu0 %2083
      %2085 = vrot.lane.b32.xlu0 %v1952, 119
      %v2086 = vpop.permute.xlu0 %2085
      %2087 = vrot.lane.b32.xlu0 %v1953, 119
      %v2088 = vpop.permute.xlu0 %2087
      %s2089 = scalar_lea.vmem %s9, 8
      %v2090 = vld [vmem:[%s2089] sm:$0x1]
      %v2092 = vperm.slane %v2090, 0
      %v2094 = vmul.f32 %v2082, %v2092
      %v2095 = vmul.f32 %v2084, %v2092
      %v2096 = vmul.f32 %v2086, %v2092
      %v2097 = vmul.f32 %v2088, %v2092
      %v2098 = vpack.c.bf16 %v1967, %v1966
      %v2099 = vpack.c.bf16 %v1969, %v1968
      %v2100 = vpack.c.bf16 %v1984, %v1983
      %v2101 = vpack.c.bf16 %v1986, %v1985
      %v2102 = vpack.c.bf16 %v2001, %v2000
      %v2103 = vpack.c.bf16 %v2003, %v2002
      %v2104 = vpack.c.bf16 %v2018, %v2017
      %v2105 = vpack.c.bf16 %v2020, %v2019
      %v2106 = vpack.c.bf16 %v2027, %v2026
      %v2107 = vpack.c.bf16 %v2029, %v2028
      %v2108 = vpack.c.bf16 %v2044, %v2043
      %v2109 = vpack.c.bf16 %v2046, %v2045
      %v2110 = vpack.c.bf16 %v2061, %v2060
      %v2111 = vpack.c.bf16 %v2063, %v2062
      %v2112 = vpack.c.bf16 %v2078, %v2077
      %v2113 = vpack.c.bf16 %v2080, %v2079
      %v2114 = vpack.c.bf16 %v2095, %v2094
      %v2115 = vpack.c.bf16 %v2097, %v2096
      %v2116 = vld [vmem:[%s3] sm:$0xff]
      %v2117 = vld [vmem:[%s3 + $0x8] sm:$0xf]
      %v2118 = vld [vmem:[%s3 + $0xc] sm:$0xff]
      %v2119 = vld [vmem:[%s3 + $0x14] sm:$0xf]
      %v2120 = vld [vmem:[%s3 + $0x18] sm:$0xff]
      %v2121 = vld [vmem:[%s3 + $0x20] sm:$0xf]
      %v2122 = vld [vmem:[%s3 + $0x24] sm:$0xff]
      %v2123 = vld [vmem:[%s3 + $0x2c] sm:$0xf]
      %s2124 = scalar_lea.vmem %s5, 64
      %v2125 = vld [vmem:[%s2124] sm:$0xff]
      %v2126 = vld [vmem:[%s2124 + $0x8] sm:$0xff]
      %v2127 = vld [vmem:[%s2124 + $0x10] sm:$0xff]
      %v2128 = vld [vmem:[%s2124 + $0x18] sm:$0xff]
      %2130 = vset.pattern.permute.xlu0 0
      %2131 = vperm.xlu0 %2130, %v2125
      %v2132 = vpop.permute.xlu0 %2131
      %2135 = vset.pattern.permute.xlu0 0
      %2136 = vperm.xlu0 %2135, %v2126
      %v2137 = vpop.permute.xlu0 %2136
      %2140 = vset.pattern.permute.xlu0 0
      %2141 = vperm.xlu0 %2140, %v2127
      %v2142 = vpop.permute.xlu0 %2141
      %2145 = vset.pattern.permute.xlu0 0
      %2146 = vperm.xlu0 %2145, %v2128
      %v2147 = vpop.permute.xlu0 %2146
      %v2157 = vunpack.c.l.b16 %v2116
      %v2158 = vunpack.c.h.b16 %v2116
      %v2159 = vunpack.c.l.b16 %v2117
      %v2160 = vunpack.c.l.b16 %v2118
      %v2161 = vunpack.c.h.b16 %v2118
      %v2162 = vunpack.c.l.b16 %v2119
      %v2163 = vunpack.c.l.b16 %v2120
      %v2164 = vunpack.c.h.b16 %v2120
      %v2165 = vunpack.c.l.b16 %v2121
      %v2166 = vunpack.c.l.b16 %v2122
      %v2167 = vunpack.c.h.b16 %v2122
      %v2168 = vunpack.c.l.b16 %v2123
      %v2169 = vpack.c.b16 %v2160, %v2157
      %v2170 = vpack.c.b16 %v2161, %v2158
      %v2171 = vpack.c.b16 %v2162, %v2159
      %v2172 = vpack.c.b16 %v2166, %v2163
      %v2173 = vpack.c.b16 %v2167, %v2164
      %v2174 = vpack.c.b16 %v2168, %v2165
      %v2180 = vsel %vm1393, %v2171, 0
      %v2183 = vsel %vm1393, %v2174, 0
      %2185 = vmatpush.bf16.msra.mxu0 %v2105
      %2186 = vmatpush.bf16.msra.mxu0 %v2104
      %2187 = vmatpush.bf16.msra.mxu0 %v2103
      %2188 = vmatpush.bf16.msra.mxu0 %v2102
      %2189 = vmatpush.bf16.msra.mxu0 %v2101
      %2190 = vmatpush.bf16.msra.mxu0 %v2100
      %2191 = vmatpush.bf16.msra.mxu0 %v2099
      %2192 = vmatpush.bf16.msra.mxu0 %v2098
      %2193 = vmatmul.bf16.gmra.mxu0 %v2169
      %v2194 = vpop.f32.mrf.mxu0
      %v2195 = vadd.f32 %v2132, %v2194
      %v2196 = vpop.f32.mrf.mxu0
      %v2197 = vadd.f32 %v2137, %v2196
      %2198 = vmatmul.bf16.gmra.mxu0 %v2172
      %v2199 = vpop.f32.mrf.mxu0
      %v2200 = vadd.f32 %v2142, %v2199
      %v2201 = vpop.f32.mrf.mxu0
      %v2202 = vadd.f32 %v2147, %v2201
      %2203 = vdwg.mxu0
      %2204 = vmatpush.bf16.msra.mxu0 %v2113
      %2205 = vmatpush.bf16.msra.mxu0 %v2112
      %2206 = vmatpush.bf16.msra.mxu0 %v2111
      %2207 = vmatpush.bf16.msra.mxu0 %v2110
      %2208 = vmatpush.bf16.msra.mxu0 %v2109
      %2209 = vmatpush.bf16.msra.mxu0 %v2108
      %2210 = vmatpush.bf16.msra.mxu0 %v2107
      %2211 = vmatpush.bf16.msra.mxu0 %v2106
      %2212 = vmatmul.bf16.gmra.mxu0 %v2170
      %v2213 = vpop.f32.mrf.mxu0
      %v2214 = vadd.f32 %v2195, %v2213
      %v2215 = vpop.f32.mrf.mxu0
      %v2216 = vadd.f32 %v2197, %v2215
      %2217 = vmatmul.bf16.gmra.mxu0 %v2173
      %v2218 = vpop.f32.mrf.mxu0
      %v2219 = vadd.f32 %v2200, %v2218
      %v2220 = vpop.f32.mrf.mxu0
      %v2221 = vadd.f32 %v2202, %v2220
      %2222 = vdwg.mxu0
      %2223 = vmatpush.bf16.msra.mxu0 0
      %2224 = vmatpush.bf16.msra.mxu0 0
      %2225 = vmatpush.bf16.msra.mxu0 0
      %2226 = vmatpush.bf16.msra.mxu0 0
      %2227 = vmatpush.bf16.msra.mxu0 0
      %2228 = vmatpush.bf16.msra.mxu0 0
      %2229 = vmatpush.bf16.msra.mxu0 %v2115
      %2230 = vmatpush.bf16.msra.mxu0 %v2114
      %2231 = vmatmul.bf16.gmra.mxu0 %v2180
      %v2232 = vpop.f32.mrf.mxu0
      %v2233 = vadd.f32 %v2214, %v2232
      %v2234 = vpop.f32.mrf.mxu0
      %v2235 = vadd.f32 %v2216, %v2234
      %2236 = vmatmul.bf16.gmra.mxu0 %v2183
      %v2237 = vpop.f32.mrf.mxu0
      %v2238 = vadd.f32 %v2219, %v2237
      %v2239 = vpop.f32.mrf.mxu0
      %v2240 = vadd.f32 %v2221, %v2239
      %2241 = vdwg.mxu0
      %v2242 = vmul.f32 %v2233, %v1711
      %v2243 = vmul.f32 %v2235, %v1711
      %v2244 = vmul.f32 %v2238, %v1711
      %v2245 = vmul.f32 %v2240, %v1711
      %s2246 = scalar_lea.vmem %s6, 64
      %v2247 = vld [vmem:[%s2246] sm:$0xff]
      %v2248 = vld [vmem:[%s2246 + $0x8] sm:$0xff]
      %v2249 = vld [vmem:[%s2246 + $0x10] sm:$0xff]
      %v2250 = vld [vmem:[%s2246 + $0x18] sm:$0xff]
      %s2251 = scalar_lea.vmem %s7, 64
      %v2252 = vld [vmem:[%s2251] sm:$0xff]
      %v2253 = vld [vmem:[%s2251 + $0x8] sm:$0xff]
      %v2254 = vld [vmem:[%s2251 + $0x10] sm:$0xff]
      %v2255 = vld [vmem:[%s2251 + $0x18] sm:$0xff]
      %2256 = vadd.xlane.f32.xlu0 %v2242
      %v2257 = vpop.xlane.xlu0 %2256
      %2258 = vadd.xlane.f32.xlu0 %v2243
      %v2259 = vpop.xlane.xlu0 %2258
      %2260 = vadd.xlane.f32.xlu0 %v2244
      %v2261 = vpop.xlane.xlu0 %2260
      %2262 = vadd.xlane.f32.xlu0 %v2245
      %v2263 = vpop.xlane.xlu0 %2262
      %v2264 = vmul.f32 %v2242, %v2242
      %v2265 = vmul.f32 %v2243, %v2243
      %v2266 = vmul.f32 %v2244, %v2244
      %v2267 = vmul.f32 %v2245, %v2245
      %2268 = vadd.xlane.f32.xlu0 %v2264
      %v2269 = vpop.xlane.xlu0 %2268
      %2270 = vadd.xlane.f32.xlu0 %v2265
      %v2271 = vpop.xlane.xlu0 %2270
      %2272 = vadd.xlane.f32.xlu0 %v2266
      %v2273 = vpop.xlane.xlu0 %2272
      %2274 = vadd.xlane.f32.xlu0 %v2267
      %v2275 = vpop.xlane.xlu0 %2274
      %v2276 = vmul.f32 %v2257, %v468
      %v2277 = vmul.f32 %v2259, %v469
      %v2278 = vmul.f32 %v2261, %v470
      %v2279 = vmul.f32 %v2263, %v471
      %v2280 = vsel %vm760, %v2276, 0.0
      %v2281 = vsel %vm760, %v2277, 0.0
      %v2282 = vadd.f32 %v2280, %v2281
      %v2283 = vsel %vm760, %v2278, 0.0
      %v2284 = vadd.f32 %v2282, %v2283
      %v2285 = vsel %vm760, %v2279, 0.0
      %v2286 = vadd.f32 %v2284, %v2285
      %2287 = vadd.xlane.f32.xlu0 %v2286
      %v2288 = vpop.xlane.xlu0 %2287
      %v2289 = vrot.slane %v2288, 4
      %v2290 = vadd.f32 %v2288, %v2289
      %v2291 = vrot.slane %v2290, 2
      %v2292 = vadd.f32 %v2290, %v2291
      %v2293 = vrot.slane %v2292, 1
      %v2294 = vadd.f32 %v2292, %v2293
      %s2295 = vtos %v2294
      %v2296 = vstv %s2295
      %v2297 = vmul.f32 %v2296, 0.0009765625
      %v2298 = vmul.f32 %v2257, %v472
      %v2299 = vmul.f32 %v2259, %v473
      %v2300 = vmul.f32 %v2261, %v474
      %v2301 = vmul.f32 %v2263, %v475
      %v2302 = vsel %vm760, %v2298, 0.0
      %v2303 = vsel %vm760, %v2299, 0.0
      %v2304 = vadd.f32 %v2302, %v2303
      %v2305 = vsel %vm760, %v2300, 0.0
      %v2306 = vadd.f32 %v2304, %v2305
      %v2307 = vsel %vm760, %v2301, 0.0
      %v2308 = vadd.f32 %v2306, %v2307
      %2309 = vadd.xlane.f32.xlu0 %v2308
      %v2310 = vpop.xlane.xlu0 %2309
      %v2311 = vrot.slane %v2310, 4
      %v2312 = vadd.f32 %v2310, %v2311
      %v2313 = vrot.slane %v2312, 2
      %v2314 = vadd.f32 %v2312, %v2313
      %v2315 = vrot.slane %v2314, 1
      %v2316 = vadd.f32 %v2314, %v2315
      %s2317 = vtos %v2316
      %v2318 = vstv %s2317
      %v2319 = vmul.f32 %v2318, 0.0009765625
      %v2320 = vmul.f32 %v2269, %v468
      %v2321 = vmul.f32 %v2271, %v469
      %v2322 = vmul.f32 %v2273, %v470
      %v2323 = vmul.f32 %v2275, %v471
      %v2324 = vsel %vm760, %v2320, 0.0
      %v2325 = vsel %vm760, %v2321, 0.0
      %v2326 = vadd.f32 %v2324, %v2325
      %v2327 = vsel %vm760, %v2322, 0.0
      %v2328 = vadd.f32 %v2326, %v2327
      %v2329 = vsel %vm760, %v2323, 0.0
      %v2330 = vadd.f32 %v2328, %v2329
      %2331 = vadd.xlane.f32.xlu0 %v2330
      %v2332 = vpop.xlane.xlu0 %2331
      %v2333 = vrot.slane %v2332, 4
      %v2334 = vadd.f32 %v2332, %v2333
      %v2335 = vrot.slane %v2334, 2
      %v2336 = vadd.f32 %v2334, %v2335
      %v2337 = vrot.slane %v2336, 1
      %v2338 = vadd.f32 %v2336, %v2337
      %s2339 = vtos %v2338
      %v2340 = vstv %s2339
      %v2341 = vmul.f32 %v2340, 0.0009765625
      %v2342 = vmul.f32 %v2297, %v2297
      %v2343 = vsub.f32 %v2341, %v2342
      %v2344 = vmax.f32 %v2343, 0.0
      %v2345 = vmul.f32 %v2269, %v472
      %v2346 = vmul.f32 %v2271, %v473
      %v2347 = vmul.f32 %v2273, %v474
      %v2348 = vmul.f32 %v2275, %v475
      %v2349 = vsel %vm760, %v2345, 0.0
      %v2350 = vsel %vm760, %v2346, 0.0
      %v2351 = vadd.f32 %v2349, %v2350
      %v2352 = vsel %vm760, %v2347, 0.0
      %v2353 = vadd.f32 %v2351, %v2352
      %v2354 = vsel %vm760, %v2348, 0.0
      %v2355 = vadd.f32 %v2353, %v2354
      %2356 = vadd.xlane.f32.xlu0 %v2355
      %v2357 = vpop.xlane.xlu0 %2356
      %v2358 = vrot.slane %v2357, 4
      %v2359 = vadd.f32 %v2357, %v2358
      %v2360 = vrot.slane %v2359, 2
      %v2361 = vadd.f32 %v2359, %v2360
      %v2362 = vrot.slane %v2361, 1
      %v2363 = vadd.f32 %v2361, %v2362
      %s2364 = vtos %v2363
      %v2365 = vstv %s2364
      %v2366 = vmul.f32 %v2365, 0.0009765625
      %v2367 = vmul.f32 %v2319, %v2319
      %v2368 = vsub.f32 %v2366, %v2367
      %v2369 = vmax.f32 %v2368, 0.0
      %v2370 = vmul.f32 %v2297, %v468
      %v2371 = vmul.f32 %v2297, %v469
      %v2372 = vmul.f32 %v2297, %v470
      %v2373 = vmul.f32 %v2297, %v471
      %v2374 = vmul.f32 %v2319, %v472
      %v2375 = vmul.f32 %v2319, %v473
      %v2376 = vmul.f32 %v2319, %v474
      %v2377 = vmul.f32 %v2319, %v475
      %v2378 = vadd.f32 %v2370, %v2374
      %v2379 = vadd.f32 %v2371, %v2375
      %v2380 = vadd.f32 %v2372, %v2376
      %v2381 = vadd.f32 %v2373, %v2377
      %v2382 = vadd.f32 %v2344, 1e-05
      %v2383 = vrsqrt.pop %v2382
      %v2384 = vmul.f32 %v2383, %v2382
      %v2385 = vmul.f32 %v2384, %v2383
      %v2386 = vmul.f32 0.5, %v2385
      %v2387 = vsub.f32 1.5, %v2386
      %v2388 = vmul.f32 %v2383, %v2387
      %vm2389 = vweird.f32 %v2382
      %vm2390 = vweird.f32 %v2383
      %vm2391 = vmor %vm2389, %vm2390
      %v2392 = vsel %vm2391, %v2383, %v2388
      %v2393 = vmul.f32 %v2392, %v468
      %v2394 = vmul.f32 %v2392, %v469
      %v2395 = vmul.f32 %v2392, %v470
      %v2396 = vmul.f32 %v2392, %v471
      %v2397 = vadd.f32 %v2369, 1e-05
      %v2398 = vrsqrt.pop %v2397
      %v2399 = vmul.f32 %v2398, %v2397
      %v2400 = vmul.f32 %v2399, %v2398
      %v2401 = vmul.f32 0.5, %v2400
      %v2402 = vsub.f32 1.5, %v2401
      %v2403 = vmul.f32 %v2398, %v2402
      %vm2404 = vweird.f32 %v2397
      %vm2405 = vweird.f32 %v2398
      %vm2406 = vmor %vm2404, %vm2405
      %v2407 = vsel %vm2406, %v2398, %v2403
      %v2408 = vmul.f32 %v2407, %v472
      %v2409 = vmul.f32 %v2407, %v473
      %v2410 = vmul.f32 %v2407, %v474
      %v2411 = vmul.f32 %v2407, %v475
      %v2412 = vadd.f32 %v2393, %v2408
      %v2413 = vadd.f32 %v2394, %v2409
      %v2414 = vadd.f32 %v2395, %v2410
      %v2415 = vadd.f32 %v2396, %v2411
      %v2416 = vsub.f32 %v2242, %v2378
      %v2417 = vsub.f32 %v2243, %v2379
      %v2418 = vsub.f32 %v2244, %v2380
      %v2419 = vsub.f32 %v2245, %v2381
      %v2420 = vmul.f32 %v2416, %v2412
      %v2421 = vmul.f32 %v2417, %v2413
      %v2422 = vmul.f32 %v2418, %v2414
      %v2423 = vmul.f32 %v2419, %v2415
      %2425 = vset.pattern.permute.xlu0 0
      %2426 = vperm.xlu0 %2425, %v2247
      %v2427 = vpop.permute.xlu0 %2426
      %2430 = vset.pattern.permute.xlu0 0
      %2431 = vperm.xlu0 %2430, %v2248
      %v2432 = vpop.permute.xlu0 %2431
      %2435 = vset.pattern.permute.xlu0 0
      %2436 = vperm.xlu0 %2435, %v2249
      %v2437 = vpop.permute.xlu0 %2436
      %2440 = vset.pattern.permute.xlu0 0
      %2441 = vperm.xlu0 %2440, %v2250
      %v2442 = vpop.permute.xlu0 %2441
      %v2444 = vmul.f32 %v2420, %v2427
      %v2445 = vmul.f32 %v2421, %v2432
      %v2446 = vmul.f32 %v2422, %v2437
      %v2447 = vmul.f32 %v2423, %v2442
      %2449 = vset.pattern.permute.xlu0 0
      %2450 = vperm.xlu0 %2449, %v2252
      %v2451 = vpop.permute.xlu0 %2450
      %2454 = vset.pattern.permute.xlu0 0
      %2455 = vperm.xlu0 %2454, %v2253
      %v2456 = vpop.permute.xlu0 %2455
      %2459 = vset.pattern.permute.xlu0 0
      %2460 = vperm.xlu0 %2459, %v2254
      %v2461 = vpop.permute.xlu0 %2460
      %2464 = vset.pattern.permute.xlu0 0
      %2465 = vperm.xlu0 %2464, %v2255
      %v2466 = vpop.permute.xlu0 %2465
      %v2468 = vadd.f32 %v2444, %v2451
      %v2469 = vadd.f32 %v2445, %v2456
      %v2470 = vadd.f32 %v2446, %v2461
      %v2471 = vadd.f32 %v2447, %v2466
      %vm2472 = vcmp.ge.f32.partialorder %v2468, 0.0
      %vm2473 = vcmp.ge.f32.partialorder %v2469, 0.0
      %vm2474 = vcmp.ge.f32.partialorder %v2470, 0.0
      %vm2475 = vcmp.ge.f32.partialorder %v2471, 0.0
      %v2476 = vmul.f32 %v2468, 0.2
      %v2477 = vmul.f32 %v2469, 0.2
      %v2478 = vmul.f32 %v2470, 0.2
      %v2479 = vmul.f32 %v2471, 0.2
      %v2480 = vsel %vm2472, %v2468, %v2476
      %v2481 = vsel %vm2473, %v2469, %v2477
      %v2482 = vsel %vm2474, %v2470, %v2478
      %v2483 = vsel %vm2475, %v2471, %v2479
      %2484 = vrot.lane.b32.xlu0 %v2480, 9
      %v2485 = vpop.permute.xlu0 %2484
      %2486 = vrot.lane.b32.xlu0 %v2481, 9
      %v2487 = vpop.permute.xlu0 %2486
      %2488 = vrot.lane.b32.xlu0 %v2482, 9
      %v2489 = vpop.permute.xlu0 %2488
      %2490 = vrot.lane.b32.xlu0 %v2483, 9
      %v2491 = vpop.permute.xlu0 %2490
      %v2492 = vmul.f32 %v2485, %v1964
      %v2493 = vmul.f32 %v2487, %v1964
      %v2494 = vmul.f32 %v2489, %v1964
      %v2495 = vmul.f32 %v2491, %v1964
      %2496 = vrot.lane.b32.xlu0 %v2480, 8
      %v2497 = vpop.permute.xlu0 %2496
      %2498 = vrot.lane.b32.xlu0 %v2481, 8
      %v2499 = vpop.permute.xlu0 %2498
      %2500 = vrot.lane.b32.xlu0 %v2482, 8
      %v2501 = vpop.permute.xlu0 %2500
      %2502 = vrot.lane.b32.xlu0 %v2483, 8
      %v2503 = vpop.permute.xlu0 %2502
      %v2504 = vmul.f32 %v2497, %v1981
      %v2505 = vmul.f32 %v2499, %v1981
      %v2506 = vmul.f32 %v2501, %v1981
      %v2507 = vmul.f32 %v2503, %v1981
      %2508 = vrot.lane.b32.xlu0 %v2480, 7
      %v2509 = vpop.permute.xlu0 %2508
      %2510 = vrot.lane.b32.xlu0 %v2481, 7
      %v2511 = vpop.permute.xlu0 %2510
      %2512 = vrot.lane.b32.xlu0 %v2482, 7
      %v2513 = vpop.permute.xlu0 %2512
      %2514 = vrot.lane.b32.xlu0 %v2483, 7
      %v2515 = vpop.permute.xlu0 %2514
      %v2516 = vmul.f32 %v2509, %v1998
      %v2517 = vmul.f32 %v2511, %v1998
      %v2518 = vmul.f32 %v2513, %v1998
      %v2519 = vmul.f32 %v2515, %v1998
      %2520 = vrot.lane.b32.xlu0 %v2480, 1
      %v2521 = vpop.permute.xlu0 %2520
      %2522 = vrot.lane.b32.xlu0 %v2481, 1
      %v2523 = vpop.permute.xlu0 %2522
      %2524 = vrot.lane.b32.xlu0 %v2482, 1
      %v2525 = vpop.permute.xlu0 %2524
      %2526 = vrot.lane.b32.xlu0 %v2483, 1
      %v2527 = vpop.permute.xlu0 %2526
      %v2528 = vmul.f32 %v2521, %v2015
      %v2529 = vmul.f32 %v2523, %v2015
      %v2530 = vmul.f32 %v2525, %v2015
      %v2531 = vmul.f32 %v2527, %v2015
      %v2532 = vmul.f32 %v2480, %v2024
      %v2533 = vmul.f32 %v2481, %v2024
      %v2534 = vmul.f32 %v2482, %v2024
      %v2535 = vmul.f32 %v2483, %v2024
      %2536 = vrot.lane.b32.xlu0 %v2480, 127
      %v2537 = vpop.permute.xlu0 %2536
      %2538 = vrot.lane.b32.xlu0 %v2481, 127
      %v2539 = vpop.permute.xlu0 %2538
      %2540 = vrot.lane.b32.xlu0 %v2482, 127
      %v2541 = vpop.permute.xlu0 %2540
      %2542 = vrot.lane.b32.xlu0 %v2483, 127
      %v2543 = vpop.permute.xlu0 %2542
      %v2544 = vmul.f32 %v2537, %v2041
      %v2545 = vmul.f32 %v2539, %v2041
      %v2546 = vmul.f32 %v2541, %v2041
      %v2547 = vmul.f32 %v2543, %v2041
      %2548 = vrot.lane.b32.xlu0 %v2480, 121
      %v2549 = vpop.permute.xlu0 %2548
      %2550 = vrot.lane.b32.xlu0 %v2481, 121
      %v2551 = vpop.permute.xlu0 %2550
      %2552 = vrot.lane.b32.xlu0 %v2482, 121
      %v2553 = vpop.permute.xlu0 %2552
      %2554 = vrot.lane.b32.xlu0 %v2483, 121
      %v2555 = vpop.permute.xlu0 %2554
      %v2556 = vmul.f32 %v2549, %v2058
      %v2557 = vmul.f32 %v2551, %v2058
      %v2558 = vmul.f32 %v2553, %v2058
      %v2559 = vmul.f32 %v2555, %v2058
      %2560 = vrot.lane.b32.xlu0 %v2480, 120
      %v2561 = vpop.permute.xlu0 %2560
      %2562 = vrot.lane.b32.xlu0 %v2481, 120
      %v2563 = vpop.permute.xlu0 %2562
      %2564 = vrot.lane.b32.xlu0 %v2482, 120
      %v2565 = vpop.permute.xlu0 %2564
      %2566 = vrot.lane.b32.xlu0 %v2483, 120
      %v2567 = vpop.permute.xlu0 %2566
      %v2568 = vmul.f32 %v2561, %v2075
      %v2569 = vmul.f32 %v2563, %v2075
      %v2570 = vmul.f32 %v2565, %v2075
      %v2571 = vmul.f32 %v2567, %v2075
      %2572 = vrot.lane.b32.xlu0 %v2480, 119
      %v2573 = vpop.permute.xlu0 %2572
      %2574 = vrot.lane.b32.xlu0 %v2481, 119
      %v2575 = vpop.permute.xlu0 %2574
      %2576 = vrot.lane.b32.xlu0 %v2482, 119
      %v2577 = vpop.permute.xlu0 %2576
      %2578 = vrot.lane.b32.xlu0 %v2483, 119
      %v2579 = vpop.permute.xlu0 %2578
      %v2580 = vmul.f32 %v2573, %v2092
      %v2581 = vmul.f32 %v2575, %v2092
      %v2582 = vmul.f32 %v2577, %v2092
      %v2583 = vmul.f32 %v2579, %v2092
      %v2584 = vpack.c.bf16 %v2493, %v2492
      %v2585 = vpack.c.bf16 %v2495, %v2494
      %v2586 = vpack.c.bf16 %v2505, %v2504
      %v2587 = vpack.c.bf16 %v2507, %v2506
      %v2588 = vpack.c.bf16 %v2517, %v2516
      %v2589 = vpack.c.bf16 %v2519, %v2518
      %v2590 = vpack.c.bf16 %v2529, %v2528
      %v2591 = vpack.c.bf16 %v2531, %v2530
      %v2592 = vpack.c.bf16 %v2533, %v2532
      %v2593 = vpack.c.bf16 %v2535, %v2534
      %v2594 = vpack.c.bf16 %v2545, %v2544
      %v2595 = vpack.c.bf16 %v2547, %v2546
      %v2596 = vpack.c.bf16 %v2557, %v2556
      %v2597 = vpack.c.bf16 %v2559, %v2558
      %v2598 = vpack.c.bf16 %v2569, %v2568
      %v2599 = vpack.c.bf16 %v2571, %v2570
      %v2600 = vpack.c.bf16 %v2581, %v2580
      %v2601 = vpack.c.bf16 %v2583, %v2582
      %v2602 = vld [vmem:[%s4] sm:$0xff]
      %v2603 = vld [vmem:[%s4 + $0x8] sm:$0xf]
      %v2604 = vld [vmem:[%s4 + $0xc] sm:$0xff]
      %v2605 = vld [vmem:[%s4 + $0x14] sm:$0xf]
      %v2606 = vld [vmem:[%s4 + $0x18] sm:$0xff]
      %v2607 = vld [vmem:[%s4 + $0x20] sm:$0xf]
      %v2608 = vld [vmem:[%s4 + $0x24] sm:$0xff]
      %v2609 = vld [vmem:[%s4 + $0x2c] sm:$0xf]
      %v2618 = vunpack.c.l.b16 %v2602
      %v2619 = vunpack.c.h.b16 %v2602
      %v2620 = vunpack.c.l.b16 %v2603
      %v2621 = vunpack.c.l.b16 %v2604
      %v2622 = vunpack.c.h.b16 %v2604
      %v2623 = vunpack.c.l.b16 %v2605
      %v2624 = vunpack.c.l.b16 %v2606
      %v2625 = vunpack.c.h.b16 %v2606
      %v2626 = vunpack.c.l.b16 %v2607
      %v2627 = vunpack.c.l.b16 %v2608
      %v2628 = vunpack.c.h.b16 %v2608
      %v2629 = vunpack.c.l.b16 %v2609
      %v2630 = vpack.c.b16 %v2621, %v2618
      %v2631 = vpack.c.b16 %v2622, %v2619
      %v2632 = vpack.c.b16 %v2623, %v2620
      %v2633 = vpack.c.b16 %v2627, %v2624
      %v2634 = vpack.c.b16 %v2628, %v2625
      %v2635 = vpack.c.b16 %v2629, %v2626
      %v2641 = vsel %vm1393, %v2632, 0
      %v2644 = vsel %vm1393, %v2635, 0
      %2646 = vmatpush.bf16.msra.mxu0 %v2591
      %2647 = vmatpush.bf16.msra.mxu0 %v2590
      %2648 = vmatpush.bf16.msra.mxu0 %v2589
      %2649 = vmatpush.bf16.msra.mxu0 %v2588
      %2650 = vmatpush.bf16.msra.mxu0 %v2587
      %2651 = vmatpush.bf16.msra.mxu0 %v2586
      %2652 = vmatpush.bf16.msra.mxu0 %v2585
      %2653 = vmatpush.bf16.msra.mxu0 %v2584
      %2654 = vmatmul.bf16.gmra.mxu0 %v2630
      %v2655 = vpop.f32.mrf.mxu0
      %v2656 = vadd.f32 0.0, %v2655
      %v2657 = vpop.f32.mrf.mxu0
      %v2658 = vadd.f32 0.0, %v2657
      %2659 = vmatmul.bf16.gmra.mxu0 %v2633
      %v2660 = vpop.f32.mrf.mxu0
      %v2661 = vadd.f32 0.0, %v2660
      %v2662 = vpop.f32.mrf.mxu0
      %v2663 = vadd.f32 0.0, %v2662
      %2664 = vdwg.mxu0
      %2665 = vmatpush.bf16.msra.mxu0 %v2599
      %2666 = vmatpush.bf16.msra.mxu0 %v2598
      %2667 = vmatpush.bf16.msra.mxu0 %v2597
      %2668 = vmatpush.bf16.msra.mxu0 %v2596
      %2669 = vmatpush.bf16.msra.mxu0 %v2595
      %2670 = vmatpush.bf16.msra.mxu0 %v2594
      %2671 = vmatpush.bf16.msra.mxu0 %v2593
      %2672 = vmatpush.bf16.msra.mxu0 %v2592
      %2673 = vmatmul.bf16.gmra.mxu0 %v2631
      %v2674 = vpop.f32.mrf.mxu0
      %v2675 = vadd.f32 %v2656, %v2674
      %v2676 = vpop.f32.mrf.mxu0
      %v2677 = vadd.f32 %v2658, %v2676
      %2678 = vmatmul.bf16.gmra.mxu0 %v2634
      %v2679 = vpop.f32.mrf.mxu0
      %v2680 = vadd.f32 %v2661, %v2679
      %v2681 = vpop.f32.mrf.mxu0
      %v2682 = vadd.f32 %v2663, %v2681
      %2683 = vdwg.mxu0
      %2684 = vmatpush.bf16.msra.mxu0 0
      %2685 = vmatpush.bf16.msra.mxu0 0
      %2686 = vmatpush.bf16.msra.mxu0 0
      %2687 = vmatpush.bf16.msra.mxu0 0
      %2688 = vmatpush.bf16.msra.mxu0 0
      %2689 = vmatpush.bf16.msra.mxu0 0
      %2690 = vmatpush.bf16.msra.mxu0 %v2601
      %2691 = vmatpush.bf16.msra.mxu0 %v2600
      %2692 = vmatmul.bf16.gmra.mxu0 %v2641
      %v2693 = vpop.f32.mrf.mxu0
      %v2694 = vadd.f32 %v2675, %v2693
      %v2695 = vpop.f32.mrf.mxu0
      %v2696 = vadd.f32 %v2677, %v2695
      %2697 = vmatmul.bf16.gmra.mxu0 %v2644
      %v2698 = vpop.f32.mrf.mxu0
      %v2699 = vadd.f32 %v2680, %v2698
      %v2700 = vpop.f32.mrf.mxu0
      %v2701 = vadd.f32 %v2682, %v2700
      %2702 = vdwg.mxu0
      %v2703 = vpack.c.bf16 %v2696, %v2694
      %v2704 = vpack.c.bf16 %v2701, %v2699
      %v2705 = vld [vmem:[%s11] sm:$0xf]
      %v2706 = vld [vmem:[%s11 + $0x4] sm:$0xf]
      %v2707 = vld [vmem:[%s11 + $0x8] sm:$0xf]
      %v2708 = vld [vmem:[%s11 + $0xc] sm:$0xf]
      %v2709 = vld [vmem:[%s11 + $0x10] sm:$0xf]
      %v2710 = vld [vmem:[%s11 + $0x14] sm:$0xf]
      %v2711 = vld [vmem:[%s11 + $0x18] sm:$0xf]
      %v2712 = vld [vmem:[%s11 + $0x1c] sm:$0xf]
      %v2713 = vld [vmem:[%s11 + $0x20] sm:$0xf]
      %v2714 = vld [vmem:[%s11 + $0x24] sm:$0xf]
      %v2715 = vld [vmem:[%s11 + $0x28] sm:$0xf]
      %v2716 = vld [vmem:[%s11 + $0x2c] sm:$0xf]
      %v2717 = vld [vmem:[%s11 + $0x30] sm:$0xf]
      %v2718 = vld [vmem:[%s11 + $0x34] sm:$0xf]
      %v2719 = vld [vmem:[%s11 + $0x38] sm:$0xf]
      %v2720 = vld [vmem:[%s11 + $0x3c] sm:$0xf]
      %s2721 = scalar_lea.vmem %s5, 96
      %v2722 = vld [vmem:[%s2721] sm:$0xff]
      %v2723 = vld [vmem:[%s2721 + $0x8] sm:$0xff]
      %v2724 = vld [vmem:[%s2721 + $0x10] sm:$0xff]
      %v2725 = vld [vmem:[%s2721 + $0x18] sm:$0xff]
      %2727 = vset.pattern.permute.xlu0 0
      %2728 = vperm.xlu0 %2727, %v2722
      %v2729 = vpop.permute.xlu0 %2728
      %2732 = vset.pattern.permute.xlu0 0
      %2733 = vperm.xlu0 %2732, %v2723
      %v2734 = vpop.permute.xlu0 %2733
      %2737 = vset.pattern.permute.xlu0 0
      %2738 = vperm.xlu0 %2737, %v2724
      %v2739 = vpop.permute.xlu0 %2738
      %2742 = vset.pattern.permute.xlu0 0
      %2743 = vperm.xlu0 %2742, %v2725
      %v2744 = vpop.permute.xlu0 %2743
      %v2762 = vunpack.c.l.b16 %v2705
      %v2763 = vunpack.c.l.b16 %v2706
      %v2764 = vunpack.c.l.b16 %v2707
      %v2765 = vunpack.c.l.b16 %v2708
      %v2766 = vunpack.c.l.b16 %v2709
      %v2767 = vunpack.c.l.b16 %v2710
      %v2768 = vunpack.c.l.b16 %v2711
      %v2769 = vunpack.c.l.b16 %v2712
      %v2770 = vunpack.c.l.b16 %v2713
      %v2771 = vunpack.c.l.b16 %v2714
      %v2772 = vunpack.c.l.b16 %v2715
      %v2773 = vunpack.c.l.b16 %v2716
      %v2774 = vunpack.c.l.b16 %v2717
      %v2775 = vunpack.c.l.b16 %v2718
      %v2776 = vunpack.c.l.b16 %v2719
      %v2777 = vunpack.c.l.b16 %v2720
      %v2778 = vpack.c.b16 %v2763, %v2762
      %v2779 = vpack.c.b16 %v2765, %v2764
      %v2780 = vpack.c.b16 %v2767, %v2766
      %v2781 = vpack.c.b16 %v2769, %v2768
      %v2782 = vpack.c.b16 %v2771, %v2770
      %v2783 = vpack.c.b16 %v2773, %v2772
      %v2784 = vpack.c.b16 %v2775, %v2774
      %v2785 = vpack.c.b16 %v2777, %v2776
      %2794 = vmatpush.bf16.msra.mxu0 %v2785
      %2795 = vmatpush.bf16.msra.mxu0 %v2784
      %2796 = vmatpush.bf16.msra.mxu0 %v2783
      %2797 = vmatpush.bf16.msra.mxu0 %v2782
      %2798 = vmatpush.bf16.msra.mxu0 %v2781
      %2799 = vmatpush.bf16.msra.mxu0 %v2780
      %2800 = vmatpush.bf16.msra.mxu0 %v2779
      %2801 = vmatpush.bf16.msra.mxu0 %v2778
      %2802 = vmatmul.bf16.gmra.mxu0 %v2703
      %v2803 = vpop.f32.mrf.mxu0
      %v2804 = vadd.f32 %v2729, %v2803
      %v2805 = vpop.f32.mrf.mxu0
      %v2806 = vadd.f32 %v2734, %v2805
      %2807 = vmatmul.bf16.gmra.mxu0 %v2704
      %v2808 = vpop.f32.mrf.mxu0
      %v2809 = vadd.f32 %v2739, %v2808
      %v2810 = vpop.f32.mrf.mxu0
      %v2811 = vadd.f32 %v2744, %v2810
      %2812 = vdwg.mxu0
      %s2813 = scalar_lea.vmem %s6, 96
      %v2814 = vld [vmem:[%s2813] sm:$0xff]
      %v2815 = vld [vmem:[%s2813 + $0x8] sm:$0xff]
      %v2816 = vld [vmem:[%s2813 + $0x10] sm:$0xff]
      %v2817 = vld [vmem:[%s2813 + $0x18] sm:$0xff]
      %s2818 = scalar_lea.vmem %s7, 96
      %v2819 = vld [vmem:[%s2818] sm:$0xff]
      %v2820 = vld [vmem:[%s2818 + $0x8] sm:$0xff]
      %v2821 = vld [vmem:[%s2818 + $0x10] sm:$0xff]
      %v2822 = vld [vmem:[%s2818 + $0x18] sm:$0xff]
      %vm2823 = vcmask 130048
      %v2824 = vsel %vm2823, %v2804, 0.0
      %2825 = vadd.xlane.f32.xlu0 %v2824
      %v2826 = vpop.xlane.xlu0 %2825
      %v2827 = vsel %vm2823, %v2806, 0.0
      %2828 = vadd.xlane.f32.xlu0 %v2827
      %v2829 = vpop.xlane.xlu0 %2828
      %v2830 = vsel %vm2823, %v2809, 0.0
      %2831 = vadd.xlane.f32.xlu0 %v2830
      %v2832 = vpop.xlane.xlu0 %2831
      %v2833 = vsel %vm2823, %v2811, 0.0
      %2834 = vadd.xlane.f32.xlu0 %v2833
      %v2835 = vpop.xlane.xlu0 %2834
      %v2836 = vmul.f32 %v2804, %v2804
      %v2837 = vmul.f32 %v2806, %v2806
      %v2838 = vmul.f32 %v2809, %v2809
      %v2839 = vmul.f32 %v2811, %v2811
      %v2840 = vsel %vm2823, %v2836, 0.0
      %2841 = vadd.xlane.f32.xlu0 %v2840
      %v2842 = vpop.xlane.xlu0 %2841
      %v2843 = vsel %vm2823, %v2837, 0.0
      %2844 = vadd.xlane.f32.xlu0 %v2843
      %v2845 = vpop.xlane.xlu0 %2844
      %v2846 = vsel %vm2823, %v2838, 0.0
      %2847 = vadd.xlane.f32.xlu0 %v2846
      %v2848 = vpop.xlane.xlu0 %2847
      %v2849 = vsel %vm2823, %v2839, 0.0
      %2850 = vadd.xlane.f32.xlu0 %v2849
      %v2851 = vpop.xlane.xlu0 %2850
      %v2852 = vmul.f32 %v2826, %v468
      %v2853 = vmul.f32 %v2829, %v469
      %v2854 = vmul.f32 %v2832, %v470
      %v2855 = vmul.f32 %v2835, %v471
      %v2856 = vsel %vm760, %v2852, 0.0
      %v2857 = vsel %vm760, %v2853, 0.0
      %v2858 = vadd.f32 %v2856, %v2857
      %v2859 = vsel %vm760, %v2854, 0.0
      %v2860 = vadd.f32 %v2858, %v2859
      %v2861 = vsel %vm760, %v2855, 0.0
      %v2862 = vadd.f32 %v2860, %v2861
      %2863 = vadd.xlane.f32.xlu0 %v2862
      %v2864 = vpop.xlane.xlu0 %2863
      %v2865 = vrot.slane %v2864, 4
      %v2866 = vadd.f32 %v2864, %v2865
      %v2867 = vrot.slane %v2866, 2
      %v2868 = vadd.f32 %v2866, %v2867
      %v2869 = vrot.slane %v2868, 1
      %v2870 = vadd.f32 %v2868, %v2869
      %s2871 = vtos %v2870
      %v2872 = vstv %s2871
      %v2873 = vmul.f32 %v2872, 0.00390625
      %v2874 = vmul.f32 %v2826, %v472
      %v2875 = vmul.f32 %v2829, %v473
      %v2876 = vmul.f32 %v2832, %v474
      %v2877 = vmul.f32 %v2835, %v475
      %v2878 = vsel %vm760, %v2874, 0.0
      %v2879 = vsel %vm760, %v2875, 0.0
      %v2880 = vadd.f32 %v2878, %v2879
      %v2881 = vsel %vm760, %v2876, 0.0
      %v2882 = vadd.f32 %v2880, %v2881
      %v2883 = vsel %vm760, %v2877, 0.0
      %v2884 = vadd.f32 %v2882, %v2883
      %2885 = vadd.xlane.f32.xlu0 %v2884
      %v2886 = vpop.xlane.xlu0 %2885
      %v2887 = vrot.slane %v2886, 4
      %v2888 = vadd.f32 %v2886, %v2887
      %v2889 = vrot.slane %v2888, 2
      %v2890 = vadd.f32 %v2888, %v2889
      %v2891 = vrot.slane %v2890, 1
      %v2892 = vadd.f32 %v2890, %v2891
      %s2893 = vtos %v2892
      %v2894 = vstv %s2893
      %v2895 = vmul.f32 %v2894, 0.00390625
      %v2896 = vmul.f32 %v2842, %v468
      %v2897 = vmul.f32 %v2845, %v469
      %v2898 = vmul.f32 %v2848, %v470
      %v2899 = vmul.f32 %v2851, %v471
      %v2900 = vsel %vm760, %v2896, 0.0
      %v2901 = vsel %vm760, %v2897, 0.0
      %v2902 = vadd.f32 %v2900, %v2901
      %v2903 = vsel %vm760, %v2898, 0.0
      %v2904 = vadd.f32 %v2902, %v2903
      %v2905 = vsel %vm760, %v2899, 0.0
      %v2906 = vadd.f32 %v2904, %v2905
      %2907 = vadd.xlane.f32.xlu0 %v2906
      %v2908 = vpop.xlane.xlu0 %2907
      %v2909 = vrot.slane %v2908, 4
      %v2910 = vadd.f32 %v2908, %v2909
      %v2911 = vrot.slane %v2910, 2
      %v2912 = vadd.f32 %v2910, %v2911
      %v2913 = vrot.slane %v2912, 1
      %v2914 = vadd.f32 %v2912, %v2913
      %s2915 = vtos %v2914
      %v2916 = vstv %s2915
      %v2917 = vmul.f32 %v2916, 0.00390625
      %v2918 = vmul.f32 %v2873, %v2873
      %v2919 = vsub.f32 %v2917, %v2918
      %v2920 = vmax.f32 %v2919, 0.0
      %v2921 = vmul.f32 %v2842, %v472
      %v2922 = vmul.f32 %v2845, %v473
      %v2923 = vmul.f32 %v2848, %v474
      %v2924 = vmul.f32 %v2851, %v475
      %v2925 = vsel %vm760, %v2921, 0.0
      %v2926 = vsel %vm760, %v2922, 0.0
      %v2927 = vadd.f32 %v2925, %v2926
      %v2928 = vsel %vm760, %v2923, 0.0
      %v2929 = vadd.f32 %v2927, %v2928
      %v2930 = vsel %vm760, %v2924, 0.0
      %v2931 = vadd.f32 %v2929, %v2930
      %2932 = vadd.xlane.f32.xlu0 %v2931
      %v2933 = vpop.xlane.xlu0 %2932
      %v2934 = vrot.slane %v2933, 4
      %v2935 = vadd.f32 %v2933, %v2934
      %v2936 = vrot.slane %v2935, 2
      %v2937 = vadd.f32 %v2935, %v2936
      %v2938 = vrot.slane %v2937, 1
      %v2939 = vadd.f32 %v2937, %v2938
      %s2940 = vtos %v2939
      %v2941 = vstv %s2940
      %v2942 = vmul.f32 %v2941, 0.00390625
      %v2943 = vmul.f32 %v2895, %v2895
      %v2944 = vsub.f32 %v2942, %v2943
      %v2945 = vmax.f32 %v2944, 0.0
      %v2946 = vmul.f32 %v2873, %v468
      %v2947 = vmul.f32 %v2873, %v469
      %v2948 = vmul.f32 %v2873, %v470
      %v2949 = vmul.f32 %v2873, %v471
      %v2950 = vmul.f32 %v2895, %v472
      %v2951 = vmul.f32 %v2895, %v473
      %v2952 = vmul.f32 %v2895, %v474
      %v2953 = vmul.f32 %v2895, %v475
      %v2954 = vadd.f32 %v2946, %v2950
      %v2955 = vadd.f32 %v2947, %v2951
      %v2956 = vadd.f32 %v2948, %v2952
      %v2957 = vadd.f32 %v2949, %v2953
      %v2958 = vadd.f32 %v2920, 1e-05
      %v2959 = vrsqrt.pop %v2958
      %v2960 = vmul.f32 %v2959, %v2958
      %v2961 = vmul.f32 %v2960, %v2959
      %v2962 = vmul.f32 0.5, %v2961
      %v2963 = vsub.f32 1.5, %v2962
      %v2964 = vmul.f32 %v2959, %v2963
      %vm2965 = vweird.f32 %v2958
      %vm2966 = vweird.f32 %v2959
      %vm2967 = vmor %vm2965, %vm2966
      %v2968 = vsel %vm2967, %v2959, %v2964
      %v2969 = vmul.f32 %v2968, %v468
      %v2970 = vmul.f32 %v2968, %v469
      %v2971 = vmul.f32 %v2968, %v470
      %v2972 = vmul.f32 %v2968, %v471
      %v2973 = vadd.f32 %v2945, 1e-05
      %v2974 = vrsqrt.pop %v2973
      %v2975 = vmul.f32 %v2974, %v2973
      %v2976 = vmul.f32 %v2975, %v2974
      %v2977 = vmul.f32 0.5, %v2976
      %v2978 = vsub.f32 1.5, %v2977
      %v2979 = vmul.f32 %v2974, %v2978
      %vm2980 = vweird.f32 %v2973
      %vm2981 = vweird.f32 %v2974
      %vm2982 = vmor %vm2980, %vm2981
      %v2983 = vsel %vm2982, %v2974, %v2979
      %v2984 = vmul.f32 %v2983, %v472
      %v2985 = vmul.f32 %v2983, %v473
      %v2986 = vmul.f32 %v2983, %v474
      %v2987 = vmul.f32 %v2983, %v475
      %v2988 = vadd.f32 %v2969, %v2984
      %v2989 = vadd.f32 %v2970, %v2985
      %v2990 = vadd.f32 %v2971, %v2986
      %v2991 = vadd.f32 %v2972, %v2987
      %v2992 = vsub.f32 %v2804, %v2954
      %v2993 = vsub.f32 %v2806, %v2955
      %v2994 = vsub.f32 %v2809, %v2956
      %v2995 = vsub.f32 %v2811, %v2957
      %v2996 = vmul.f32 %v2992, %v2988
      %v2997 = vmul.f32 %v2993, %v2989
      %v2998 = vmul.f32 %v2994, %v2990
      %v2999 = vmul.f32 %v2995, %v2991
      %3001 = vset.pattern.permute.xlu0 0
      %3002 = vperm.xlu0 %3001, %v2814
      %v3003 = vpop.permute.xlu0 %3002
      %3006 = vset.pattern.permute.xlu0 0
      %3007 = vperm.xlu0 %3006, %v2815
      %v3008 = vpop.permute.xlu0 %3007
      %3011 = vset.pattern.permute.xlu0 0
      %3012 = vperm.xlu0 %3011, %v2816
      %v3013 = vpop.permute.xlu0 %3012
      %3016 = vset.pattern.permute.xlu0 0
      %3017 = vperm.xlu0 %3016, %v2817
      %v3018 = vpop.permute.xlu0 %3017
      %v3020 = vmul.f32 %v2996, %v3003
      %v3021 = vmul.f32 %v2997, %v3008
      %v3022 = vmul.f32 %v2998, %v3013
      %v3023 = vmul.f32 %v2999, %v3018
      %3025 = vset.pattern.permute.xlu0 0
      %3026 = vperm.xlu0 %3025, %v2819
      %v3027 = vpop.permute.xlu0 %3026
      %3030 = vset.pattern.permute.xlu0 0
      %3031 = vperm.xlu0 %3030, %v2820
      %v3032 = vpop.permute.xlu0 %3031
      %3035 = vset.pattern.permute.xlu0 0
      %3036 = vperm.xlu0 %3035, %v2821
      %v3037 = vpop.permute.xlu0 %3036
      %3040 = vset.pattern.permute.xlu0 0
      %3041 = vperm.xlu0 %3040, %v2822
      %v3042 = vpop.permute.xlu0 %3041
      %v3044 = vadd.f32 %v3020, %v3027
      %v3045 = vadd.f32 %v3021, %v3032
      %v3046 = vadd.f32 %v3022, %v3037
      %v3047 = vadd.f32 %v3023, %v3042
      %vm3048 = vcmp.ge.f32.partialorder %v3044, 0.0
      %vm3049 = vcmp.ge.f32.partialorder %v3045, 0.0
      %vm3050 = vcmp.ge.f32.partialorder %v3046, 0.0
      %vm3051 = vcmp.ge.f32.partialorder %v3047, 0.0
      %v3052 = vmul.f32 %v3044, 0.2
      %v3053 = vmul.f32 %v3045, 0.2
      %v3054 = vmul.f32 %v3046, 0.2
      %v3055 = vmul.f32 %v3047, 0.2
      %v3056 = vsel %vm3048, %v3044, %v3052
      %v3057 = vsel %vm3049, %v3045, %v3053
      %v3058 = vsel %vm3050, %v3046, %v3054
      %v3059 = vsel %vm3051, %v3047, %v3055
      %3060 = vst.msk [vmem:[%s448] sm:$0xff] %vm2823, %v3056
      %3061 = vst.msk [vmem:[%s448 + $0x8] sm:$0xff] %vm2823, %v3057
      %3062 = vst.msk [vmem:[%s448 + $0x10] sm:$0xff] %vm2823, %v3058
      %3063 = vst.msk [vmem:[%s448 + $0x18] sm:$0xff] %vm2823, %v3059
      %p3064 = scmp.lt.s32.totalorder %s25, 1
      %s3065 = scalar_select %p3064, %s25, 1
      %s3066 = smul.addr %s3065, 4
      %s3067 = smul.addr %s3066, 8
      %s3068 = scalar_lea.vmem %s12, %s3067
      %p3069 = scmp.lt.s32.totalorder %s25, 1
      %s3070 = scalar_select %p3069, %s25, 1
      %s3071 = smul.addr %s3070, 8
      %s3072 = smul.addr %s3071, 8
      %s3073 = scalar_lea.vmem %s13, %s3072
      // Predicated region
      $region69: #{cnn_encoder_forward.1} parent=67 // pred_check
        %p3074 = pneg %p300
      $region70: #{cnn_encoder_forward.1} parent=67 // pred_check_branch
        %3076 = sbr.rel (%p3074) target = $region72
      $region71: #{cnn_encoder_forward.1} parent=67 // pred_region
        _
      $region72: #{cnn_encoder_forward.1} parent=67 // pred_fallthru
        _
      // Predicated region
      $region73: #{cnn_encoder_forward.1} parent=67 // pred_check
        %p3077 = pneg %p326
      $region74: #{cnn_encoder_forward.1} parent=67 // pred_check_branch
        %3079 = sbr.rel (%p3077) target = $region76
      $region75: #{cnn_encoder_forward.1} parent=67 // pred_region
        _
      $region76: #{cnn_encoder_forward.1} parent=67 // pred_fallthru
        _
    $region68: #{cnn_encoder_forward.1} parent=5 // pred_fallthru
      _
    %p3080 = scmp.le.s32.totalorder 2, %s20
    // Predicated region
    $region77: #{cnn_encoder_forward.1} parent=5 // pred_check
      %p3081 = pneg %p3080
    $region78: #{cnn_encoder_forward.1} parent=5 // pred_check_branch
      %3083 = sbr.rel (%p3081) target = $region80
    $region79: #{cnn_encoder_forward.1} parent=5 // pred_region
      %s3084 = ssub.s32 %s20, 2
      // Predicated region
      $region81: #{cnn_encoder_forward.1} parent=79 // pred_check
        %p3085 = pneg %p306
      $region82: #{cnn_encoder_forward.1} parent=79 // pred_check_branch
        %3087 = sbr.rel (%p3085) target = $region84
      $region83: #{cnn_encoder_forward.1} parent=79 // pred_region
        %p3088 = scmp.lt.s32.totalorder %s26, 1
        %s3089 = scalar_select %p3088, %s26, 1
        %s3090 = smul.addr %s3089, 4
        %s3091 = smul.addr %s3090, 8
        %s3092 = scalar_lea.vmem %s12, %s3091
      $region84: #{cnn_encoder_forward.1} parent=79 // pred_fallthru
        _
      // Predicated region
      $region85: #{cnn_encoder_forward.1} parent=79 // pred_check
        %p3093 = pneg %p332
      $region86: #{cnn_encoder_forward.1} parent=79 // pred_check_branch
        %3095 = sbr.rel (%p3093) target = $region88
      $region87: #{cnn_encoder_forward.1} parent=79 // pred_region
        %p3096 = scmp.lt.s32.totalorder %s26, 1
        %s3097 = scalar_select %p3096, %s26, 1
        %s3098 = smul.addr %s3097, 8
        %s3099 = smul.addr %s3098, 8
        %s3100 = scalar_lea.vmem %s13, %s3099
      $region88: #{cnn_encoder_forward.1} parent=79 // pred_fallthru
        _
    $region80: #{cnn_encoder_forward.1} parent=5 // pred_fallthru
      _
  $region6: #{cnn_encoder_forward.1} parent=0 // loop_footer
    %s24 = sadd.s32 1, %s20
  $region7: #{cnn_encoder_forward.1} parent=0 // loop_footer_branch
    %19 = sbr.rel target = $region3
  $region8: #{cnn_encoder_forward.1} parent=0 // loop_exit
    _

</llo_original>
